<compile_context>
chip_gen: v7x
topology: tpu7x:2x2x1
jax: 0.10.0
libtpu: 0.0.40
codegen_flags: <defaults>
</compile_context>

<pallas_src>
import math
from functools import partial

import jax
import jax.numpy as jnp
from jax.experimental import pallas as pl
from jax.experimental.pallas import tpu as pltpu


# -----------------------------------------------------------------------------
# Tiling helpers
# -----------------------------------------------------------------------------
def _fit_tile(dim, target, unit):
    """Largest divisor of `dim` that is <= target and a multiple of `unit`;
    falls back to the full dim (always a legal block size)."""
    if dim <= target:
        return dim
    t = (target // unit) * unit
    while t >= unit:
        if dim % t == 0:
            return t
        t -= unit
    return dim


def _sub_unit(dtype):
    """Sublane unit: bf16 packs 2 rows per 32-bit word -> prefer multiples of 16."""
    return 16 if dtype == jnp.bfloat16 else 8


# -----------------------------------------------------------------------------
# Tiled linear:  y = act(x @ w + b)     (bf16 in, f32 accumulate, bf16/f32 out)
# -----------------------------------------------------------------------------
def _linear_kernel(x_ref, w_ref, b_ref, o_ref, acc_ref, *, activation):
    k = pl.program_id(2)

    @pl.when(k == 0)
    def _():
        acc_ref[...] = jnp.zeros_like(acc_ref)

    acc_ref[...] += jnp.dot(x_ref[...], w_ref[...],
                            preferred_element_type=jnp.float32)

    @pl.when(k == pl.num_programs(2) - 1)
    def _():
        y = acc_ref[...] + b_ref[...]
        if activation == "relu":
            y = jnp.maximum(y, 0.0)
        o_ref[...] = y.astype(o_ref.dtype)


def linear_pallas(x2d, w, b, activation=None, out_dtype=None,
                  tm=256, tn=512, tk=512):
    """x2d: (M, K) bf16, w: (K, N) bf16, b: (N,) f32 -> (M, N)."""
    M, K = x2d.shape
    N = w.shape[1]
    out_dtype = out_dtype if out_dtype is not None else x2d.dtype
    tm = _fit_tile(M, tm, _sub_unit(x2d.dtype))
    tn = _fit_tile(N, tn, 128)
    tk = _fit_tile(K, tk, 128)
    grid = (M // tm, N // tn, K // tk)
    return pl.pallas_call(
        partial(_linear_kernel, activation=activation),
        out_shape=jax.ShapeDtypeStruct((M, N), out_dtype),
        grid=grid,
        in_specs=[
            pl.BlockSpec((tm, tk), lambda i, j, k: (i, k)),
            pl.BlockSpec((tk, tn), lambda i, j, k: (k, j)),
            pl.BlockSpec((1, tn), lambda i, j, k: (0, j)),
        ],
        out_specs=pl.BlockSpec((tm, tn), lambda i, j, k: (i, j)),
        scratch_shapes=[pltpu.VMEM((tm, tn), jnp.float32)],
        compiler_params=pltpu.CompilerParams(
            dimension_semantics=("parallel", "parallel", "arbitrary")),
    )(x2d, w, b.reshape(1, N))


# -----------------------------------------------------------------------------
# Fused multi-output linear: one x @ [w0|w1|...] matmul (weights already
# pre-concatenated at param-prep time), split into separate outputs.
# Used for the Q/K/V (and K/V) projections.
# -----------------------------------------------------------------------------
def _fused_qkv_kernel(x_ref, w_ref, b_ref, *refs, out_dims):
    n_out = len(out_dims)
    out_refs = refs[:n_out]
    acc_ref = refs[n_out]
    k = pl.program_id(1)

    @pl.when(k == 0)
    def _():
        acc_ref[...] = jnp.zeros_like(acc_ref)

    acc_ref[...] += jnp.dot(x_ref[...], w_ref[...],
                            preferred_element_type=jnp.float32)

    @pl.when(k == pl.num_programs(1) - 1)
    def _():
        y = acc_ref[...] + b_ref[...]
        off = 0
        for r, d in zip(out_refs, out_dims):
            r[...] = y[:, off:off + d].astype(r.dtype)
            off += d


def fused_qkv_pallas(x2d, w, b, out_dims, tm=256, tk=256):
    """x2d: (M, K) bf16; w: (K, sum(out_dims)) bf16 (pre-concatenated);
    b: (sum(out_dims),) f32 -> tuple of (M, di) bf16."""
    M, K = x2d.shape
    N = int(w.shape[1])
    out_dims = tuple(int(d) for d in out_dims)
    tm = _fit_tile(M, tm, _sub_unit(x2d.dtype))
    tk = _fit_tile(K, tk, 128)
    grid = (M // tm, K // tk)
    return pl.pallas_call(
        partial(_fused_qkv_kernel, out_dims=out_dims),
        out_shape=tuple(jax.ShapeDtypeStruct((M, d), x2d.dtype) for d in out_dims),
        grid=grid,
        in_specs=[
            pl.BlockSpec((tm, tk), lambda i, k: (i, k)),
            pl.BlockSpec((tk, N), lambda i, k: (k, 0)),
            pl.BlockSpec((1, N), lambda i, k: (0, 0)),
        ],
        out_specs=tuple(
            pl.BlockSpec((tm, d), lambda i, k: (i, 0)) for d in out_dims
        ),
        scratch_shapes=[pltpu.VMEM((tm, N), jnp.float32)],
        compiler_params=pltpu.CompilerParams(
            dimension_semantics=("parallel", "arbitrary")),
    )(x2d, w, b.reshape(1, N))


# -----------------------------------------------------------------------------
# Multi-head scaled-dot-product attention.
#   * Q is pre-scaled (1/sqrt(hd) folded into the projection weights).
#   * Causal mask generated in-kernel from iota (no mask DMA); non-causal
#     paths skip the add entirely.
#   * Heads sliced inside the kernel; each head stores directly into its
#     o_ref column slice (no concat, bounded live ranges).
# -----------------------------------------------------------------------------
def _mha_attn_kernel(q_ref, k_ref, v_ref, o_ref, *, n_heads, head_dim, causal, tq):
    q = q_ref[...]                       # (tq, D) bf16
    k = k_ref[...]                       # (Skv, D) bf16
    v = v_ref[...]                       # (Skv, D) bf16
    skv = k.shape[0]
    if causal:
        qi = pl.program_id(1)
        rows = qi * tq + jax.lax.broadcasted_iota(jnp.int32, (tq, skv), 0)
        cols = jax.lax.broadcasted_iota(jnp.int32, (tq, skv), 1)
        neg = jnp.where(cols > rows, -1e9, 0.0)
    for h in range(n_heads):
        lo = h * head_dim
        qh = q[:, lo:lo + head_dim]
        kh = k[:, lo:lo + head_dim]
        vh = v[:, lo:lo + head_dim]
        s = jax.lax.dot_general(qh, kh, (((1,), (1,)), ((), ())),
                                preferred_element_type=jnp.float32)
        if causal:
            s = s + neg
        m = jnp.max(s, axis=-1, keepdims=True)
        p = jnp.exp(s - m)
        p = p * pl.reciprocal(jnp.sum(p, axis=-1, keepdims=True), approx=True)
        oh = jnp.dot(p.astype(vh.dtype), vh, preferred_element_type=jnp.float32)
        o_ref[:, lo:lo + head_dim] = oh.astype(o_ref.dtype)


def attention_pallas(q2d, k2d, v2d, B, Sq, Skv, n_heads, head_dim,
                     causal=False, tq=256):
    """q2d: (B*Sq, D) bf16, k2d/v2d: (B*Skv, D) bf16 -> (B*Sq, D) bf16."""
    D = n_heads * head_dim
    q3 = q2d.reshape(B, Sq, D)
    k3 = k2d.reshape(B, Skv, D)
    v3 = v2d.reshape(B, Skv, D)
    tq = _fit_tile(Sq, tq, _sub_unit(q2d.dtype))
    nq = Sq // tq
    grid = (B, nq)
    out = pl.pallas_call(
        partial(_mha_attn_kernel, n_heads=n_heads, head_dim=head_dim,
                causal=causal, tq=tq),
        out_shape=jax.ShapeDtypeStruct((B, Sq, D), q2d.dtype),
        grid=grid,
        in_specs=[
            pl.BlockSpec((None, tq, D), lambda b, qi: (b, qi, 0)),
            pl.BlockSpec((None, Skv, D), lambda b, qi: (b, 0, 0)),
            pl.BlockSpec((None, Skv, D), lambda b, qi: (b, 0, 0)),
        ],
        out_specs=pl.BlockSpec((None, tq, D), lambda b, qi: (b, qi, 0)),
        compiler_params=pltpu.CompilerParams(
            dimension_semantics=("parallel", "arbitrary")),
    )(q3, k3, v3)
    return out.reshape(B * Sq, D)


# -----------------------------------------------------------------------------
# Fused linear + residual add + LayerNorm (PyTorch biased-variance LN):
#   out = LN(x @ w + b + residual)
# N (= D) is untiled so the full row is available for the LN in the epilogue.
# -----------------------------------------------------------------------------
def _linear_add_ln_kernel(x_ref, w_ref, b_ref, res_ref, g_ref, beta_ref,
                          o_ref, acc_ref, *, eps):
    k = pl.program_id(1)

    @pl.when(k == 0)
    def _():
        acc_ref[...] = jnp.zeros_like(acc_ref)

    acc_ref[...] += jnp.dot(x_ref[...], w_ref[...],
                            preferred_element_type=jnp.float32)

    @pl.when(k == pl.num_programs(1) - 1)
    def _():
        y = acc_ref[...] + b_ref[...] + res_ref[...].astype(jnp.float32)
        mu = jnp.mean(y, axis=-1, keepdims=True)
        yc = y - mu
        var = jnp.mean(yc * yc, axis=-1, keepdims=True)
        z = yc * jax.lax.rsqrt(var + eps)
        o_ref[...] = (z * g_ref[...] + beta_ref[...]).astype(o_ref.dtype)


def linear_add_ln_pallas(x2d, w, b, residual, gamma, beta, eps=1e-5,
                         tm=256, tk=512):
    M, K = x2d.shape
    N = w.shape[1]
    tm = _fit_tile(M, tm, _sub_unit(x2d.dtype))
    tk = _fit_tile(K, tk, 128)
    grid = (M // tm, K // tk)
    return pl.pallas_call(
        partial(_linear_add_ln_kernel, eps=eps),
        out_shape=jax.ShapeDtypeStruct((M, N), residual.dtype),
        grid=grid,
        in_specs=[
            pl.BlockSpec((tm, tk), lambda i, k: (i, k)),
            pl.BlockSpec((tk, N), lambda i, k: (k, 0)),
            pl.BlockSpec((1, N), lambda i, k: (0, 0)),
            pl.BlockSpec((tm, N), lambda i, k: (i, 0)),
            pl.BlockSpec((1, N), lambda i, k: (0, 0)),
            pl.BlockSpec((1, N), lambda i, k: (0, 0)),
        ],
        out_specs=pl.BlockSpec((tm, N), lambda i, k: (i, 0)),
        scratch_shapes=[pltpu.VMEM((tm, N), jnp.float32)],
        compiler_params=pltpu.CompilerParams(
            dimension_semantics=("parallel", "arbitrary")),
    )(x2d, w, b.reshape(1, N), residual, gamma.reshape(1, N), beta.reshape(1, N))


# -----------------------------------------------------------------------------
# Final linear + softmax over the vocab.
#   * Small vocab: fully fused (logits never leave VMEM, exact f32 softmax).
#   * Large vocab (v7x VMEM budget): N-tiled linear -> f32 logits, then a
#     row-tiled exact softmax kernel (full vocab row per block).
# -----------------------------------------------------------------------------
def _linear_softmax_kernel(x_ref, w_ref, b_ref, o_ref, acc_ref):
    k = pl.program_id(1)

    @pl.when(k == 0)
    def _():
        acc_ref[...] = jnp.zeros_like(acc_ref)

    acc_ref[...] += jnp.dot(x_ref[...], w_ref[...],
                            preferred_element_type=jnp.float32)

    @pl.when(k == pl.num_programs(1) - 1)
    def _():
        logits = acc_ref[...] + b_ref[...]
        m = jnp.max(logits, axis=-1, keepdims=True)
        e = jnp.exp(logits - m)
        o_ref[...] = (e / jnp.sum(e, axis=-1, keepdims=True)).astype(o_ref.dtype)


def _softmax_rows_kernel(x_ref, o_ref):
    x = x_ref[...].astype(jnp.float32)
    m = jnp.max(x, axis=-1, keepdims=True)
    e = jnp.exp(x - m)
    o_ref[...] = (e / jnp.sum(e, axis=-1, keepdims=True)).astype(o_ref.dtype)


def final_linear_softmax(x2d, w, b, tm=256, tk=512, vmem_budget=20 * 1024 * 1024):
    M, K = x2d.shape
    N = w.shape[1]
    tm_f = _fit_tile(M, tm, _sub_unit(x2d.dtype))
    tk_f = _fit_tile(K, tk, 128)
    # fused-path VMEM: f32 acc + double-buffered f32 out + double-buffered bf16 W
    fused_bytes = (tm_f * N * 4) + 2 * (tm_f * N * 4) + 2 * (tk_f * N * w.dtype.itemsize)
    if fused_bytes <= vmem_budget:
        grid = (M // tm_f, K // tk_f)
        return pl.pallas_call(
            _linear_softmax_kernel,
            out_shape=jax.ShapeDtypeStruct((M, N), jnp.float32),
            grid=grid,
            in_specs=[
                pl.BlockSpec((tm_f, tk_f), lambda i, k: (i, k)),
                pl.BlockSpec((tk_f, N), lambda i, k: (k, 0)),
                pl.BlockSpec((1, N), lambda i, k: (0, 0)),
            ],
            out_specs=pl.BlockSpec((tm_f, N), lambda i, k: (i, 0)),
            scratch_shapes=[pltpu.VMEM((tm_f, N), jnp.float32)],
            compiler_params=pltpu.CompilerParams(
                dimension_semantics=("parallel", "arbitrary")),
        )(x2d, w, b.reshape(1, N))
    # Large-vocab fallback: N-tiled linear to f32 logits, then exact softmax.
    logits = linear_pallas(x2d, w, b, out_dtype=jnp.float32, tm=tm, tn=512, tk=tk)
    tm_s = _fit_tile(M, 32, 8)
    return pl.pallas_call(
        _softmax_rows_kernel,
        out_shape=jax.ShapeDtypeStruct((M, N), jnp.float32),
        grid=(M // tm_s,),
        in_specs=[pl.BlockSpec((tm_s, N), lambda i: (i, 0))],
        out_specs=pl.BlockSpec((tm_s, N), lambda i: (i, 0)),
        compiler_params=pltpu.CompilerParams(dimension_semantics=("parallel",)),
    )(logits)


# -----------------------------------------------------------------------------
# Model glue (plain JAX) — mirrors the PyTorch forward exactly
# -----------------------------------------------------------------------------
def sinusoidal_pos_encoding(d_model, seq_len):
    pos = jnp.arange(seq_len, dtype=jnp.float32)[:, None]
    den = jnp.power(10000.0, jnp.arange(0, d_model, 2, dtype=jnp.float32) / d_model)
    pe = jnp.zeros((seq_len, d_model), dtype=jnp.float32)
    pe = pe.at[:, 0::2].set(jnp.sin(pos / den))
    pe = pe.at[:, 1::2].set(jnp.cos(pos / den))
    return pe


def encoder_layer(x2d, p, B, S, n_heads):
    D = x2d.shape[1]
    hd = D // n_heads
    a = p["attn"]
    q2d, k2d, v2d = fused_qkv_pallas(x2d, a["qkv_w"], a["qkv_b"], (D, D, D))
    atn = attention_pallas(q2d, k2d, v2d, B, S, S, n_heads, hd, causal=False)
    # output projection fused with residual add + LayerNorm
    at = linear_add_ln_pallas(atn, a["prj_w"], a["prj_b"], x2d,
                              p["atn_norm"]["g"], p["atn_norm"]["b"])
    f = p["fd_fwd"]
    h = linear_pallas(at, f["w1_w"], f["w1_b"], activation="relu")
    return linear_add_ln_pallas(h, f["w2_w"], f["w2_b"], at,
                                p["fwd_norm"]["g"], p["fwd_norm"]["b"])


def decoder_layer(x2d, enc2d, p, B, S_out, S_in, n_heads):
    D = x2d.shape[1]
    hd = D // n_heads
    # masked self-attention
    a1 = p["attn_1"]
    q2d, k2d, v2d = fused_qkv_pallas(x2d, a1["qkv_w"], a1["qkv_b"], (D, D, D))
    atn = attention_pallas(q2d, k2d, v2d, B, S_out, S_out, n_heads, hd, causal=True)
    at = linear_add_ln_pallas(atn, a1["prj_w"], a1["prj_b"], x2d,
                              p["norm_1"]["g"], p["norm_1"]["b"])
    # cross-attention (no mask)
    a2 = p["attn_2"]
    cq = linear_pallas(at, a2["q_w"], a2["q_b"])
    ck, cv = fused_qkv_pallas(enc2d, a2["kv_w"], a2["kv_b"], (D, D))
    att = attention_pallas(cq, ck, cv, B, S_out, S_in, n_heads, hd, causal=False)
    ax = linear_add_ln_pallas(att, a2["prj_w"], a2["prj_b"], at,
                              p["norm_2"]["g"], p["norm_2"]["b"])
    # feed forward
    f = p["fd_fwd"]
    h = linear_pallas(ax, f["w1_w"], f["w1_b"], activation="relu")
    return linear_add_ln_pallas(h, f["w2_w"], f["w2_b"], ax,
                                p["norm_3"]["g"], p["norm_3"]["b"])


def transformer_forward(params, inp, out, n_heads):
    B, S_in, D = inp.shape
    _, S_out, _ = out.shape
    inp2d = (inp + sinusoidal_pos_encoding(D, S_in)).astype(jnp.bfloat16)
    out2d = (out + sinusoidal_pos_encoding(D, S_out)).astype(jnp.bfloat16)
    inp2d = inp2d.reshape(B * S_in, D)
    out2d = out2d.reshape(B * S_out, D)

    for lp in params["encoder_layers"]:
        inp2d = encoder_layer(inp2d, lp, B, S_in, n_heads)
    for lp in params["decoder_layers"]:
        out2d = decoder_layer(out2d, inp2d, lp, B, S_out, S_in, n_heads)

    probs = final_linear_softmax(out2d, params["linear"]["w"], params["linear"]["b"])
    return probs.reshape(B, S_out, -1)


# -----------------------------------------------------------------------------
# Parameter init (nn.Linear / nn.LayerNorm-like, f32) and kernel-ready prep:
#   * pre-concatenate Q/K/V (and K/V) weights once,
#   * fold 1/sqrt(head_dim) into the Q projection,
#   * cast weights to bf16 (biases / LN params stay f32).
# -----------------------------------------------------------------------------
def init_linear(key, d_in, d_out):
    k1, k2 = jax.random.split(key)
    bound = 1.0 / math.sqrt(d_in)
    return {
        "w": jax.random.uniform(k1, (d_in, d_out), jnp.float32, -bound, bound),
        "b": jax.random.uniform(k2, (d_out,), jnp.float32, -bound, bound),
    }


def init_ln(d):
    return {"g": jnp.ones((d,), jnp.float32), "b": jnp.zeros((d,), jnp.float32)}


def init_attention(key, d):
    ks = jax.random.split(key, 4)
    return {
        "ql": init_linear(ks[0], d, d),
        "kl": init_linear(ks[1], d, d),
        "vl": init_linear(ks[2], d, d),
        "prj": init_linear(ks[3], d, d),
    }


def init_ff(key, d, ff_d):
    k1, k2 = jax.random.split(key)
    return {"w1": init_linear(k1, d, ff_d), "w2": init_linear(k2, ff_d, d)}


def init_transformer(key, n_layers, d, ff_d, vocab):
    keys = jax.random.split(key, 2 * n_layers + 1)
    enc_layers = []
    for i in range(n_layers):
        k1, k2 = jax.random.split(keys[i])
        enc_layers.append({
            "attn": init_attention(k1, d),
            "fd_fwd": init_ff(k2, d, ff_d),
            "atn_norm": init_ln(d),
            "fwd_norm": init_ln(d),
        })
    dec_layers = []
    for i in range(n_layers):
        k1, k2, k3 = jax.random.split(keys[n_layers + i], 3)
        dec_layers.append({
            "attn_1": init_attention(k1, d),
            "norm_1": init_ln(d),
            "attn_2": init_attention(k2, d),
            "norm_2": init_ln(d),
            "fd_fwd": init_ff(k3, d, ff_d),
            "norm_3": init_ln(d),
        })
    return {
        "encoder_layers": enc_layers,
        "decoder_layers": dec_layers,
        "linear": init_linear(keys[-1], d, vocab),
    }
    # TODO(synk): nn.Embedding exists in the module but is never used in forward(); omitted.


def prepare_params(params, n_heads):
    D = params["linear"]["w"].shape[0]
    hd = D // n_heads
    inv_scale = 1.0 / math.sqrt(hd)

    def prep_self_attn(a):
        w = jnp.concatenate([a["ql"]["w"], a["kl"]["w"], a["vl"]["w"]], axis=1)
        b = jnp.concatenate([a["ql"]["b"], a["kl"]["b"], a["vl"]["b"]])
        scale = jnp.concatenate([jnp.full((D,), inv_scale, jnp.float32),
                                 jnp.ones((2 * D,), jnp.float32)])
        w = w * scale[None, :]
        b = b * scale
        return {"qkv_w": w.astype(jnp.bfloat16), "qkv_b": b,
                "prj_w": a["prj"]["w"].astype(jnp.bfloat16), "prj_b": a["prj"]["b"]}

    def prep_cross_attn(a):
        kv_w = jnp.concatenate([a["kl"]["w"], a["vl"]["w"]], axis=1)
        kv_b = jnp.concatenate([a["kl"]["b"], a["vl"]["b"]])
        return {"q_w": (a["ql"]["w"] * inv_scale).astype(jnp.bfloat16),
                "q_b": a["ql"]["b"] * inv_scale,
                "kv_w": kv_w.astype(jnp.bfloat16), "kv_b": kv_b,
                "prj_w": a["prj"]["w"].astype(jnp.bfloat16), "prj_b": a["prj"]["b"]}

    def prep_ff(f):
        return {"w1_w": f["w1"]["w"].astype(jnp.bfloat16), "w1_b": f["w1"]["b"],
                "w2_w": f["w2"]["w"].astype(jnp.bfloat16), "w2_b": f["w2"]["b"]}

    enc = []
    for lp in params["encoder_layers"]:
        enc.append({"attn": prep_self_attn(lp["attn"]),
                    "fd_fwd": prep_ff(lp["fd_fwd"]),
                    "atn_norm": lp["atn_norm"], "fwd_norm": lp["fwd_norm"]})
    dec = []
    for lp in params["decoder_layers"]:
        dec.append({"attn_1": prep_self_attn(lp["attn_1"]),
                    "attn_2": prep_cross_attn(lp["attn_2"]),
                    "norm_1": lp["norm_1"], "norm_2": lp["norm_2"],
                    "norm_3": lp["norm_3"], "fd_fwd": prep_ff(lp["fd_fwd"])})
    return {"encoder_layers": enc, "decoder_layers": dec,
            "linear": {"w": params["linear"]["w"].astype(jnp.bfloat16),
                       "b": params["linear"]["b"]}}


# -----------------------------------------------------------------------------
if __name__ == "__main__":
    # small config consistent with the module (scaled-down ModelArgs)
    n_layers, n_heads, embed, ff_size, vocab = 2, 4, 32, 64, 64
    B, S_in, S_out = 2, 8, 8

    key = jax.random.PRNGKey(0)
    kp, ki, ko = jax.random.split(key, 3)
    raw_params = init_transformer(kp, n_layers, embed, ff_size, vocab)
    params = prepare_params(raw_params, n_heads)

    inp = jax.random.normal(ki, (B, S_in, embed), jnp.float32)
    out = jax.random.normal(ko, (B, S_out, embed), jnp.float32)

    fwd = jax.jit(partial(transformer_forward, n_heads=n_heads))
    probs = jax.block_until_ready(fwd(params, inp, out))

    assert probs.shape == (B, S_out, vocab)
    assert bool(jnp.all(jnp.isfinite(probs)))
    # final softmax uses exact f32 division -> rows sum to 1
    assert bool(jnp.allclose(jnp.sum(probs, axis=-1), 1.0, atol=1e-3))
    print("KERNEL_OK")
</pallas_src>

<mosaic_0001>
module attributes {stable_mosaic.version = 11 : i64} {
  func.func @_mha_attn_kernel(%arg0: i32, %arg1: i32, %arg2: memref<1x8x32xbf16, #tpu.memory_space<vmem>>, %arg3: memref<1x8x32xbf16, #tpu.memory_space<vmem>>, %arg4: memref<1x8x32xbf16, #tpu.memory_space<vmem>>, %arg5: memref<1x8x32xbf16, #tpu.memory_space<vmem>>) attributes {dimension_semantics = [#tpu.dimension_semantics<parallel>, #tpu.dimension_semantics<arbitrary>], iteration_bounds = array<i64: 2, 1>, scalar_prefetch = 0 : i64, scratch_operands = 0 : i64, tpu.core_type = #tpu.core_type<tc>, window_params = [{transform_indices = @transform_0, window_bounds = array<i64: 1, 8, 32>}, {transform_indices = @transform_1, window_bounds = array<i64: 1, 8, 32>}, {transform_indices = @transform_2, window_bounds = array<i64: 1, 8, 32>}, {transform_indices = @transform_3, window_bounds = array<i64: 1, 8, 32>}]} {
    %c0 = arith.constant 0 : index
    %c0_0 = arith.constant 0 : index
    %c0_1 = arith.constant 0 : index
    %0 = vector.load %arg2[%c0, %c0_0, %c0_1] : memref<1x8x32xbf16, #tpu.memory_space<vmem>>, vector<1x8x32xbf16>
    %1 = vector.shape_cast %0 : vector<1x8x32xbf16> to vector<8x32xbf16>
    %c0_2 = arith.constant 0 : index
    %c0_3 = arith.constant 0 : index
    %c0_4 = arith.constant 0 : index
    %2 = vector.load %arg3[%c0_2, %c0_3, %c0_4] : memref<1x8x32xbf16, #tpu.memory_space<vmem>>, vector<1x8x32xbf16>
    %3 = vector.shape_cast %2 : vector<1x8x32xbf16> to vector<8x32xbf16>
    %c0_5 = arith.constant 0 : index
    %c0_6 = arith.constant 0 : index
    %c0_7 = arith.constant 0 : index
    %4 = vector.load %arg4[%c0_5, %c0_6, %c0_7] : memref<1x8x32xbf16, #tpu.memory_space<vmem>>, vector<1x8x32xbf16>
    %5 = vector.shape_cast %4 : vector<1x8x32xbf16> to vector<8x32xbf16>
    %6 = vector.extract_strided_slice %1 {offsets = [0, 0], sizes = [8, 8], strides = [1, 1]} : vector<8x32xbf16> to vector<8x8xbf16>
    %7 = vector.extract_strided_slice %3 {offsets = [0, 0], sizes = [8, 8], strides = [1, 1]} : vector<8x32xbf16> to vector<8x8xbf16>
    %8 = vector.extract_strided_slice %5 {offsets = [0, 0], sizes = [8, 8], strides = [1, 1]} : vector<8x32xbf16> to vector<8x8xbf16>
    %cst = arith.constant dense<0.000000e+00> : vector<8x8xf32>
    %9 = tpu.matmul %6, %7, %cst {dimension_numbers = #tpu.dot_dimension_numbers<[1], [1], [0], [0], [0, 0, 1, 0], [], []>} : vector<8x8xbf16>, vector<8x8xbf16>, vector<8x8xf32> -> vector<8x8xf32>
    %cst_8 = arith.constant dense<0xFF800000> : vector<8xf32>
    %10 = vector.multi_reduction <maximumf>, %9, %cst_8 [1] : vector<8x8xf32> to vector<8xf32>
    %11 = vector.shape_cast %10 : vector<8xf32> to vector<8x1xf32>
    %12 = vector.broadcast %11 : vector<8x1xf32> to vector<8x8xf32>
    %13 = arith.subf %9, %12 : vector<8x8xf32>
    %14 = math.exp %13 : vector<8x8xf32>
    %cst_9 = arith.constant dense<0.000000e+00> : vector<8xf32>
    %15 = vector.multi_reduction <add>, %14, %cst_9 [1] : vector<8x8xf32> to vector<8xf32>
    %16 = vector.shape_cast %15 : vector<8xf32> to vector<8x1xf32>
    %17 = tpu.reciprocal %16 {approx = true} : vector<8x1xf32> -> vector<8x1xf32>
    %18 = vector.broadcast %17 : vector<8x1xf32> to vector<8x8xf32>
    %19 = arith.mulf %14, %18 : vector<8x8xf32>
    %20 = arith.truncf %19 : vector<8x8xf32> to vector<8x8xbf16>
    %cst_10 = arith.constant dense<0.000000e+00> : vector<8x8xf32>
    %21 = tpu.matmul %20, %8, %cst_10 {dimension_numbers = #tpu.dot_dimension_numbers<[1], [0], [0], [1], [0, 0, 1, 1], [], []>} : vector<8x8xbf16>, vector<8x8xbf16>, vector<8x8xf32> -> vector<8x8xf32>
    %22 = arith.truncf %21 : vector<8x8xf32> to vector<8x8xbf16>
    %c0_11 = arith.constant 0 : index
    %c0_12 = arith.constant 0 : index
    %c0_13 = arith.constant 0 : index
    %23 = vector.load %arg5[%c0_11, %c0_12, %c0_13] : memref<1x8x32xbf16, #tpu.memory_space<vmem>>, vector<1x8x8xbf16>
    %24 = vector.shape_cast %23 : vector<1x8x8xbf16> to vector<8x8xbf16>
    %25 = vector.shape_cast %22 : vector<8x8xbf16> to vector<1x8x8xbf16>
    tpu.vector_store %arg5[%c0_11, %c0_12, %c0_13], %25 {strides = array<i32>} : memref<1x8x32xbf16, #tpu.memory_space<vmem>>, vector<1x8x8xbf16>,
    %26 = vector.extract_strided_slice %1 {offsets = [0, 8], sizes = [8, 8], strides = [1, 1]} : vector<8x32xbf16> to vector<8x8xbf16>
    %27 = vector.extract_strided_slice %3 {offsets = [0, 8], sizes = [8, 8], strides = [1, 1]} : vector<8x32xbf16> to vector<8x8xbf16>
    %28 = vector.extract_strided_slice %5 {offsets = [0, 8], sizes = [8, 8], strides = [1, 1]} : vector<8x32xbf16> to vector<8x8xbf16>
    %cst_14 = arith.constant dense<0.000000e+00> : vector<8x8xf32>
    %29 = tpu.matmul %26, %27, %cst_14 {dimension_numbers = #tpu.dot_dimension_numbers<[1], [1], [0], [0], [0, 0, 1, 0], [], []>} : vector<8x8xbf16>, vector<8x8xbf16>, vector<8x8xf32> -> vector<8x8xf32>
    %cst_15 = arith.constant dense<0xFF800000> : vector<8xf32>
    %30 = vector.multi_reduction <maximumf>, %29, %cst_15 [1] : vector<8x8xf32> to vector<8xf32>
    %31 = vector.shape_cast %30 : vector<8xf32> to vector<8x1xf32>
    %32 = vector.broadcast %31 : vector<8x1xf32> to vector<8x8xf32>
    %33 = arith.subf %29, %32 : vector<8x8xf32>
    %34 = math.exp %33 : vector<8x8xf32>
    %cst_16 = arith.constant dense<0.000000e+00> : vector<8xf32>
    %35 = vector.multi_reduction <add>, %34, %cst_16 [1] : vector<8x8xf32> to vector<8xf32>
    %36 = vector.shape_cast %35 : vector<8xf32> to vector<8x1xf32>
    %37 = tpu.reciprocal %36 {approx = true} : vector<8x1xf32> -> vector<8x1xf32>
    %38 = vector.broadcast %37 : vector<8x1xf32> to vector<8x8xf32>
    %39 = arith.mulf %34, %38 : vector<8x8xf32>
    %40 = arith.truncf %39 : vector<8x8xf32> to vector<8x8xbf16>
    %cst_17 = arith.constant dense<0.000000e+00> : vector<8x8xf32>
    %41 = tpu.matmul %40, %28, %cst_17 {dimension_numbers = #tpu.dot_dimension_numbers<[1], [0], [0], [1], [0, 0, 1, 1], [], []>} : vector<8x8xbf16>, vector<8x8xbf16>, vector<8x8xf32> -> vector<8x8xf32>
    %42 = arith.truncf %41 : vector<8x8xf32> to vector<8x8xbf16>
    %c0_18 = arith.constant 0 : index
    %c0_19 = arith.constant 0 : index
    %c8 = arith.constant 8 : index
    %43 = vector.load %arg5[%c0_18, %c0_19, %c8] : memref<1x8x32xbf16, #tpu.memory_space<vmem>>, vector<1x8x8xbf16>
    %44 = vector.shape_cast %43 : vector<1x8x8xbf16> to vector<8x8xbf16>
    %45 = vector.shape_cast %42 : vector<8x8xbf16> to vector<1x8x8xbf16>
    tpu.vector_store %arg5[%c0_18, %c0_19, %c8], %45 {strides = array<i32>} : memref<1x8x32xbf16, #tpu.memory_space<vmem>>, vector<1x8x8xbf16>,
    %46 = vector.extract_strided_slice %1 {offsets = [0, 16], sizes = [8, 8], strides = [1, 1]} : vector<8x32xbf16> to vector<8x8xbf16>
    %47 = vector.extract_strided_slice %3 {offsets = [0, 16], sizes = [8, 8], strides = [1, 1]} : vector<8x32xbf16> to vector<8x8xbf16>
    %48 = vector.extract_strided_slice %5 {offsets = [0, 16], sizes = [8, 8], strides = [1, 1]} : vector<8x32xbf16> to vector<8x8xbf16>
    %cst_20 = arith.constant dense<0.000000e+00> : vector<8x8xf32>
    %49 = tpu.matmul %46, %47, %cst_20 {dimension_numbers = #tpu.dot_dimension_numbers<[1], [1], [0], [0], [0, 0, 1, 0], [], []>} : vector<8x8xbf16>, vector<8x8xbf16>, vector<8x8xf32> -> vector<8x8xf32>
    %cst_21 = arith.constant dense<0xFF800000> : vector<8xf32>
    %50 = vector.multi_reduction <maximumf>, %49, %cst_21 [1] : vector<8x8xf32> to vector<8xf32>
    %51 = vector.shape_cast %50 : vector<8xf32> to vector<8x1xf32>
    %52 = vector.broadcast %51 : vector<8x1xf32> to vector<8x8xf32>
    %53 = arith.subf %49, %52 : vector<8x8xf32>
    %54 = math.exp %53 : vector<8x8xf32>
    %cst_22 = arith.constant dense<0.000000e+00> : vector<8xf32>
    %55 = vector.multi_reduction <add>, %54, %cst_22 [1] : vector<8x8xf32> to vector<8xf32>
    %56 = vector.shape_cast %55 : vector<8xf32> to vector<8x1xf32>
    %57 = tpu.reciprocal %56 {approx = true} : vector<8x1xf32> -> vector<8x1xf32>
    %58 = vector.broadcast %57 : vector<8x1xf32> to vector<8x8xf32>
    %59 = arith.mulf %54, %58 : vector<8x8xf32>
    %60 = arith.truncf %59 : vector<8x8xf32> to vector<8x8xbf16>
    %cst_23 = arith.constant dense<0.000000e+00> : vector<8x8xf32>
    %61 = tpu.matmul %60, %48, %cst_23 {dimension_numbers = #tpu.dot_dimension_numbers<[1], [0], [0], [1], [0, 0, 1, 1], [], []>} : vector<8x8xbf16>, vector<8x8xbf16>, vector<8x8xf32> -> vector<8x8xf32>
    %62 = arith.truncf %61 : vector<8x8xf32> to vector<8x8xbf16>
    %c0_24 = arith.constant 0 : index
    %c0_25 = arith.constant 0 : index
    %c16 = arith.constant 16 : index
    %63 = vector.load %arg5[%c0_24, %c0_25, %c16] : memref<1x8x32xbf16, #tpu.memory_space<vmem>>, vector<1x8x8xbf16>
    %64 = vector.shape_cast %63 : vector<1x8x8xbf16> to vector<8x8xbf16>
    %65 = vector.shape_cast %62 : vector<8x8xbf16> to vector<1x8x8xbf16>
    tpu.vector_store %arg5[%c0_24, %c0_25, %c16], %65 {strides = array<i32>} : memref<1x8x32xbf16, #tpu.memory_space<vmem>>, vector<1x8x8xbf16>,
    %66 = vector.extract_strided_slice %1 {offsets = [0, 24], sizes = [8, 8], strides = [1, 1]} : vector<8x32xbf16> to vector<8x8xbf16>
    %67 = vector.extract_strided_slice %3 {offsets = [0, 24], sizes = [8, 8], strides = [1, 1]} : vector<8x32xbf16> to vector<8x8xbf16>
    %68 = vector.extract_strided_slice %5 {offsets = [0, 24], sizes = [8, 8], strides = [1, 1]} : vector<8x32xbf16> to vector<8x8xbf16>
    %cst_26 = arith.constant dense<0.000000e+00> : vector<8x8xf32>
    %69 = tpu.matmul %66, %67, %cst_26 {dimension_numbers = #tpu.dot_dimension_numbers<[1], [1], [0], [0], [0, 0, 1, 0], [], []>} : vector<8x8xbf16>, vector<8x8xbf16>, vector<8x8xf32> -> vector<8x8xf32>
    %cst_27 = arith.constant dense<0xFF800000> : vector<8xf32>
    %70 = vector.multi_reduction <maximumf>, %69, %cst_27 [1] : vector<8x8xf32> to vector<8xf32>
    %71 = vector.shape_cast %70 : vector<8xf32> to vector<8x1xf32>
    %72 = vector.broadcast %71 : vector<8x1xf32> to vector<8x8xf32>
    %73 = arith.subf %69, %72 : vector<8x8xf32>
    %74 = math.exp %73 : vector<8x8xf32>
    %cst_28 = arith.constant dense<0.000000e+00> : vector<8xf32>
    %75 = vector.multi_reduction <add>, %74, %cst_28 [1] : vector<8x8xf32> to vector<8xf32>
    %76 = vector.shape_cast %75 : vector<8xf32> to vector<8x1xf32>
    %77 = tpu.reciprocal %76 {approx = true} : vector<8x1xf32> -> vector<8x1xf32>
    %78 = vector.broadcast %77 : vector<8x1xf32> to vector<8x8xf32>
    %79 = arith.mulf %74, %78 : vector<8x8xf32>
    %80 = arith.truncf %79 : vector<8x8xf32> to vector<8x8xbf16>
    %cst_29 = arith.constant dense<0.000000e+00> : vector<8x8xf32>
    %81 = tpu.matmul %80, %68, %cst_29 {dimension_numbers = #tpu.dot_dimension_numbers<[1], [0], [0], [1], [0, 0, 1, 1], [], []>} : vector<8x8xbf16>, vector<8x8xbf16>, vector<8x8xf32> -> vector<8x8xf32>
    %82 = arith.truncf %81 : vector<8x8xf32> to vector<8x8xbf16>
    %c0_30 = arith.constant 0 : index
    %c0_31 = arith.constant 0 : index
    %c24 = arith.constant 24 : index
    %83 = vector.load %arg5[%c0_30, %c0_31, %c24] : memref<1x8x32xbf16, #tpu.memory_space<vmem>>, vector<1x8x8xbf16>
    %84 = vector.shape_cast %83 : vector<1x8x8xbf16> to vector<8x8xbf16>
    %85 = vector.shape_cast %82 : vector<8x8xbf16> to vector<1x8x8xbf16>
    tpu.vector_store %arg5[%c0_30, %c0_31, %c24], %85 {strides = array<i32>} : memref<1x8x32xbf16, #tpu.memory_space<vmem>>, vector<1x8x8xbf16>,
    return
  }
  func.func @transform_0(%arg0: i32, %arg1: i32) -> (i32, i32, i32) {
    %c0_i32 = arith.constant 0 : i32
    %c0_i32_0 = arith.constant 0 : i32
    return %arg0, %arg1, %c0_i32 : i32, i32, i32
  }
  func.func @transform_1(%arg0: i32, %arg1: i32) -> (i32, i32, i32) {
    %c0_i32 = arith.constant 0 : i32
    %c0_i32_0 = arith.constant 0 : i32
    %c0_i32_1 = arith.constant 0 : i32
    return %arg0, %c0_i32, %c0_i32_0 : i32, i32, i32
  }
  func.func @transform_2(%arg0: i32, %arg1: i32) -> (i32, i32, i32) {
    %c0_i32 = arith.constant 0 : i32
    %c0_i32_0 = arith.constant 0 : i32
    %c0_i32_1 = arith.constant 0 : i32
    return %arg0, %c0_i32, %c0_i32_0 : i32, i32, i32
  }
  func.func @transform_3(%arg0: i32, %arg1: i32) -> (i32, i32, i32) {
    %c0_i32 = arith.constant 0 : i32
    %c0_i32_0 = arith.constant 0 : i32
    return %arg0, %arg1, %c0_i32 : i32, i32, i32
  }
}

module attributes {stable_mosaic.version = 11 : i64} {
  func.func @_linear_add_ln_kernel(%arg0: i32, %arg1: i32, %arg2: memref<16x32xbf16, #tpu.memory_space<vmem>>, %arg3: memref<32x32xbf16, #tpu.memory_space<vmem>>, %arg4: memref<1x32xf32, #tpu.memory_space<vmem>>, %arg5: memref<16x32xbf16, #tpu.memory_space<vmem>>, %arg6: memref<1x32xf32, #tpu.memory_space<vmem>>, %arg7: memref<1x32xf32, #tpu.memory_space<vmem>>, %arg8: memref<16x32xbf16, #tpu.memory_space<vmem>>, %arg9: memref<16x32xf32, #tpu.memory_space<vmem>>) attributes {dimension_semantics = [#tpu.dimension_semantics<parallel>, #tpu.dimension_semantics<arbitrary>], iteration_bounds = array<i64: 1, 1>, scalar_prefetch = 0 : i64, scratch_operands = 1 : i64, tpu.core_type = #tpu.core_type<tc>, window_params = [{transform_indices = @transform_0, window_bounds = array<i64: 16, 32>}, {transform_indices = @transform_1, window_bounds = array<i64: 32, 32>}, {pipeline_mode = #tpu.pipeline_mode<synchronous>, transform_indices = @transform_2, window_bounds = array<i64: 1, 32>}, {transform_indices = @transform_3, window_bounds = array<i64: 16, 32>}, {pipeline_mode = #tpu.pipeline_mode<synchronous>, transform_indices = @transform_4, window_bounds = array<i64: 1, 32>}, {pipeline_mode = #tpu.pipeline_mode<synchronous>, transform_indices = @transform_5, window_bounds = array<i64: 1, 32>}, {transform_indices = @transform_6, window_bounds = array<i64: 16, 32>}]} {
    %c0_i32 = arith.constant 0 : i32
    %0 = arith.cmpi eq, %arg1, %c0_i32 : i32
    %1 = arith.extui %0 : i1 to i32
    %c0_i32_0 = arith.constant 0 : i32
    %2 = arith.cmpi ne, %1, %c0_i32_0 : i32
    scf.if %2 {
      %cst_10 = arith.constant 0.000000e+00 : f32
      %12 = vector.broadcast %cst_10 : f32 to vector<16x32xf32>
      %c0_11 = arith.constant 0 : index
      %c0_12 = arith.constant 0 : index
      %13 = vector.load %arg9[%c0_11, %c0_12] : memref<16x32xf32, #tpu.memory_space<vmem>>, vector<16x32xf32>
      tpu.vector_store %arg9[%c0_11, %c0_12], %12 {strides = array<i32>} : memref<16x32xf32, #tpu.memory_space<vmem>>, vector<16x32xf32>,
    } else {
    }
    %c0 = arith.constant 0 : index
    %c0_1 = arith.constant 0 : index
    %3 = vector.load %arg9[%c0, %c0_1] : memref<16x32xf32, #tpu.memory_space<vmem>>, vector<16x32xf32>
    %c0_2 = arith.constant 0 : index
    %c0_3 = arith.constant 0 : index
    %4 = vector.load %arg2[%c0_2, %c0_3] : memref<16x32xbf16, #tpu.memory_space<vmem>>, vector<16x32xbf16>
    %c0_4 = arith.constant 0 : index
    %c0_5 = arith.constant 0 : index
    %5 = vector.load %arg3[%c0_4, %c0_5] : memref<32x32xbf16, #tpu.memory_space<vmem>>, vector<32x32xbf16>
    %cst = arith.constant dense<0.000000e+00> : vector<16x32xf32>
    %6 = tpu.matmul %4, %5, %cst {dimension_numbers = #tpu.dot_dimension_numbers<[1], [0], [0], [1], [0, 0, 1, 1], [], []>} : vector<16x32xbf16>, vector<32x32xbf16>, vector<16x32xf32> -> vector<16x32xf32>
    %7 = arith.addf %3, %6 : vector<16x32xf32>
    %c0_6 = arith.constant 0 : index
    %c0_7 = arith.constant 0 : index
    %8 = vector.load %arg9[%c0_6, %c0_7] : memref<16x32xf32, #tpu.memory_space<vmem>>, vector<16x32xf32>
    tpu.vector_store %arg9[%c0_6, %c0_7], %7 {strides = array<i32>} : memref<16x32xf32, #tpu.memory_space<vmem>>, vector<16x32xf32>,
    %c0_i32_8 = arith.constant 0 : i32
    %9 = arith.cmpi eq, %arg1, %c0_i32_8 : i32
    %10 = arith.extui %9 : i1 to i32
    %c0_i32_9 = arith.constant 0 : i32
    %11 = arith.cmpi ne, %10, %c0_i32_9 : i32
    scf.if %11 {
      %c0_10 = arith.constant 0 : index
      %c0_11 = arith.constant 0 : index
      %12 = vector.load %arg9[%c0_10, %c0_11] : memref<16x32xf32, #tpu.memory_space<vmem>>, vector<16x32xf32>
      %c0_12 = arith.constant 0 : index
      %c0_13 = arith.constant 0 : index
      %13 = vector.load %arg4[%c0_12, %c0_13] : memref<1x32xf32, #tpu.memory_space<vmem>>, vector<1x32xf32>
      %14 = vector.broadcast %13 : vector<1x32xf32> to vector<16x32xf32>
      %15 = arith.addf %12, %14 : vector<16x32xf32>
      %c0_14 = arith.constant 0 : index
      %c0_15 = arith.constant 0 : index
      %16 = vector.load %arg5[%c0_14, %c0_15] : memref<16x32xbf16, #tpu.memory_space<vmem>>, vector<16x32xbf16>
      %17 = arith.extf %16 : vector<16x32xbf16> to vector<16x32xf32>
      %18 = arith.addf %15, %17 : vector<16x32xf32>
      %cst_16 = arith.constant dense<0.000000e+00> : vector<16xf32>
      %19 = vector.multi_reduction <add>, %18, %cst_16 [1] : vector<16x32xf32> to vector<16xf32>
      %20 = vector.shape_cast %19 : vector<16xf32> to vector<16x1xf32>
      %cst_17 = arith.constant 3.200000e+01 : f32
      %21 = vector.broadcast %cst_17 : f32 to vector<16x1xf32>
      %22 = arith.divf %20, %21 : vector<16x1xf32>
      %23 = vector.broadcast %22 : vector<16x1xf32> to vector<16x32xf32>
      %24 = arith.subf %18, %23 : vector<16x32xf32>
      %25 = arith.mulf %24, %24 : vector<16x32xf32>
      %cst_18 = arith.constant dense<0.000000e+00> : vector<16xf32>
      %26 = vector.multi_reduction <add>, %25, %cst_18 [1] : vector<16x32xf32> to vector<16xf32>
      %27 = vector.shape_cast %26 : vector<16xf32> to vector<16x1xf32>
      %cst_19 = arith.constant 3.200000e+01 : f32
      %28 = vector.broadcast %cst_19 : f32 to vector<16x1xf32>
      %29 = arith.divf %27, %28 : vector<16x1xf32>
      %cst_20 = arith.constant 9.99999974E-6 : f32
      %30 = vector.broadcast %cst_20 : f32 to vector<16x1xf32>
      %31 = arith.addf %29, %30 : vector<16x1xf32>
      %32 = math.rsqrt %31 : vector<16x1xf32>
      %33 = vector.broadcast %32 : vector<16x1xf32> to vector<16x32xf32>
      %34 = arith.mulf %24, %33 : vector<16x32xf32>
      %c0_21 = arith.constant 0 : index
      %c0_22 = arith.constant 0 : index
      %35 = vector.load %arg6[%c0_21, %c0_22] : memref<1x32xf32, #tpu.memory_space<vmem>>, vector<1x32xf32>
      %36 = vector.broadcast %35 : vector<1x32xf32> to vector<16x32xf32>
      %37 = arith.mulf %34, %36 : vector<16x32xf32>
      %c0_23 = arith.constant 0 : index
      %c0_24 = arith.constant 0 : index
      %38 = vector.load %arg7[%c0_23, %c0_24] : memref<1x32xf32, #tpu.memory_space<vmem>>, vector<1x32xf32>
      %39 = vector.broadcast %38 : vector<1x32xf32> to vector<16x32xf32>
      %40 = arith.addf %37, %39 : vector<16x32xf32>
      %41 = arith.truncf %40 : vector<16x32xf32> to vector<16x32xbf16>
      %c0_25 = arith.constant 0 : index
      %c0_26 = arith.constant 0 : index
      %42 = vector.load %arg8[%c0_25, %c0_26] : memref<16x32xbf16, #tpu.memory_space<vmem>>, vector<16x32xbf16>
      tpu.vector_store %arg8[%c0_25, %c0_26], %41 {strides = array<i32>} : memref<16x32xbf16, #tpu.memory_space<vmem>>, vector<16x32xbf16>,
    } else {
    }
    return
  }
  func.func @transform_0(%arg0: i32, %arg1: i32) -> (i32, i32) {
    %c0_i32 = arith.constant 0 : i32
    return %arg0, %arg1 : i32, i32
  }
  func.func @transform_1(%arg0: i32, %arg1: i32) -> (i32, i32) {
    %c0_i32 = arith.constant 0 : i32
    %c0_i32_0 = arith.constant 0 : i32
    return %arg1, %c0_i32 : i32, i32
  }
  func.func @transform_2(%arg0: i32, %arg1: i32) -> (i32, i32) {
    %c0_i32 = arith.constant 0 : i32
    %c0_i32_0 = arith.constant 0 : i32
    %c0_i32_1 = arith.constant 0 : i32
    return %c0_i32, %c0_i32_0 : i32, i32
  }
  func.func @transform_3(%arg0: i32, %arg1: i32) -> (i32, i32) {
    %c0_i32 = arith.constant 0 : i32
    %c0_i32_0 = arith.constant 0 : i32
    return %arg0, %c0_i32 : i32, i32
  }
  func.func @transform_4(%arg0: i32, %arg1: i32) -> (i32, i32) {
    %c0_i32 = arith.constant 0 : i32
    %c0_i32_0 = arith.constant 0 : i32
    %c0_i32_1 = arith.constant 0 : i32
    return %c0_i32, %c0_i32_0 : i32, i32
  }
  func.func @transform_5(%arg0: i32, %arg1: i32) -> (i32, i32) {
    %c0_i32 = arith.constant 0 : i32
    %c0_i32_0 = arith.constant 0 : i32
    %c0_i32_1 = arith.constant 0 : i32
    return %c0_i32, %c0_i32_0 : i32, i32
  }
  func.func @transform_6(%arg0: i32, %arg1: i32) -> (i32, i32) {
    %c0_i32 = arith.constant 0 : i32
    %c0_i32_0 = arith.constant 0 : i32
    return %arg0, %c0_i32 : i32, i32
  }
}

module attributes {stable_mosaic.version = 11 : i64} {
  func.func @_fused_qkv_kernel(%arg0: i32, %arg1: i32, %arg2: memref<16x32xbf16, #tpu.memory_space<vmem>>, %arg3: memref<32x96xbf16, #tpu.memory_space<vmem>>, %arg4: memref<1x96xf32, #tpu.memory_space<vmem>>, %arg5: memref<16x32xbf16, #tpu.memory_space<vmem>>, %arg6: memref<16x32xbf16, #tpu.memory_space<vmem>>, %arg7: memref<16x32xbf16, #tpu.memory_space<vmem>>, %arg8: memref<16x96xf32, #tpu.memory_space<vmem>>) attributes {dimension_semantics = [#tpu.dimension_semantics<parallel>, #tpu.dimension_semantics<arbitrary>], iteration_bounds = array<i64: 1, 1>, scalar_prefetch = 0 : i64, scratch_operands = 1 : i64, tpu.core_type = #tpu.core_type<tc>, window_params = [{transform_indices = @transform_0, window_bounds = array<i64: 16, 32>}, {transform_indices = @transform_1, window_bounds = array<i64: 32, 96>}, {pipeline_mode = #tpu.pipeline_mode<synchronous>, transform_indices = @transform_2, window_bounds = array<i64: 1, 96>}, {transform_indices = @transform_3, window_bounds = array<i64: 16, 32>}, {transform_indices = @transform_4, window_bounds = array<i64: 16, 32>}, {transform_indices = @transform_5, window_bounds = array<i64: 16, 32>}]} {
    %c0_i32 = arith.constant 0 : i32
    %0 = arith.cmpi eq, %arg1, %c0_i32 : i32
    %1 = arith.extui %0 : i1 to i32
    %c0_i32_0 = arith.constant 0 : i32
    %2 = arith.cmpi ne, %1, %c0_i32_0 : i32
    scf.if %2 {
      %cst_10 = arith.constant 0.000000e+00 : f32
      %12 = vector.broadcast %cst_10 : f32 to vector<16x96xf32>
      %c0_11 = arith.constant 0 : index
      %c0_12 = arith.constant 0 : index
      %13 = vector.load %arg8[%c0_11, %c0_12] : memref<16x96xf32, #tpu.memory_space<vmem>>, vector<16x96xf32>
      tpu.vector_store %arg8[%c0_11, %c0_12], %12 {strides = array<i32>} : memref<16x96xf32, #tpu.memory_space<vmem>>, vector<16x96xf32>,
    } else {
    }
    %c0 = arith.constant 0 : index
    %c0_1 = arith.constant 0 : index
    %3 = vector.load %arg8[%c0, %c0_1] : memref<16x96xf32, #tpu.memory_space<vmem>>, vector<16x96xf32>
    %c0_2 = arith.constant 0 : index
    %c0_3 = arith.constant 0 : index
    %4 = vector.load %arg2[%c0_2, %c0_3] : memref<16x32xbf16, #tpu.memory_space<vmem>>, vector<16x32xbf16>
    %c0_4 = arith.constant 0 : index
    %c0_5 = arith.constant 0 : index
    %5 = vector.load %arg3[%c0_4, %c0_5] : memref<32x96xbf16, #tpu.memory_space<vmem>>, vector<32x96xbf16>
    %cst = arith.constant dense<0.000000e+00> : vector<16x96xf32>
    %6 = tpu.matmul %4, %5, %cst {dimension_numbers = #tpu.dot_dimension_numbers<[1], [0], [0], [1], [0, 0, 1, 1], [], []>} : vector<16x32xbf16>, vector<32x96xbf16>, vector<16x96xf32> -> vector<16x96xf32>
    %7 = arith.addf %3, %6 : vector<16x96xf32>
    %c0_6 = arith.constant 0 : index
    %c0_7 = arith.constant 0 : index
    %8 = vector.load %arg8[%c0_6, %c0_7] : memref<16x96xf32, #tpu.memory_space<vmem>>, vector<16x96xf32>
    tpu.vector_store %arg8[%c0_6, %c0_7], %7 {strides = array<i32>} : memref<16x96xf32, #tpu.memory_space<vmem>>, vector<16x96xf32>,
    %c0_i32_8 = arith.constant 0 : i32
    %9 = arith.cmpi eq, %arg1, %c0_i32_8 : i32
    %10 = arith.extui %9 : i1 to i32
    %c0_i32_9 = arith.constant 0 : i32
    %11 = arith.cmpi ne, %10, %c0_i32_9 : i32
    scf.if %11 {
      %c0_10 = arith.constant 0 : index
      %c0_11 = arith.constant 0 : index
      %12 = vector.load %arg8[%c0_10, %c0_11] : memref<16x96xf32, #tpu.memory_space<vmem>>, vector<16x96xf32>
      %c0_12 = arith.constant 0 : index
      %c0_13 = arith.constant 0 : index
      %13 = vector.load %arg4[%c0_12, %c0_13] : memref<1x96xf32, #tpu.memory_space<vmem>>, vector<1x96xf32>
      %14 = vector.broadcast %13 : vector<1x96xf32> to vector<16x96xf32>
      %15 = arith.addf %12, %14 : vector<16x96xf32>
      %16 = vector.extract_strided_slice %15 {offsets = [0, 0], sizes = [16, 32], strides = [1, 1]} : vector<16x96xf32> to vector<16x32xf32>
      %17 = arith.truncf %16 : vector<16x32xf32> to vector<16x32xbf16>
      %c0_14 = arith.constant 0 : index
      %c0_15 = arith.constant 0 : index
      %18 = vector.load %arg5[%c0_14, %c0_15] : memref<16x32xbf16, #tpu.memory_space<vmem>>, vector<16x32xbf16>
      tpu.vector_store %arg5[%c0_14, %c0_15], %17 {strides = array<i32>} : memref<16x32xbf16, #tpu.memory_space<vmem>>, vector<16x32xbf16>,
      %19 = vector.extract_strided_slice %15 {offsets = [0, 32], sizes = [16, 32], strides = [1, 1]} : vector<16x96xf32> to vector<16x32xf32>
      %20 = arith.truncf %19 : vector<16x32xf32> to vector<16x32xbf16>
      %c0_16 = arith.constant 0 : index
      %c0_17 = arith.constant 0 : index
      %21 = vector.load %arg6[%c0_16, %c0_17] : memref<16x32xbf16, #tpu.memory_space<vmem>>, vector<16x32xbf16>
      tpu.vector_store %arg6[%c0_16, %c0_17], %20 {strides = array<i32>} : memref<16x32xbf16, #tpu.memory_space<vmem>>, vector<16x32xbf16>,
      %22 = vector.extract_strided_slice %15 {offsets = [0, 64], sizes = [16, 32], strides = [1, 1]} : vector<16x96xf32> to vector<16x32xf32>
      %23 = arith.truncf %22 : vector<16x32xf32> to vector<16x32xbf16>
      %c0_18 = arith.constant 0 : index
      %c0_19 = arith.constant 0 : index
      %24 = vector.load %arg7[%c0_18, %c0_19] : memref<16x32xbf16, #tpu.memory_space<vmem>>, vector<16x32xbf16>
      tpu.vector_store %arg7[%c0_18, %c0_19], %23 {strides = array<i32>} : memref<16x32xbf16, #tpu.memory_space<vmem>>, vector<16x32xbf16>,
    } else {
    }
    return
  }
  func.func @transform_0(%arg0: i32, %arg1: i32) -> (i32, i32) {
    %c0_i32 = arith.constant 0 : i32
    return %arg0, %arg1 : i32, i32
  }
  func.func @transform_1(%arg0: i32, %arg1: i32) -> (i32, i32) {
    %c0_i32 = arith.constant 0 : i32
    %c0_i32_0 = arith.constant 0 : i32
    return %arg1, %c0_i32 : i32, i32
  }
  func.func @transform_2(%arg0: i32, %arg1: i32) -> (i32, i32) {
    %c0_i32 = arith.constant 0 : i32
    %c0_i32_0 = arith.constant 0 : i32
    %c0_i32_1 = arith.constant 0 : i32
    return %c0_i32, %c0_i32_0 : i32, i32
  }
  func.func @transform_3(%arg0: i32, %arg1: i32) -> (i32, i32) {
    %c0_i32 = arith.constant 0 : i32
    %c0_i32_0 = arith.constant 0 : i32
    return %arg0, %c0_i32 : i32, i32
  }
  func.func @transform_4(%arg0: i32, %arg1: i32) -> (i32, i32) {
    %c0_i32 = arith.constant 0 : i32
    %c0_i32_0 = arith.constant 0 : i32
    return %arg0, %c0_i32 : i32, i32
  }
  func.func @transform_5(%arg0: i32, %arg1: i32) -> (i32, i32) {
    %c0_i32 = arith.constant 0 : i32
    %c0_i32_0 = arith.constant 0 : i32
    return %arg0, %c0_i32 : i32, i32
  }
}

module attributes {stable_mosaic.version = 11 : i64} {
  func.func @_linear_kernel(%arg0: i32, %arg1: i32, %arg2: i32, %arg3: memref<16x32xbf16, #tpu.memory_space<vmem>>, %arg4: memref<32x64xbf16, #tpu.memory_space<vmem>>, %arg5: memref<1x64xf32, #tpu.memory_space<vmem>>, %arg6: memref<16x64xbf16, #tpu.memory_space<vmem>>, %arg7: memref<16x64xf32, #tpu.memory_space<vmem>>) attributes {dimension_semantics = [#tpu.dimension_semantics<parallel>, #tpu.dimension_semantics<parallel>, #tpu.dimension_semantics<arbitrary>], iteration_bounds = array<i64: 1, 1, 1>, scalar_prefetch = 0 : i64, scratch_operands = 1 : i64, tpu.core_type = #tpu.core_type<tc>, window_params = [{transform_indices = @transform_0, window_bounds = array<i64: 16, 32>}, {transform_indices = @transform_1, window_bounds = array<i64: 32, 64>}, {transform_indices = @transform_2, window_bounds = array<i64: 1, 64>}, {transform_indices = @transform_3, window_bounds = array<i64: 16, 64>}]} {
    %c0_i32 = arith.constant 0 : i32
    %0 = arith.cmpi eq, %arg2, %c0_i32 : i32
    %1 = arith.extui %0 : i1 to i32
    %c0_i32_0 = arith.constant 0 : i32
    %2 = arith.cmpi ne, %1, %c0_i32_0 : i32
    scf.if %2 {
      %cst_10 = arith.constant 0.000000e+00 : f32
      %12 = vector.broadcast %cst_10 : f32 to vector<16x64xf32>
      %c0_11 = arith.constant 0 : index
      %c0_12 = arith.constant 0 : index
      %13 = vector.load %arg7[%c0_11, %c0_12] : memref<16x64xf32, #tpu.memory_space<vmem>>, vector<16x64xf32>
      tpu.vector_store %arg7[%c0_11, %c0_12], %12 {strides = array<i32>} : memref<16x64xf32, #tpu.memory_space<vmem>>, vector<16x64xf32>,
    } else {
    }
    %c0 = arith.constant 0 : index
    %c0_1 = arith.constant 0 : index
    %3 = vector.load %arg7[%c0, %c0_1] : memref<16x64xf32, #tpu.memory_space<vmem>>, vector<16x64xf32>
    %c0_2 = arith.constant 0 : index
    %c0_3 = arith.constant 0 : index
    %4 = vector.load %arg3[%c0_2, %c0_3] : memref<16x32xbf16, #tpu.memory_space<vmem>>, vector<16x32xbf16>
    %c0_4 = arith.constant 0 : index
    %c0_5 = arith.constant 0 : index
    %5 = vector.load %arg4[%c0_4, %c0_5] : memref<32x64xbf16, #tpu.memory_space<vmem>>, vector<32x64xbf16>
    %cst = arith.constant dense<0.000000e+00> : vector<16x64xf32>
    %6 = tpu.matmul %4, %5, %cst {dimension_numbers = #tpu.dot_dimension_numbers<[1], [0], [0], [1], [0, 0, 1, 1], [], []>} : vector<16x32xbf16>, vector<32x64xbf16>, vector<16x64xf32> -> vector<16x64xf32>
    %7 = arith.addf %3, %6 : vector<16x64xf32>
    %c0_6 = arith.constant 0 : index
    %c0_7 = arith.constant 0 : index
    %8 = vector.load %arg7[%c0_6, %c0_7] : memref<16x64xf32, #tpu.memory_space<vmem>>, vector<16x64xf32>
    tpu.vector_store %arg7[%c0_6, %c0_7], %7 {strides = array<i32>} : memref<16x64xf32, #tpu.memory_space<vmem>>, vector<16x64xf32>,
    %c0_i32_8 = arith.constant 0 : i32
    %9 = arith.cmpi eq, %arg2, %c0_i32_8 : i32
    %10 = arith.extui %9 : i1 to i32
    %c0_i32_9 = arith.constant 0 : i32
    %11 = arith.cmpi ne, %10, %c0_i32_9 : i32
    scf.if %11 {
      %c0_10 = arith.constant 0 : index
      %c0_11 = arith.constant 0 : index
      %12 = vector.load %arg7[%c0_10, %c0_11] : memref<16x64xf32, #tpu.memory_space<vmem>>, vector<16x64xf32>
      %c0_12 = arith.constant 0 : index
      %c0_13 = arith.constant 0 : index
      %13 = vector.load %arg5[%c0_12, %c0_13] : memref<1x64xf32, #tpu.memory_space<vmem>>, vector<1x64xf32>
      %14 = vector.broadcast %13 : vector<1x64xf32> to vector<16x64xf32>
      %15 = arith.addf %12, %14 : vector<16x64xf32>
      %cst_14 = arith.constant 0.000000e+00 : f32
      %16 = vector.broadcast %cst_14 : f32 to vector<16x64xf32>
      %17 = arith.maximumf %15, %16 : vector<16x64xf32>
      %18 = arith.truncf %17 : vector<16x64xf32> to vector<16x64xbf16>
      %c0_15 = arith.constant 0 : index
      %c0_16 = arith.constant 0 : index
      %19 = vector.load %arg6[%c0_15, %c0_16] : memref<16x64xbf16, #tpu.memory_space<vmem>>, vector<16x64xbf16>
      tpu.vector_store %arg6[%c0_15, %c0_16], %18 {strides = array<i32>} : memref<16x64xbf16, #tpu.memory_space<vmem>>, vector<16x64xbf16>,
    } else {
    }
    return
  }
  func.func @transform_0(%arg0: i32, %arg1: i32, %arg2: i32) -> (i32, i32) {
    %c0_i32 = arith.constant 0 : i32
    return %arg0, %arg2 : i32, i32
  }
  func.func @transform_1(%arg0: i32, %arg1: i32, %arg2: i32) -> (i32, i32) {
    %c0_i32 = arith.constant 0 : i32
    return %arg2, %arg1 : i32, i32
  }
  func.func @transform_2(%arg0: i32, %arg1: i32, %arg2: i32) -> (i32, i32) {
    %c0_i32 = arith.constant 0 : i32
    %c0_i32_0 = arith.constant 0 : i32
    return %c0_i32, %arg1 : i32, i32
  }
  func.func @transform_3(%arg0: i32, %arg1: i32, %arg2: i32) -> (i32, i32) {
    %c0_i32 = arith.constant 0 : i32
    return %arg0, %arg1 : i32, i32
  }
}

module attributes {stable_mosaic.version = 11 : i64} {
  func.func @_fused_qkv_kernel(%arg0: i32, %arg1: i32, %arg2: memref<16x32xbf16, #tpu.memory_space<vmem>>, %arg3: memref<32x64xbf16, #tpu.memory_space<vmem>>, %arg4: memref<1x64xf32, #tpu.memory_space<vmem>>, %arg5: memref<16x32xbf16, #tpu.memory_space<vmem>>, %arg6: memref<16x32xbf16, #tpu.memory_space<vmem>>, %arg7: memref<16x64xf32, #tpu.memory_space<vmem>>) attributes {dimension_semantics = [#tpu.dimension_semantics<parallel>, #tpu.dimension_semantics<arbitrary>], iteration_bounds = array<i64: 1, 1>, scalar_prefetch = 0 : i64, scratch_operands = 1 : i64, tpu.core_type = #tpu.core_type<tc>, window_params = [{transform_indices = @transform_0, window_bounds = array<i64: 16, 32>}, {transform_indices = @transform_1, window_bounds = array<i64: 32, 64>}, {pipeline_mode = #tpu.pipeline_mode<synchronous>, transform_indices = @transform_2, window_bounds = array<i64: 1, 64>}, {transform_indices = @transform_3, window_bounds = array<i64: 16, 32>}, {transform_indices = @transform_4, window_bounds = array<i64: 16, 32>}]} {
    %c0_i32 = arith.constant 0 : i32
    %0 = arith.cmpi eq, %arg1, %c0_i32 : i32
    %1 = arith.extui %0 : i1 to i32
    %c0_i32_0 = arith.constant 0 : i32
    %2 = arith.cmpi ne, %1, %c0_i32_0 : i32
    scf.if %2 {
      %cst_10 = arith.constant 0.000000e+00 : f32
      %12 = vector.broadcast %cst_10 : f32 to vector<16x64xf32>
      %c0_11 = arith.constant 0 : index
      %c0_12 = arith.constant 0 : index
      %13 = vector.load %arg7[%c0_11, %c0_12] : memref<16x64xf32, #tpu.memory_space<vmem>>, vector<16x64xf32>
      tpu.vector_store %arg7[%c0_11, %c0_12], %12 {strides = array<i32>} : memref<16x64xf32, #tpu.memory_space<vmem>>, vector<16x64xf32>,
    } else {
    }
    %c0 = arith.constant 0 : index
    %c0_1 = arith.constant 0 : index
    %3 = vector.load %arg7[%c0, %c0_1] : memref<16x64xf32, #tpu.memory_space<vmem>>, vector<16x64xf32>
    %c0_2 = arith.constant 0 : index
    %c0_3 = arith.constant 0 : index
    %4 = vector.load %arg2[%c0_2, %c0_3] : memref<16x32xbf16, #tpu.memory_space<vmem>>, vector<16x32xbf16>
    %c0_4 = arith.constant 0 : index
    %c0_5 = arith.constant 0 : index
    %5 = vector.load %arg3[%c0_4, %c0_5] : memref<32x64xbf16, #tpu.memory_space<vmem>>, vector<32x64xbf16>
    %cst = arith.constant dense<0.000000e+00> : vector<16x64xf32>
    %6 = tpu.matmul %4, %5, %cst {dimension_numbers = #tpu.dot_dimension_numbers<[1], [0], [0], [1], [0, 0, 1, 1], [], []>} : vector<16x32xbf16>, vector<32x64xbf16>, vector<16x64xf32> -> vector<16x64xf32>
    %7 = arith.addf %3, %6 : vector<16x64xf32>
    %c0_6 = arith.constant 0 : index
    %c0_7 = arith.constant 0 : index
    %8 = vector.load %arg7[%c0_6, %c0_7] : memref<16x64xf32, #tpu.memory_space<vmem>>, vector<16x64xf32>
    tpu.vector_store %arg7[%c0_6, %c0_7], %7 {strides = array<i32>} : memref<16x64xf32, #tpu.memory_space<vmem>>, vector<16x64xf32>,
    %c0_i32_8 = arith.constant 0 : i32
    %9 = arith.cmpi eq, %arg1, %c0_i32_8 : i32
    %10 = arith.extui %9 : i1 to i32
    %c0_i32_9 = arith.constant 0 : i32
    %11 = arith.cmpi ne, %10, %c0_i32_9 : i32
    scf.if %11 {
      %c0_10 = arith.constant 0 : index
      %c0_11 = arith.constant 0 : index
      %12 = vector.load %arg7[%c0_10, %c0_11] : memref<16x64xf32, #tpu.memory_space<vmem>>, vector<16x64xf32>
      %c0_12 = arith.constant 0 : index
      %c0_13 = arith.constant 0 : index
      %13 = vector.load %arg4[%c0_12, %c0_13] : memref<1x64xf32, #tpu.memory_space<vmem>>, vector<1x64xf32>
      %14 = vector.broadcast %13 : vector<1x64xf32> to vector<16x64xf32>
      %15 = arith.addf %12, %14 : vector<16x64xf32>
      %16 = vector.extract_strided_slice %15 {offsets = [0, 0], sizes = [16, 32], strides = [1, 1]} : vector<16x64xf32> to vector<16x32xf32>
      %17 = arith.truncf %16 : vector<16x32xf32> to vector<16x32xbf16>
      %c0_14 = arith.constant 0 : index
      %c0_15 = arith.constant 0 : index
      %18 = vector.load %arg5[%c0_14, %c0_15] : memref<16x32xbf16, #tpu.memory_space<vmem>>, vector<16x32xbf16>
      tpu.vector_store %arg5[%c0_14, %c0_15], %17 {strides = array<i32>} : memref<16x32xbf16, #tpu.memory_space<vmem>>, vector<16x32xbf16>,
      %19 = vector.extract_strided_slice %15 {offsets = [0, 32], sizes = [16, 32], strides = [1, 1]} : vector<16x64xf32> to vector<16x32xf32>
      %20 = arith.truncf %19 : vector<16x32xf32> to vector<16x32xbf16>
      %c0_16 = arith.constant 0 : index
      %c0_17 = arith.constant 0 : index
      %21 = vector.load %arg6[%c0_16, %c0_17] : memref<16x32xbf16, #tpu.memory_space<vmem>>, vector<16x32xbf16>
      tpu.vector_store %arg6[%c0_16, %c0_17], %20 {strides = array<i32>} : memref<16x32xbf16, #tpu.memory_space<vmem>>, vector<16x32xbf16>,
    } else {
    }
    return
  }
  func.func @transform_0(%arg0: i32, %arg1: i32) -> (i32, i32) {
    %c0_i32 = arith.constant 0 : i32
    return %arg0, %arg1 : i32, i32
  }
  func.func @transform_1(%arg0: i32, %arg1: i32) -> (i32, i32) {
    %c0_i32 = arith.constant 0 : i32
    %c0_i32_0 = arith.constant 0 : i32
    return %arg1, %c0_i32 : i32, i32
  }
  func.func @transform_2(%arg0: i32, %arg1: i32) -> (i32, i32) {
    %c0_i32 = arith.constant 0 : i32
    %c0_i32_0 = arith.constant 0 : i32
    %c0_i32_1 = arith.constant 0 : i32
    return %c0_i32, %c0_i32_0 : i32, i32
  }
  func.func @transform_3(%arg0: i32, %arg1: i32) -> (i32, i32) {
    %c0_i32 = arith.constant 0 : i32
    %c0_i32_0 = arith.constant 0 : i32
    return %arg0, %c0_i32 : i32, i32
  }
  func.func @transform_4(%arg0: i32, %arg1: i32) -> (i32, i32) {
    %c0_i32 = arith.constant 0 : i32
    %c0_i32_0 = arith.constant 0 : i32
    return %arg0, %c0_i32 : i32, i32
  }
}

module attributes {stable_mosaic.version = 11 : i64} {
  func.func @_linear_kernel(%arg0: i32, %arg1: i32, %arg2: i32, %arg3: memref<16x32xbf16, #tpu.memory_space<vmem>>, %arg4: memref<32x32xbf16, #tpu.memory_space<vmem>>, %arg5: memref<1x32xf32, #tpu.memory_space<vmem>>, %arg6: memref<16x32xbf16, #tpu.memory_space<vmem>>, %arg7: memref<16x32xf32, #tpu.memory_space<vmem>>) attributes {dimension_semantics = [#tpu.dimension_semantics<parallel>, #tpu.dimension_semantics<parallel>, #tpu.dimension_semantics<arbitrary>], iteration_bounds = array<i64: 1, 1, 1>, scalar_prefetch = 0 : i64, scratch_operands = 1 : i64, tpu.core_type = #tpu.core_type<tc>, window_params = [{transform_indices = @transform_0, window_bounds = array<i64: 16, 32>}, {transform_indices = @transform_1, window_bounds = array<i64: 32, 32>}, {transform_indices = @transform_2, window_bounds = array<i64: 1, 32>}, {transform_indices = @transform_3, window_bounds = array<i64: 16, 32>}]} {
    %c0_i32 = arith.constant 0 : i32
    %0 = arith.cmpi eq, %arg2, %c0_i32 : i32
    %1 = arith.extui %0 : i1 to i32
    %c0_i32_0 = arith.constant 0 : i32
    %2 = arith.cmpi ne, %1, %c0_i32_0 : i32
    scf.if %2 {
      %cst_10 = arith.constant 0.000000e+00 : f32
      %12 = vector.broadcast %cst_10 : f32 to vector<16x32xf32>
      %c0_11 = arith.constant 0 : index
      %c0_12 = arith.constant 0 : index
      %13 = vector.load %arg7[%c0_11, %c0_12] : memref<16x32xf32, #tpu.memory_space<vmem>>, vector<16x32xf32>
      tpu.vector_store %arg7[%c0_11, %c0_12], %12 {strides = array<i32>} : memref<16x32xf32, #tpu.memory_space<vmem>>, vector<16x32xf32>,
    } else {
    }
    %c0 = arith.constant 0 : index
    %c0_1 = arith.constant 0 : index
    %3 = vector.load %arg7[%c0, %c0_1] : memref<16x32xf32, #tpu.memory_space<vmem>>, vector<16x32xf32>
    %c0_2 = arith.constant 0 : index
    %c0_3 = arith.constant 0 : index
    %4 = vector.load %arg3[%c0_2, %c0_3] : memref<16x32xbf16, #tpu.memory_space<vmem>>, vector<16x32xbf16>
    %c0_4 = arith.constant 0 : index
    %c0_5 = arith.constant 0 : index
    %5 = vector.load %arg4[%c0_4, %c0_5] : memref<32x32xbf16, #tpu.memory_space<vmem>>, vector<32x32xbf16>
    %cst = arith.constant dense<0.000000e+00> : vector<16x32xf32>
    %6 = tpu.matmul %4, %5, %cst {dimension_numbers = #tpu.dot_dimension_numbers<[1], [0], [0], [1], [0, 0, 1, 1], [], []>} : vector<16x32xbf16>, vector<32x32xbf16>, vector<16x32xf32> -> vector<16x32xf32>
    %7 = arith.addf %3, %6 : vector<16x32xf32>
    %c0_6 = arith.constant 0 : index
    %c0_7 = arith.constant 0 : index
    %8 = vector.load %arg7[%c0_6, %c0_7] : memref<16x32xf32, #tpu.memory_space<vmem>>, vector<16x32xf32>
    tpu.vector_store %arg7[%c0_6, %c0_7], %7 {strides = array<i32>} : memref<16x32xf32, #tpu.memory_space<vmem>>, vector<16x32xf32>,
    %c0_i32_8 = arith.constant 0 : i32
    %9 = arith.cmpi eq, %arg2, %c0_i32_8 : i32
    %10 = arith.extui %9 : i1 to i32
    %c0_i32_9 = arith.constant 0 : i32
    %11 = arith.cmpi ne, %10, %c0_i32_9 : i32
    scf.if %11 {
      %c0_10 = arith.constant 0 : index
      %c0_11 = arith.constant 0 : index
      %12 = vector.load %arg7[%c0_10, %c0_11] : memref<16x32xf32, #tpu.memory_space<vmem>>, vector<16x32xf32>
      %c0_12 = arith.constant 0 : index
      %c0_13 = arith.constant 0 : index
      %13 = vector.load %arg5[%c0_12, %c0_13] : memref<1x32xf32, #tpu.memory_space<vmem>>, vector<1x32xf32>
      %14 = vector.broadcast %13 : vector<1x32xf32> to vector<16x32xf32>
      %15 = arith.addf %12, %14 : vector<16x32xf32>
      %16 = arith.truncf %15 : vector<16x32xf32> to vector<16x32xbf16>
      %c0_14 = arith.constant 0 : index
      %c0_15 = arith.constant 0 : index
      %17 = vector.load %arg6[%c0_14, %c0_15] : memref<16x32xbf16, #tpu.memory_space<vmem>>, vector<16x32xbf16>
      tpu.vector_store %arg6[%c0_14, %c0_15], %16 {strides = array<i32>} : memref<16x32xbf16, #tpu.memory_space<vmem>>, vector<16x32xbf16>,
    } else {
    }
    return
  }
  func.func @transform_0(%arg0: i32, %arg1: i32, %arg2: i32) -> (i32, i32) {
    %c0_i32 = arith.constant 0 : i32
    return %arg0, %arg2 : i32, i32
  }
  func.func @transform_1(%arg0: i32, %arg1: i32, %arg2: i32) -> (i32, i32) {
    %c0_i32 = arith.constant 0 : i32
    return %arg2, %arg1 : i32, i32
  }
  func.func @transform_2(%arg0: i32, %arg1: i32, %arg2: i32) -> (i32, i32) {
    %c0_i32 = arith.constant 0 : i32
    %c0_i32_0 = arith.constant 0 : i32
    return %c0_i32, %arg1 : i32, i32
  }
  func.func @transform_3(%arg0: i32, %arg1: i32, %arg2: i32) -> (i32, i32) {
    %c0_i32 = arith.constant 0 : i32
    return %arg0, %arg1 : i32, i32
  }
}

module attributes {stable_mosaic.version = 11 : i64} {
  func.func @_linear_add_ln_kernel(%arg0: i32, %arg1: i32, %arg2: memref<16x64xbf16, #tpu.memory_space<vmem>>, %arg3: memref<64x32xbf16, #tpu.memory_space<vmem>>, %arg4: memref<1x32xf32, #tpu.memory_space<vmem>>, %arg5: memref<16x32xbf16, #tpu.memory_space<vmem>>, %arg6: memref<1x32xf32, #tpu.memory_space<vmem>>, %arg7: memref<1x32xf32, #tpu.memory_space<vmem>>, %arg8: memref<16x32xbf16, #tpu.memory_space<vmem>>, %arg9: memref<16x32xf32, #tpu.memory_space<vmem>>) attributes {dimension_semantics = [#tpu.dimension_semantics<parallel>, #tpu.dimension_semantics<arbitrary>], iteration_bounds = array<i64: 1, 1>, scalar_prefetch = 0 : i64, scratch_operands = 1 : i64, tpu.core_type = #tpu.core_type<tc>, window_params = [{transform_indices = @transform_0, window_bounds = array<i64: 16, 64>}, {transform_indices = @transform_1, window_bounds = array<i64: 64, 32>}, {pipeline_mode = #tpu.pipeline_mode<synchronous>, transform_indices = @transform_2, window_bounds = array<i64: 1, 32>}, {transform_indices = @transform_3, window_bounds = array<i64: 16, 32>}, {pipeline_mode = #tpu.pipeline_mode<synchronous>, transform_indices = @transform_4, window_bounds = array<i64: 1, 32>}, {pipeline_mode = #tpu.pipeline_mode<synchronous>, transform_indices = @transform_5, window_bounds = array<i64: 1, 32>}, {transform_indices = @transform_6, window_bounds = array<i64: 16, 32>}]} {
    %c0_i32 = arith.constant 0 : i32
    %0 = arith.cmpi eq, %arg1, %c0_i32 : i32
    %1 = arith.extui %0 : i1 to i32
    %c0_i32_0 = arith.constant 0 : i32
    %2 = arith.cmpi ne, %1, %c0_i32_0 : i32
    scf.if %2 {
      %cst_10 = arith.constant 0.000000e+00 : f32
      %12 = vector.broadcast %cst_10 : f32 to vector<16x32xf32>
      %c0_11 = arith.constant 0 : index
      %c0_12 = arith.constant 0 : index
      %13 = vector.load %arg9[%c0_11, %c0_12] : memref<16x32xf32, #tpu.memory_space<vmem>>, vector<16x32xf32>
      tpu.vector_store %arg9[%c0_11, %c0_12], %12 {strides = array<i32>} : memref<16x32xf32, #tpu.memory_space<vmem>>, vector<16x32xf32>,
    } else {
    }
    %c0 = arith.constant 0 : index
    %c0_1 = arith.constant 0 : index
    %3 = vector.load %arg9[%c0, %c0_1] : memref<16x32xf32, #tpu.memory_space<vmem>>, vector<16x32xf32>
    %c0_2 = arith.constant 0 : index
    %c0_3 = arith.constant 0 : index
    %4 = vector.load %arg2[%c0_2, %c0_3] : memref<16x64xbf16, #tpu.memory_space<vmem>>, vector<16x64xbf16>
    %c0_4 = arith.constant 0 : index
    %c0_5 = arith.constant 0 : index
    %5 = vector.load %arg3[%c0_4, %c0_5] : memref<64x32xbf16, #tpu.memory_space<vmem>>, vector<64x32xbf16>
    %cst = arith.constant dense<0.000000e+00> : vector<16x32xf32>
    %6 = tpu.matmul %4, %5, %cst {dimension_numbers = #tpu.dot_dimension_numbers<[1], [0], [0], [1], [0, 0, 1, 1], [], []>} : vector<16x64xbf16>, vector<64x32xbf16>, vector<16x32xf32> -> vector<16x32xf32>
    %7 = arith.addf %3, %6 : vector<16x32xf32>
    %c0_6 = arith.constant 0 : index
    %c0_7 = arith.constant 0 : index
    %8 = vector.load %arg9[%c0_6, %c0_7] : memref<16x32xf32, #tpu.memory_space<vmem>>, vector<16x32xf32>
    tpu.vector_store %arg9[%c0_6, %c0_7], %7 {strides = array<i32>} : memref<16x32xf32, #tpu.memory_space<vmem>>, vector<16x32xf32>,
    %c0_i32_8 = arith.constant 0 : i32
    %9 = arith.cmpi eq, %arg1, %c0_i32_8 : i32
    %10 = arith.extui %9 : i1 to i32
    %c0_i32_9 = arith.constant 0 : i32
    %11 = arith.cmpi ne, %10, %c0_i32_9 : i32
    scf.if %11 {
      %c0_10 = arith.constant 0 : index
      %c0_11 = arith.constant 0 : index
      %12 = vector.load %arg9[%c0_10, %c0_11] : memref<16x32xf32, #tpu.memory_space<vmem>>, vector<16x32xf32>
      %c0_12 = arith.constant 0 : index
      %c0_13 = arith.constant 0 : index
      %13 = vector.load %arg4[%c0_12, %c0_13] : memref<1x32xf32, #tpu.memory_space<vmem>>, vector<1x32xf32>
      %14 = vector.broadcast %13 : vector<1x32xf32> to vector<16x32xf32>
      %15 = arith.addf %12, %14 : vector<16x32xf32>
      %c0_14 = arith.constant 0 : index
      %c0_15 = arith.constant 0 : index
      %16 = vector.load %arg5[%c0_14, %c0_15] : memref<16x32xbf16, #tpu.memory_space<vmem>>, vector<16x32xbf16>
      %17 = arith.extf %16 : vector<16x32xbf16> to vector<16x32xf32>
      %18 = arith.addf %15, %17 : vector<16x32xf32>
      %cst_16 = arith.constant dense<0.000000e+00> : vector<16xf32>
      %19 = vector.multi_reduction <add>, %18, %cst_16 [1] : vector<16x32xf32> to vector<16xf32>
      %20 = vector.shape_cast %19 : vector<16xf32> to vector<16x1xf32>
      %cst_17 = arith.constant 3.200000e+01 : f32
      %21 = vector.broadcast %cst_17 : f32 to vector<16x1xf32>
      %22 = arith.divf %20, %21 : vector<16x1xf32>
      %23 = vector.broadcast %22 : vector<16x1xf32> to vector<16x32xf32>
      %24 = arith.subf %18, %23 : vector<16x32xf32>
      %25 = arith.mulf %24, %24 : vector<16x32xf32>
      %cst_18 = arith.constant dense<0.000000e+00> : vector<16xf32>
      %26 = vector.multi_reduction <add>, %25, %cst_18 [1] : vector<16x32xf32> to vector<16xf32>
      %27 = vector.shape_cast %26 : vector<16xf32> to vector<16x1xf32>
      %cst_19 = arith.constant 3.200000e+01 : f32
      %28 = vector.broadcast %cst_19 : f32 to vector<16x1xf32>
      %29 = arith.divf %27, %28 : vector<16x1xf32>
      %cst_20 = arith.constant 9.99999974E-6 : f32
      %30 = vector.broadcast %cst_20 : f32 to vector<16x1xf32>
      %31 = arith.addf %29, %30 : vector<16x1xf32>
      %32 = math.rsqrt %31 : vector<16x1xf32>
      %33 = vector.broadcast %32 : vector<16x1xf32> to vector<16x32xf32>
      %34 = arith.mulf %24, %33 : vector<16x32xf32>
      %c0_21 = arith.constant 0 : index
      %c0_22 = arith.constant 0 : index
      %35 = vector.load %arg6[%c0_21, %c0_22] : memref<1x32xf32, #tpu.memory_space<vmem>>, vector<1x32xf32>
      %36 = vector.broadcast %35 : vector<1x32xf32> to vector<16x32xf32>
      %37 = arith.mulf %34, %36 : vector<16x32xf32>
      %c0_23 = arith.constant 0 : index
      %c0_24 = arith.constant 0 : index
      %38 = vector.load %arg7[%c0_23, %c0_24] : memref<1x32xf32, #tpu.memory_space<vmem>>, vector<1x32xf32>
      %39 = vector.broadcast %38 : vector<1x32xf32> to vector<16x32xf32>
      %40 = arith.addf %37, %39 : vector<16x32xf32>
      %41 = arith.truncf %40 : vector<16x32xf32> to vector<16x32xbf16>
      %c0_25 = arith.constant 0 : index
      %c0_26 = arith.constant 0 : index
      %42 = vector.load %arg8[%c0_25, %c0_26] : memref<16x32xbf16, #tpu.memory_space<vmem>>, vector<16x32xbf16>
      tpu.vector_store %arg8[%c0_25, %c0_26], %41 {strides = array<i32>} : memref<16x32xbf16, #tpu.memory_space<vmem>>, vector<16x32xbf16>,
    } else {
    }
    return
  }
  func.func @transform_0(%arg0: i32, %arg1: i32) -> (i32, i32) {
    %c0_i32 = arith.constant 0 : i32
    return %arg0, %arg1 : i32, i32
  }
  func.func @transform_1(%arg0: i32, %arg1: i32) -> (i32, i32) {
    %c0_i32 = arith.constant 0 : i32
    %c0_i32_0 = arith.constant 0 : i32
    return %arg1, %c0_i32 : i32, i32
  }
  func.func @transform_2(%arg0: i32, %arg1: i32) -> (i32, i32) {
    %c0_i32 = arith.constant 0 : i32
    %c0_i32_0 = arith.constant 0 : i32
    %c0_i32_1 = arith.constant 0 : i32
    return %c0_i32, %c0_i32_0 : i32, i32
  }
  func.func @transform_3(%arg0: i32, %arg1: i32) -> (i32, i32) {
    %c0_i32 = arith.constant 0 : i32
    %c0_i32_0 = arith.constant 0 : i32
    return %arg0, %c0_i32 : i32, i32
  }
  func.func @transform_4(%arg0: i32, %arg1: i32) -> (i32, i32) {
    %c0_i32 = arith.constant 0 : i32
    %c0_i32_0 = arith.constant 0 : i32
    %c0_i32_1 = arith.constant 0 : i32
    return %c0_i32, %c0_i32_0 : i32, i32
  }
  func.func @transform_5(%arg0: i32, %arg1: i32) -> (i32, i32) {
    %c0_i32 = arith.constant 0 : i32
    %c0_i32_0 = arith.constant 0 : i32
    %c0_i32_1 = arith.constant 0 : i32
    return %c0_i32, %c0_i32_0 : i32, i32
  }
  func.func @transform_6(%arg0: i32, %arg1: i32) -> (i32, i32) {
    %c0_i32 = arith.constant 0 : i32
    %c0_i32_0 = arith.constant 0 : i32
    return %arg0, %c0_i32 : i32, i32
  }
}

module attributes {stable_mosaic.version = 11 : i64} {
  func.func @_mha_attn_kernel(%arg0: i32, %arg1: i32, %arg2: memref<1x8x32xbf16, #tpu.memory_space<vmem>>, %arg3: memref<1x8x32xbf16, #tpu.memory_space<vmem>>, %arg4: memref<1x8x32xbf16, #tpu.memory_space<vmem>>, %arg5: memref<1x8x32xbf16, #tpu.memory_space<vmem>>) attributes {dimension_semantics = [#tpu.dimension_semantics<parallel>, #tpu.dimension_semantics<arbitrary>], iteration_bounds = array<i64: 2, 1>, scalar_prefetch = 0 : i64, scratch_operands = 0 : i64, tpu.core_type = #tpu.core_type<tc>, window_params = [{transform_indices = @transform_0, window_bounds = array<i64: 1, 8, 32>}, {transform_indices = @transform_1, window_bounds = array<i64: 1, 8, 32>}, {transform_indices = @transform_2, window_bounds = array<i64: 1, 8, 32>}, {transform_indices = @transform_3, window_bounds = array<i64: 1, 8, 32>}]} {
    %c0 = arith.constant 0 : index
    %c0_0 = arith.constant 0 : index
    %c0_1 = arith.constant 0 : index
    %0 = vector.load %arg2[%c0, %c0_0, %c0_1] : memref<1x8x32xbf16, #tpu.memory_space<vmem>>, vector<1x8x32xbf16>
    %1 = vector.shape_cast %0 : vector<1x8x32xbf16> to vector<8x32xbf16>
    %c0_2 = arith.constant 0 : index
    %c0_3 = arith.constant 0 : index
    %c0_4 = arith.constant 0 : index
    %2 = vector.load %arg3[%c0_2, %c0_3, %c0_4] : memref<1x8x32xbf16, #tpu.memory_space<vmem>>, vector<1x8x32xbf16>
    %3 = vector.shape_cast %2 : vector<1x8x32xbf16> to vector<8x32xbf16>
    %c0_5 = arith.constant 0 : index
    %c0_6 = arith.constant 0 : index
    %c0_7 = arith.constant 0 : index
    %4 = vector.load %arg4[%c0_5, %c0_6, %c0_7] : memref<1x8x32xbf16, #tpu.memory_space<vmem>>, vector<1x8x32xbf16>
    %5 = vector.shape_cast %4 : vector<1x8x32xbf16> to vector<8x32xbf16>
    %c8_i32 = arith.constant 8 : i32
    %6 = arith.muli %arg1, %c8_i32 : i32
    %7 = tpu.iota {dimensions = array<i32: 0>} : vector<8x8xi32>
    %8 = vector.broadcast %6 : i32 to vector<8x8xi32>
    %9 = arith.addi %8, %7 : vector<8x8xi32>
    %10 = tpu.iota {dimensions = array<i32: 1>} : vector<8x8xi32>
    %11 = arith.cmpi sgt, %10, %9 : vector<8x8xi32>
    %cst = arith.constant -1.000000e+09 : f32
    %cst_8 = arith.constant 0.000000e+00 : f32
    %12 = vector.broadcast %cst : f32 to vector<8x8xf32>
    %13 = vector.broadcast %cst_8 : f32 to vector<8x8xf32>
    %14 = arith.select %11, %12, %13 : vector<8x8xi1>, vector<8x8xf32>
    %15 = vector.extract_strided_slice %1 {offsets = [0, 0], sizes = [8, 8], strides = [1, 1]} : vector<8x32xbf16> to vector<8x8xbf16>
    %16 = vector.extract_strided_slice %3 {offsets = [0, 0], sizes = [8, 8], strides = [1, 1]} : vector<8x32xbf16> to vector<8x8xbf16>
    %17 = vector.extract_strided_slice %5 {offsets = [0, 0], sizes = [8, 8], strides = [1, 1]} : vector<8x32xbf16> to vector<8x8xbf16>
    %cst_9 = arith.constant dense<0.000000e+00> : vector<8x8xf32>
    %18 = tpu.matmul %15, %16, %cst_9 {dimension_numbers = #tpu.dot_dimension_numbers<[1], [1], [0], [0], [0, 0, 1, 0], [], []>} : vector<8x8xbf16>, vector<8x8xbf16>, vector<8x8xf32> -> vector<8x8xf32>
    %19 = arith.addf %18, %14 : vector<8x8xf32>
    %cst_10 = arith.constant dense<0xFF800000> : vector<8xf32>
    %20 = vector.multi_reduction <maximumf>, %19, %cst_10 [1] : vector<8x8xf32> to vector<8xf32>
    %21 = vector.shape_cast %20 : vector<8xf32> to vector<8x1xf32>
    %22 = vector.broadcast %21 : vector<8x1xf32> to vector<8x8xf32>
    %23 = arith.subf %19, %22 : vector<8x8xf32>
    %24 = math.exp %23 : vector<8x8xf32>
    %cst_11 = arith.constant dense<0.000000e+00> : vector<8xf32>
    %25 = vector.multi_reduction <add>, %24, %cst_11 [1] : vector<8x8xf32> to vector<8xf32>
    %26 = vector.shape_cast %25 : vector<8xf32> to vector<8x1xf32>
    %27 = tpu.reciprocal %26 {approx = true} : vector<8x1xf32> -> vector<8x1xf32>
    %28 = vector.broadcast %27 : vector<8x1xf32> to vector<8x8xf32>
    %29 = arith.mulf %24, %28 : vector<8x8xf32>
    %30 = arith.truncf %29 : vector<8x8xf32> to vector<8x8xbf16>
    %cst_12 = arith.constant dense<0.000000e+00> : vector<8x8xf32>
    %31 = tpu.matmul %30, %17, %cst_12 {dimension_numbers = #tpu.dot_dimension_numbers<[1], [0], [0], [1], [0, 0, 1, 1], [], []>} : vector<8x8xbf16>, vector<8x8xbf16>, vector<8x8xf32> -> vector<8x8xf32>
    %32 = arith.truncf %31 : vector<8x8xf32> to vector<8x8xbf16>
    %c0_13 = arith.constant 0 : index
    %c0_14 = arith.constant 0 : index
    %c0_15 = arith.constant 0 : index
    %33 = vector.load %arg5[%c0_13, %c0_14, %c0_15] : memref<1x8x32xbf16, #tpu.memory_space<vmem>>, vector<1x8x8xbf16>
    %34 = vector.shape_cast %33 : vector<1x8x8xbf16> to vector<8x8xbf16>
    %35 = vector.shape_cast %32 : vector<8x8xbf16> to vector<1x8x8xbf16>
    tpu.vector_store %arg5[%c0_13, %c0_14, %c0_15], %35 {strides = array<i32>} : memref<1x8x32xbf16, #tpu.memory_space<vmem>>, vector<1x8x8xbf16>,
    %36 = vector.extract_strided_slice %1 {offsets = [0, 8], sizes = [8, 8], strides = [1, 1]} : vector<8x32xbf16> to vector<8x8xbf16>
    %37 = vector.extract_strided_slice %3 {offsets = [0, 8], sizes = [8, 8], strides = [1, 1]} : vector<8x32xbf16> to vector<8x8xbf16>
    %38 = vector.extract_strided_slice %5 {offsets = [0, 8], sizes = [8, 8], strides = [1, 1]} : vector<8x32xbf16> to vector<8x8xbf16>
    %cst_16 = arith.constant dense<0.000000e+00> : vector<8x8xf32>
    %39 = tpu.matmul %36, %37, %cst_16 {dimension_numbers = #tpu.dot_dimension_numbers<[1], [1], [0], [0], [0, 0, 1, 0], [], []>} : vector<8x8xbf16>, vector<8x8xbf16>, vector<8x8xf32> -> vector<8x8xf32>
    %40 = arith.addf %39, %14 : vector<8x8xf32>
    %cst_17 = arith.constant dense<0xFF800000> : vector<8xf32>
    %41 = vector.multi_reduction <maximumf>, %40, %cst_17 [1] : vector<8x8xf32> to vector<8xf32>
    %42 = vector.shape_cast %41 : vector<8xf32> to vector<8x1xf32>
    %43 = vector.broadcast %42 : vector<8x1xf32> to vector<8x8xf32>
    %44 = arith.subf %40, %43 : vector<8x8xf32>
    %45 = math.exp %44 : vector<8x8xf32>
    %cst_18 = arith.constant dense<0.000000e+00> : vector<8xf32>
    %46 = vector.multi_reduction <add>, %45, %cst_18 [1] : vector<8x8xf32> to vector<8xf32>
    %47 = vector.shape_cast %46 : vector<8xf32> to vector<8x1xf32>
    %48 = tpu.reciprocal %47 {approx = true} : vector<8x1xf32> -> vector<8x1xf32>
    %49 = vector.broadcast %48 : vector<8x1xf32> to vector<8x8xf32>
    %50 = arith.mulf %45, %49 : vector<8x8xf32>
    %51 = arith.truncf %50 : vector<8x8xf32> to vector<8x8xbf16>
    %cst_19 = arith.constant dense<0.000000e+00> : vector<8x8xf32>
    %52 = tpu.matmul %51, %38, %cst_19 {dimension_numbers = #tpu.dot_dimension_numbers<[1], [0], [0], [1], [0, 0, 1, 1], [], []>} : vector<8x8xbf16>, vector<8x8xbf16>, vector<8x8xf32> -> vector<8x8xf32>
    %53 = arith.truncf %52 : vector<8x8xf32> to vector<8x8xbf16>
    %c0_20 = arith.constant 0 : index
    %c0_21 = arith.constant 0 : index
    %c8 = arith.constant 8 : index
    %54 = vector.load %arg5[%c0_20, %c0_21, %c8] : memref<1x8x32xbf16, #tpu.memory_space<vmem>>, vector<1x8x8xbf16>
    %55 = vector.shape_cast %54 : vector<1x8x8xbf16> to vector<8x8xbf16>
    %56 = vector.shape_cast %53 : vector<8x8xbf16> to vector<1x8x8xbf16>
    tpu.vector_store %arg5[%c0_20, %c0_21, %c8], %56 {strides = array<i32>} : memref<1x8x32xbf16, #tpu.memory_space<vmem>>, vector<1x8x8xbf16>,
    %57 = vector.extract_strided_slice %1 {offsets = [0, 16], sizes = [8, 8], strides = [1, 1]} : vector<8x32xbf16> to vector<8x8xbf16>
    %58 = vector.extract_strided_slice %3 {offsets = [0, 16], sizes = [8, 8], strides = [1, 1]} : vector<8x32xbf16> to vector<8x8xbf16>
    %59 = vector.extract_strided_slice %5 {offsets = [0, 16], sizes = [8, 8], strides = [1, 1]} : vector<8x32xbf16> to vector<8x8xbf16>
    %cst_22 = arith.constant dense<0.000000e+00> : vector<8x8xf32>
    %60 = tpu.matmul %57, %58, %cst_22 {dimension_numbers = #tpu.dot_dimension_numbers<[1], [1], [0], [0], [0, 0, 1, 0], [], []>} : vector<8x8xbf16>, vector<8x8xbf16>, vector<8x8xf32> -> vector<8x8xf32>
    %61 = arith.addf %60, %14 : vector<8x8xf32>
    %cst_23 = arith.constant dense<0xFF800000> : vector<8xf32>
    %62 = vector.multi_reduction <maximumf>, %61, %cst_23 [1] : vector<8x8xf32> to vector<8xf32>
    %63 = vector.shape_cast %62 : vector<8xf32> to vector<8x1xf32>
    %64 = vector.broadcast %63 : vector<8x1xf32> to vector<8x8xf32>
    %65 = arith.subf %61, %64 : vector<8x8xf32>
    %66 = math.exp %65 : vector<8x8xf32>
    %cst_24 = arith.constant dense<0.000000e+00> : vector<8xf32>
    %67 = vector.multi_reduction <add>, %66, %cst_24 [1] : vector<8x8xf32> to vector<8xf32>
    %68 = vector.shape_cast %67 : vector<8xf32> to vector<8x1xf32>
    %69 = tpu.reciprocal %68 {approx = true} : vector<8x1xf32> -> vector<8x1xf32>
    %70 = vector.broadcast %69 : vector<8x1xf32> to vector<8x8xf32>
    %71 = arith.mulf %66, %70 : vector<8x8xf32>
    %72 = arith.truncf %71 : vector<8x8xf32> to vector<8x8xbf16>
    %cst_25 = arith.constant dense<0.000000e+00> : vector<8x8xf32>
    %73 = tpu.matmul %72, %59, %cst_25 {dimension_numbers = #tpu.dot_dimension_numbers<[1], [0], [0], [1], [0, 0, 1, 1], [], []>} : vector<8x8xbf16>, vector<8x8xbf16>, vector<8x8xf32> -> vector<8x8xf32>
    %74 = arith.truncf %73 : vector<8x8xf32> to vector<8x8xbf16>
    %c0_26 = arith.constant 0 : index
    %c0_27 = arith.constant 0 : index
    %c16 = arith.constant 16 : index
    %75 = vector.load %arg5[%c0_26, %c0_27, %c16] : memref<1x8x32xbf16, #tpu.memory_space<vmem>>, vector<1x8x8xbf16>
    %76 = vector.shape_cast %75 : vector<1x8x8xbf16> to vector<8x8xbf16>
    %77 = vector.shape_cast %74 : vector<8x8xbf16> to vector<1x8x8xbf16>
    tpu.vector_store %arg5[%c0_26, %c0_27, %c16], %77 {strides = array<i32>} : memref<1x8x32xbf16, #tpu.memory_space<vmem>>, vector<1x8x8xbf16>,
    %78 = vector.extract_strided_slice %1 {offsets = [0, 24], sizes = [8, 8], strides = [1, 1]} : vector<8x32xbf16> to vector<8x8xbf16>
    %79 = vector.extract_strided_slice %3 {offsets = [0, 24], sizes = [8, 8], strides = [1, 1]} : vector<8x32xbf16> to vector<8x8xbf16>
    %80 = vector.extract_strided_slice %5 {offsets = [0, 24], sizes = [8, 8], strides = [1, 1]} : vector<8x32xbf16> to vector<8x8xbf16>
    %cst_28 = arith.constant dense<0.000000e+00> : vector<8x8xf32>
    %81 = tpu.matmul %78, %79, %cst_28 {dimension_numbers = #tpu.dot_dimension_numbers<[1], [1], [0], [0], [0, 0, 1, 0], [], []>} : vector<8x8xbf16>, vector<8x8xbf16>, vector<8x8xf32> -> vector<8x8xf32>
    %82 = arith.addf %81, %14 : vector<8x8xf32>
    %cst_29 = arith.constant dense<0xFF800000> : vector<8xf32>
    %83 = vector.multi_reduction <maximumf>, %82, %cst_29 [1] : vector<8x8xf32> to vector<8xf32>
    %84 = vector.shape_cast %83 : vector<8xf32> to vector<8x1xf32>
    %85 = vector.broadcast %84 : vector<8x1xf32> to vector<8x8xf32>
    %86 = arith.subf %82, %85 : vector<8x8xf32>
    %87 = math.exp %86 : vector<8x8xf32>
    %cst_30 = arith.constant dense<0.000000e+00> : vector<8xf32>
    %88 = vector.multi_reduction <add>, %87, %cst_30 [1] : vector<8x8xf32> to vector<8xf32>
    %89 = vector.shape_cast %88 : vector<8xf32> to vector<8x1xf32>
    %90 = tpu.reciprocal %89 {approx = true} : vector<8x1xf32> -> vector<8x1xf32>
    %91 = vector.broadcast %90 : vector<8x1xf32> to vector<8x8xf32>
    %92 = arith.mulf %87, %91 : vector<8x8xf32>
    %93 = arith.truncf %92 : vector<8x8xf32> to vector<8x8xbf16>
    %cst_31 = arith.constant dense<0.000000e+00> : vector<8x8xf32>
    %94 = tpu.matmul %93, %80, %cst_31 {dimension_numbers = #tpu.dot_dimension_numbers<[1], [0], [0], [1], [0, 0, 1, 1], [], []>} : vector<8x8xbf16>, vector<8x8xbf16>, vector<8x8xf32> -> vector<8x8xf32>
    %95 = arith.truncf %94 : vector<8x8xf32> to vector<8x8xbf16>
    %c0_32 = arith.constant 0 : index
    %c0_33 = arith.constant 0 : index
    %c24 = arith.constant 24 : index
    %96 = vector.load %arg5[%c0_32, %c0_33, %c24] : memref<1x8x32xbf16, #tpu.memory_space<vmem>>, vector<1x8x8xbf16>
    %97 = vector.shape_cast %96 : vector<1x8x8xbf16> to vector<8x8xbf16>
    %98 = vector.shape_cast %95 : vector<8x8xbf16> to vector<1x8x8xbf16>
    tpu.vector_store %arg5[%c0_32, %c0_33, %c24], %98 {strides = array<i32>} : memref<1x8x32xbf16, #tpu.memory_space<vmem>>, vector<1x8x8xbf16>,
    return
  }
  func.func @transform_0(%arg0: i32, %arg1: i32) -> (i32, i32, i32) {
    %c0_i32 = arith.constant 0 : i32
    %c0_i32_0 = arith.constant 0 : i32
    return %arg0, %arg1, %c0_i32 : i32, i32, i32
  }
  func.func @transform_1(%arg0: i32, %arg1: i32) -> (i32, i32, i32) {
    %c0_i32 = arith.constant 0 : i32
    %c0_i32_0 = arith.constant 0 : i32
    %c0_i32_1 = arith.constant 0 : i32
    return %arg0, %c0_i32, %c0_i32_0 : i32, i32, i32
  }
  func.func @transform_2(%arg0: i32, %arg1: i32) -> (i32, i32, i32) {
    %c0_i32 = arith.constant 0 : i32
    %c0_i32_0 = arith.constant 0 : i32
    %c0_i32_1 = arith.constant 0 : i32
    return %arg0, %c0_i32, %c0_i32_0 : i32, i32, i32
  }
  func.func @transform_3(%arg0: i32, %arg1: i32) -> (i32, i32, i32) {
    %c0_i32 = arith.constant 0 : i32
    %c0_i32_0 = arith.constant 0 : i32
    return %arg0, %arg1, %c0_i32 : i32, i32, i32
  }
}

module attributes {stable_mosaic.version = 11 : i64} {
  func.func @_linear_softmax_kernel(%arg0: i32, %arg1: i32, %arg2: memref<16x32xbf16, #tpu.memory_space<vmem>>, %arg3: memref<32x64xbf16, #tpu.memory_space<vmem>>, %arg4: memref<1x64xf32, #tpu.memory_space<vmem>>, %arg5: memref<16x64xf32, #tpu.memory_space<vmem>>, %arg6: memref<16x64xf32, #tpu.memory_space<vmem>>) attributes {dimension_semantics = [#tpu.dimension_semantics<parallel>, #tpu.dimension_semantics<arbitrary>], iteration_bounds = array<i64: 1, 1>, scalar_prefetch = 0 : i64, scratch_operands = 1 : i64, tpu.core_type = #tpu.core_type<tc>, window_params = [{transform_indices = @transform_0, window_bounds = array<i64: 16, 32>}, {transform_indices = @transform_1, window_bounds = array<i64: 32, 64>}, {pipeline_mode = #tpu.pipeline_mode<synchronous>, transform_indices = @transform_2, window_bounds = array<i64: 1, 64>}, {transform_indices = @transform_3, window_bounds = array<i64: 16, 64>}]} {
    %c0_i32 = arith.constant 0 : i32
    %0 = arith.cmpi eq, %arg1, %c0_i32 : i32
    %1 = arith.extui %0 : i1 to i32
    %c0_i32_0 = arith.constant 0 : i32
    %2 = arith.cmpi ne, %1, %c0_i32_0 : i32
    scf.if %2 {
      %cst_10 = arith.constant 0.000000e+00 : f32
      %12 = vector.broadcast %cst_10 : f32 to vector<16x64xf32>
      %c0_11 = arith.constant 0 : index
      %c0_12 = arith.constant 0 : index
      %13 = vector.load %arg6[%c0_11, %c0_12] : memref<16x64xf32, #tpu.memory_space<vmem>>, vector<16x64xf32>
      tpu.vector_store %arg6[%c0_11, %c0_12], %12 {strides = array<i32>} : memref<16x64xf32, #tpu.memory_space<vmem>>, vector<16x64xf32>,
    } else {
    }
    %c0 = arith.constant 0 : index
    %c0_1 = arith.constant 0 : index
    %3 = vector.load %arg6[%c0, %c0_1] : memref<16x64xf32, #tpu.memory_space<vmem>>, vector<16x64xf32>
    %c0_2 = arith.constant 0 : index
    %c0_3 = arith.constant 0 : index
    %4 = vector.load %arg2[%c0_2, %c0_3] : memref<16x32xbf16, #tpu.memory_space<vmem>>, vector<16x32xbf16>
    %c0_4 = arith.constant 0 : index
    %c0_5 = arith.constant 0 : index
    %5 = vector.load %arg3[%c0_4, %c0_5] : memref<32x64xbf16, #tpu.memory_space<vmem>>, vector<32x64xbf16>
    %cst = arith.constant dense<0.000000e+00> : vector<16x64xf32>
    %6 = tpu.matmul %4, %5, %cst {dimension_numbers = #tpu.dot_dimension_numbers<[1], [0], [0], [1], [0, 0, 1, 1], [], []>} : vector<16x32xbf16>, vector<32x64xbf16>, vector<16x64xf32> -> vector<16x64xf32>
    %7 = arith.addf %3, %6 : vector<16x64xf32>
    %c0_6 = arith.constant 0 : index
    %c0_7 = arith.constant 0 : index
    %8 = vector.load %arg6[%c0_6, %c0_7] : memref<16x64xf32, #tpu.memory_space<vmem>>, vector<16x64xf32>
    tpu.vector_store %arg6[%c0_6, %c0_7], %7 {strides = array<i32>} : memref<16x64xf32, #tpu.memory_space<vmem>>, vector<16x64xf32>,
    %c0_i32_8 = arith.constant 0 : i32
    %9 = arith.cmpi eq, %arg1, %c0_i32_8 : i32
    %10 = arith.extui %9 : i1 to i32
    %c0_i32_9 = arith.constant 0 : i32
    %11 = arith.cmpi ne, %10, %c0_i32_9 : i32
    scf.if %11 {
      %c0_10 = arith.constant 0 : index
      %c0_11 = arith.constant 0 : index
      %12 = vector.load %arg6[%c0_10, %c0_11] : memref<16x64xf32, #tpu.memory_space<vmem>>, vector<16x64xf32>
      %c0_12 = arith.constant 0 : index
      %c0_13 = arith.constant 0 : index
      %13 = vector.load %arg4[%c0_12, %c0_13] : memref<1x64xf32, #tpu.memory_space<vmem>>, vector<1x64xf32>
      %14 = vector.broadcast %13 : vector<1x64xf32> to vector<16x64xf32>
      %15 = arith.addf %12, %14 : vector<16x64xf32>
      %cst_14 = arith.constant dense<0xFF800000> : vector<16xf32>
      %16 = vector.multi_reduction <maximumf>, %15, %cst_14 [1] : vector<16x64xf32> to vector<16xf32>
      %17 = vector.shape_cast %16 : vector<16xf32> to vector<16x1xf32>
      %18 = vector.broadcast %17 : vector<16x1xf32> to vector<16x64xf32>
      %19 = arith.subf %15, %18 : vector<16x64xf32>
      %20 = math.exp %19 : vector<16x64xf32>
      %cst_15 = arith.constant dense<0.000000e+00> : vector<16xf32>
      %21 = vector.multi_reduction <add>, %20, %cst_15 [1] : vector<16x64xf32> to vector<16xf32>
      %22 = vector.shape_cast %21 : vector<16xf32> to vector<16x1xf32>
      %23 = vector.broadcast %22 : vector<16x1xf32> to vector<16x64xf32>
      %24 = arith.divf %20, %23 : vector<16x64xf32>
      %c0_16 = arith.constant 0 : index
      %c0_17 = arith.constant 0 : index
      %25 = vector.load %arg5[%c0_16, %c0_17] : memref<16x64xf32, #tpu.memory_space<vmem>>, vector<16x64xf32>
      tpu.vector_store %arg5[%c0_16, %c0_17], %24 {strides = array<i32>} : memref<16x64xf32, #tpu.memory_space<vmem>>, vector<16x64xf32>,
    } else {
    }
    return
  }
  func.func @transform_0(%arg0: i32, %arg1: i32) -> (i32, i32) {
    %c0_i32 = arith.constant 0 : i32
    return %arg0, %arg1 : i32, i32
  }
  func.func @transform_1(%arg0: i32, %arg1: i32) -> (i32, i32) {
    %c0_i32 = arith.constant 0 : i32
    %c0_i32_0 = arith.constant 0 : i32
    return %arg1, %c0_i32 : i32, i32
  }
  func.func @transform_2(%arg0: i32, %arg1: i32) -> (i32, i32) {
    %c0_i32 = arith.constant 0 : i32
    %c0_i32_0 = arith.constant 0 : i32
    %c0_i32_1 = arith.constant 0 : i32
    return %c0_i32, %c0_i32_0 : i32, i32
  }
  func.func @transform_3(%arg0: i32, %arg1: i32) -> (i32, i32) {
    %c0_i32 = arith.constant 0 : i32
    %c0_i32_0 = arith.constant 0 : i32
    return %arg0, %c0_i32 : i32, i32
  }
}

</mosaic_0001>

<llo_original>
// kernel: transformer_forward.30
$region0: #{transformer_forward.30}
  #allocation0 [shape = 'u32[]', space=smem, size = 0x4, offset = 0x4, fixed_abs, tag = 'smem constant byte address 0x4 - core index']
  #allocation1 [shape = 'u32[144,128]{1,0:T(1,128)}', space=vmem, size = 0x12000, scoped, tag = 'internal scratch']
  %s0 = inlined_call_operand.vmem [shape: bf16[2,8,32], index: 0, kind: input, shape index: {}]
  %s1 = inlined_call_operand.vmem [shape: bf16[2,8,32], index: 1, kind: input, shape index: {}]
  %s2 = inlined_call_operand.vmem [shape: bf16[2,8,32], index: 2, kind: input, shape index: {}]
  %s3 = inlined_call_operand.vmem [shape: bf16[2,8,32], index: 3, kind: output, shape index: {}]
  %s4 = sld [smem:[#allocation0]]
  $region45: #{transformer_forward.30} parent=0
    _
  %s6 = ssub.s32 1, %s4
  %s7 = scalar_select 0, %s6, %s4
  loop: start=0, step=1, limit=4
  $region2: #{transformer_forward.30} parent=0 // loop_pre_header
    _
  $region3: #{transformer_forward.30} parent=0 // loop_header
    %s9 = sphi 0, %s13
    %p10 = scmp.ge.s32.totalorder %s9, 4
    %s16 = sphi 0, %s28
    %s17 = sphi 0, %s24
    %s18 = sphi 0, %s16
    %s19 = sphi 0, %s17
    %s20 = sphi 0, %s18
    %s21 = sphi 0, %s19
    %s33 = sphi 0, %s35
    %s36 = sphi 0, %s33
    %s37 = sphi 0, %s36
    %s53 = sphi 0, %s37
    %s59 = sphi 0, %s61
    %s62 = sphi 0, %s59
    %s63 = sphi 0, %s62
    %s79 = sphi 0, %s63
    %s85 = sphi 0, %s87
    %s88 = sphi 0, %s85
    %s89 = sphi 0, %s88
    %s105 = sphi 0, %s89
    %s113 = sphi 0, %s115
    %s116 = sphi 0, %s113
    %s117 = sphi 0, %s116
    %s133 = sphi 0, %s117
  $region4: #{transformer_forward.30} parent=0 // loop_header_branch
    %12 = sbr.rel (%p10) target = $region8
  $region5: #{transformer_forward.30} parent=0 // loop_body
    %s14 = ssub.s32 %s9, 1
    %s15 = ssub.s32 %s9, 2
    %s22 = sadd.s32 1, %s17
    %p23 = scmp.ge.s32.totalorder %s22, 1
    %s24 = scalar_select %p23, 0, %s22
    %s25 = sadd.s32 1, %s16
    %s26 = scalar_select %p23, %s25, %s16
    %p27 = scmp.ge.s32.totalorder %s26, 2
    %s28 = scalar_select %p27, 0, %s26
    %s29 = ssub.s32 %s16, %s28
    %s30 = ssub.s32 %s17, %s24
    %s31 = sor.u32 %s29, %s30
    %p32 = scmp.eq.s32.totalorder %s31, 0
    %s34 = sadd.s32 %s33, 1
    %s35 = scalar_select %p32, %s33, %s34
    %p38 = pneg %p32
    %p39 = scmp.eq.s32.totalorder %s9, 1
    %p40 = por %p38, %p39
    %p41 = scmp.ne.s32.totalorder %s33, %s36
    %p42 = scmp.eq.s32.totalorder %s9, 0
    %p43 = por %p41, %p42
    %p44 = scmp.ne.s32.totalorder %s33, %s36
    %p45 = scmp.eq.s32.totalorder %s14, 1
    %p46 = por %p44, %p45
    %p47 = scmp.ne.s32.totalorder %s36, %s37
    %p48 = scmp.eq.s32.totalorder %s14, 0
    %p49 = por %p47, %p48
    %p50 = scmp.ne.s32.totalorder %s36, %s37
    %p51 = scmp.eq.s32.totalorder %s15, 1
    %p52 = por %p50, %p51
    %p54 = scmp.ne.s32.totalorder %s37, %s53
    %p55 = scmp.eq.s32.totalorder %s15, 0
    %p56 = por %p54, %p55
    %s57 = ssub.s32 %s16, %s28
    %p58 = scmp.eq.s32.totalorder %s57, 0
    %s60 = sadd.s32 %s59, 1
    %s61 = scalar_select %p58, %s59, %s60
    %p64 = pneg %p58
    %p65 = scmp.eq.s32.totalorder %s9, 1
    %p66 = por %p64, %p65
    %p67 = scmp.ne.s32.totalorder %s59, %s62
    %p68 = scmp.eq.s32.totalorder %s9, 0
    %p69 = por %p67, %p68
    %p70 = scmp.ne.s32.totalorder %s59, %s62
    %p71 = scmp.eq.s32.totalorder %s14, 1
    %p72 = por %p70, %p71
    %p73 = scmp.ne.s32.totalorder %s62, %s63
    %p74 = scmp.eq.s32.totalorder %s14, 0
    %p75 = por %p73, %p74
    %p76 = scmp.ne.s32.totalorder %s62, %s63
    %p77 = scmp.eq.s32.totalorder %s15, 1
    %p78 = por %p76, %p77
    %p80 = scmp.ne.s32.totalorder %s63, %s79
    %p81 = scmp.eq.s32.totalorder %s15, 0
    %p82 = por %p80, %p81
    %s83 = ssub.s32 %s16, %s28
    %p84 = scmp.eq.s32.totalorder %s83, 0
    %s86 = sadd.s32 %s85, 1
    %s87 = scalar_select %p84, %s85, %s86
    %p90 = pneg %p84
    %p91 = scmp.eq.s32.totalorder %s9, 1
    %p92 = por %p90, %p91
    %p93 = scmp.ne.s32.totalorder %s85, %s88
    %p94 = scmp.eq.s32.totalorder %s9, 0
    %p95 = por %p93, %p94
    %p96 = scmp.ne.s32.totalorder %s85, %s88
    %p97 = scmp.eq.s32.totalorder %s14, 1
    %p98 = por %p96, %p97
    %p99 = scmp.ne.s32.totalorder %s88, %s89
    %p100 = scmp.eq.s32.totalorder %s14, 0
    %p101 = por %p99, %p100
    %p102 = scmp.ne.s32.totalorder %s88, %s89
    %p103 = scmp.eq.s32.totalorder %s15, 1
    %p104 = por %p102, %p103
    %p106 = scmp.ne.s32.totalorder %s89, %s105
    %p107 = scmp.eq.s32.totalorder %s15, 0
    %p108 = por %p106, %p107
    %s109 = ssub.s32 %s16, %s28
    %s110 = ssub.s32 %s17, %s24
    %s111 = sor.u32 %s109, %s110
    %p112 = scmp.eq.s32.totalorder %s111, 0
    %s114 = sadd.s32 %s113, 1
    %s115 = scalar_select %p112, %s113, %s114
    %p118 = pneg %p112
    %p119 = scmp.eq.s32.totalorder %s9, 1
    %p120 = por %p118, %p119
    %p121 = scmp.ne.s32.totalorder %s113, %s116
    %p122 = scmp.eq.s32.totalorder %s9, 0
    %p123 = por %p121, %p122
    %p124 = scmp.ne.s32.totalorder %s113, %s116
    %p125 = scmp.eq.s32.totalorder %s14, 1
    %p126 = por %p124, %p125
    %p127 = scmp.ne.s32.totalorder %s116, %s117
    %p128 = scmp.eq.s32.totalorder %s14, 0
    %p129 = por %p127, %p128
    %p130 = scmp.ne.s32.totalorder %s116, %s117
    %p131 = scmp.eq.s32.totalorder %s15, 1
    %p132 = por %p130, %p131
    %p134 = scmp.ne.s32.totalorder %s117, %s133
    %p135 = scmp.eq.s32.totalorder %s15, 0
    %p136 = por %p134, %p135
    %p137 = scmp.le.s32.totalorder 1, %s9
    %p138 = scmp.lt.s32.totalorder %s9, 3
    %p139 = pnand %p137, %p138
    %p140 = pneg %p139
    // Predicated region
    $region9: #{transformer_forward.30} parent=5 // pred_check
      _
    $region10: #{transformer_forward.30} parent=5 // pred_check_branch
      %142 = sbr.rel (%p139) target = $region12
    $region11: #{transformer_forward.30} parent=5 // pred_region
      %s143 = ssub.s32 %s9, 1
    $region12: #{transformer_forward.30} parent=5 // pred_fallthru
      _
    %p144 = scmp.lt.s32.totalorder %s9, 2
    // Predicated region
    $region13: #{transformer_forward.30} parent=5 // pred_check
      %p145 = pneg %p144
    $region14: #{transformer_forward.30} parent=5 // pred_check_branch
      %147 = sbr.rel (%p145) target = $region16
    $region15: #{transformer_forward.30} parent=5 // pred_region
      // Predicated region
      $region17: #{transformer_forward.30} parent=15 // pred_check
        %p148 = pneg %p43
      $region18: #{transformer_forward.30} parent=15 // pred_check_branch
        %150 = sbr.rel (%p148) target = $region20
      $region19: #{transformer_forward.30} parent=15 // pred_region
        %p151 = scmp.lt.s32.totalorder %s16, 1
        %s152 = scalar_select %p151, %s16, 1
        %p153 = scmp.lt.s32.totalorder %s17, 0
        %s154 = scalar_select %p153, %s17, 0
        %s155 = sadd.s32 %s154, %s152
        %s156 = smul.addr %s155, 4
        %s157 = scalar_lea.vmem %s0, %s156
      $region20: #{transformer_forward.30} parent=15 // pred_fallthru
        _
      // Predicated region
      $region21: #{transformer_forward.30} parent=15 // pred_check
        %p158 = pneg %p69
      $region22: #{transformer_forward.30} parent=15 // pred_check_branch
        %160 = sbr.rel (%p158) target = $region24
      $region23: #{transformer_forward.30} parent=15 // pred_region
        %p161 = scmp.lt.s32.totalorder %s16, 1
        %s162 = scalar_select %p161, %s16, 1
        %s163 = smul.addr %s162, 4
        %s164 = scalar_lea.vmem %s1, %s163
      $region24: #{transformer_forward.30} parent=15 // pred_fallthru
        _
      // Predicated region
      $region25: #{transformer_forward.30} parent=15 // pred_check
        %p165 = pneg %p95
      $region26: #{transformer_forward.30} parent=15 // pred_check_branch
        %167 = sbr.rel (%p165) target = $region28
      $region27: #{transformer_forward.30} parent=15 // pred_region
        %p168 = scmp.lt.s32.totalorder %s16, 1
        %s169 = scalar_select %p168, %s16, 1
        %s170 = smul.addr %s169, 4
        %s171 = scalar_lea.vmem %s2, %s170
      $region28: #{transformer_forward.30} parent=15 // pred_fallthru
        _
    $region16: #{transformer_forward.30} parent=5 // pred_fallthru
      _
    %p172 = scmp.le.s32.totalorder 1, %s9
    %p173 = scmp.lt.s32.totalorder %s9, 3
    %p174 = pnand %p172, %p173
    %p175 = pneg %p174
    // Predicated region
    $region29: #{transformer_forward.30} parent=5 // pred_check
      _
    $region30: #{transformer_forward.30} parent=5 // pred_check_branch
      %177 = sbr.rel (%p174) target = $region32
    $region31: #{transformer_forward.30} parent=5 // pred_region
      %s178 = ssub.s32 %s9, 1
      %p179 = scmp.lt.s32.totalorder %s18, 1
      %s180 = scalar_select %p179, %s18, 1
      %p181 = scmp.lt.s32.totalorder %s19, 0
      %s182 = scalar_select %p181, %s19, 0
      %s183 = sadd.s32 %s182, %s180
      %s184 = smul.addr %s183, 4
      %s185 = scalar_lea.vmem %s0, %s184
      %p186 = pneg %p49
      %p187 = pneg %p46
      %p188 = scmp.lt.s32.totalorder %s18, 1
      %s189 = scalar_select %p188, %s18, 1
      %s190 = smul.addr %s189, 4
      %s191 = scalar_lea.vmem %s1, %s190
      %p192 = pneg %p75
      %p193 = pneg %p72
      %p194 = scmp.lt.s32.totalorder %s18, 1
      %s195 = scalar_select %p194, %s18, 1
      %s196 = smul.addr %s195, 4
      %s197 = scalar_lea.vmem %s2, %s196
      %p198 = pneg %p101
      %p199 = pneg %p98
      %p200 = pneg %p129
      %p201 = pneg %p126
      %p202 = scmp.lt.s32.totalorder %s18, 1
      %s203 = scalar_select %p202, %s18, 1
      %p204 = scmp.lt.s32.totalorder %s19, 0
      %s205 = scalar_select %p204, %s19, 0
      %s206 = sadd.s32 %s205, %s203
      %s207 = smul.addr %s206, 4
      %s208 = scalar_lea.vmem %s3, %s207
      %p209 = scmp.lt.s32.totalorder %s18, 1
      %s210 = scalar_select %p209, %s18, 1
      %p211 = scmp.lt.s32.totalorder %s19, 0
      %s212 = scalar_select %p211, %s19, 0
      %s213 = sadd.s32 %s212, %s210
      %s214 = smul.addr %s213, 4
      %s215 = scalar_lea.vmem %s0, %s214
      %p216 = scmp.lt.s32.totalorder %s18, 1
      %s217 = scalar_select %p216, %s18, 1
      %s218 = smul.addr %s217, 4
      %s219 = scalar_lea.vmem %s1, %s218
      %p220 = scmp.lt.s32.totalorder %s18, 1
      %s221 = scalar_select %p220, %s18, 1
      %s222 = smul.addr %s221, 4
      %s223 = scalar_lea.vmem %s2, %s222
      %p224 = scmp.lt.s32.totalorder %s18, 1
      %s225 = scalar_select %p224, %s18, 1
      %p226 = scmp.lt.s32.totalorder %s19, 0
      %s227 = scalar_select %p226, %s19, 0
      %s228 = sadd.s32 %s227, %s225
      %s229 = smul.addr %s228, 4
      %s230 = scalar_lea.vmem %s3, %s229
      %v232 = vld [vmem:[%s215] sm:$0xf]
      %v233 = vld [vmem:[%s219] sm:$0xf]
      %v234 = vld [vmem:[%s223] sm:$0xf]
      %vm235 = vcmask 64512
      %v237 = vsel %vm235, %v232, 0
      %v240 = vsel %vm235, %v233, 0
      %242 = vmatprep.subr.bf16.mxu0 0
      %243 = vmatpush1.bf16.xpose.msra.mxu0 %v240
      %244 = vmatprep.subr.bf16.mxu0 0
      %245 = vmatpush1.bf16.xpose.msra.mxu0 0
      %246 = vmatprep.subr.bf16.mxu0 0
      %247 = vmatpush1.bf16.xpose.msra.mxu0 0
      %248 = vmatprep.subr.bf16.mxu0 0
      %249 = vmatpush1.bf16.xpose.msra.mxu0 0
      %250 = vmatprep.subr.bf16.mxu0 0
      %251 = vmatpush1.bf16.xpose.msra.mxu0 0
      %252 = vmatprep.subr.bf16.mxu0 0
      %253 = vmatpush1.bf16.xpose.msra.mxu0 0
      %254 = vmatprep.subr.bf16.mxu0 0
      %255 = vmatpush1.bf16.xpose.msra.mxu0 0
      %256 = vmatprep.subr.bf16.mxu0 0
      %257 = vmatpush1.bf16.xpose.msra.mxu0 0
      %258 = vmatprep.subr.bf16.mxu0 0
      %259 = vmatpush1.bf16.xpose.msra.mxu0 0
      %260 = vmatprep.subr.bf16.mxu0 0
      %261 = vmatpush1.bf16.xpose.msra.mxu0 0
      %262 = vmatprep.subr.bf16.mxu0 0
      %263 = vmatpush1.bf16.xpose.msra.mxu0 0
      %264 = vmatprep.subr.bf16.mxu0 0
      %265 = vmatpush1.bf16.xpose.msra.mxu0 0
      %266 = vmatprep.subr.bf16.mxu0 0
      %267 = vmatpush1.bf16.xpose.msra.mxu0 0
      %268 = vmatprep.subr.bf16.mxu0 0
      %269 = vmatpush1.bf16.xpose.msra.mxu0 0
      %270 = vmatprep.subr.bf16.mxu0 0
      %271 = vmatpush1.bf16.xpose.msra.mxu0 0
      %272 = vmatprep.subr.bf16.mxu0 0
      %273 = vmatpush1.bf16.xpose.msra.mxu0 0
      %274 = vmatprep.mubr.bf16.mxu0 0
      %275 = vmatmul.mubr.bf16.gmra.mrb[0].mxu0 %v237
      %v276 = vpop.f32.mrb[0].mxu0
      %v277 = vadd.f32 0.0, %v276
      %v278 = vpop.f32.mrb[0].mxu0
      %v279 = vpop.f32.mrb[0].mxu0
      %v280 = vpop.f32.mrb[0].mxu0
      %281 = vdwg.mxu0
      %v282 = vsel %vm235, %v277, -inf
      %283 = vmax.xlane.f32.xlu0 %v282
      %v284 = vpop.xlane.xlu0 %283
      %v285 = vsub.f32 %v277, %v284
      %v286 = vmul.f32 %v285, 1.442695
      %v287 = vpow.pop %v286
      %v288 = vsel %vm235, %v287, 0.0
      %289 = vadd.xlane.f32.xlu0 %v288
      %v290 = vpop.xlane.xlu0 %289
      %v291 = vrcp.pop %v290
      %v292 = vmul.f32 %v287, %v291
      %v293 = vpack.c.bf16 %v292, %v292
      %v295 = vsel %vm235, %v293, 0
      %vm297 = vcmask 1043456
      %v299 = vsel %vm297, %v234, 0
      %301 = vmatprep.subr.bf16.mxu0 0
      %302 = vmatpush1.bf16.msra.mxu0 %v299
      %303 = vmatprep.subr.bf16.mxu0 0
      %304 = vmatpush1.bf16.msra.mxu0 0
      %305 = vmatprep.subr.bf16.mxu0 0
      %306 = vmatpush1.bf16.msra.mxu0 0
      %307 = vmatprep.subr.bf16.mxu0 0
      %308 = vmatpush1.bf16.msra.mxu0 0
      %309 = vmatprep.subr.bf16.mxu0 0
      %310 = vmatpush1.bf16.msra.mxu0 0
      %311 = vmatprep.subr.bf16.mxu0 0
      %312 = vmatpush1.bf16.msra.mxu0 0
      %313 = vmatprep.subr.bf16.mxu0 0
      %314 = vmatpush1.bf16.msra.mxu0 0
      %315 = vmatprep.subr.bf16.mxu0 0
      %316 = vmatpush1.bf16.msra.mxu0 0
      %317 = vmatprep.subr.bf16.mxu0 0
      %318 = vmatpush1.bf16.msra.mxu0 0
      %319 = vmatprep.subr.bf16.mxu0 0
      %320 = vmatpush1.bf16.msra.mxu0 0
      %321 = vmatprep.subr.bf16.mxu0 0
      %322 = vmatpush1.bf16.msra.mxu0 0
      %323 = vmatprep.subr.bf16.mxu0 0
      %324 = vmatpush1.bf16.msra.mxu0 0
      %325 = vmatprep.subr.bf16.mxu0 0
      %326 = vmatpush1.bf16.msra.mxu0 0
      %327 = vmatprep.subr.bf16.mxu0 0
      %328 = vmatpush1.bf16.msra.mxu0 0
      %329 = vmatprep.subr.bf16.mxu0 0
      %330 = vmatpush1.bf16.msra.mxu0 0
      %331 = vmatprep.subr.bf16.mxu0 0
      %332 = vmatpush1.bf16.msra.mxu0 0
      %333 = vmatprep.mubr.bf16.mxu0 0
      %334 = vmatmul.mubr.bf16.gmra.mrb[0].mxu0 %v295
      %v335 = vpop.f32.mrb[0].mxu0
      %v336 = vadd.f32 0.0, %v335
      %v337 = vpop.f32.mrb[0].mxu0
      %v338 = vpop.f32.mrb[0].mxu0
      %v339 = vpop.f32.mrb[0].mxu0
      %340 = vdwg.mxu0
      %v341 = vpack.c.bf16 %v336, %v336
      %vm342 = vcmask 60416
      %343 = vst.msk [vmem:[%s230] sm:$0xf] %vm342, %v341
      %v345 = vunpack.c.l.b16 %v232
      %v346 = vpack.c.b16 %v345, %v345
      %347 = vrot.lane.b32.xlu0 %v346, 120
      %v348 = vpop.permute.xlu0 %347
      %v350 = vunpack.c.l.b16 %v233
      %v351 = vpack.c.b16 %v350, %v350
      %352 = vrot.lane.b32.xlu0 %v351, 120
      %v353 = vpop.permute.xlu0 %352
      %v355 = vsel %vm235, %v348, 0
      %v358 = vsel %vm235, %v353, 0
      %360 = vmatprep.subr.bf16.mxu0 0
      %361 = vmatpush1.bf16.xpose.msra.mxu0 %v358
      %362 = vmatprep.subr.bf16.mxu0 0
      %363 = vmatpush1.bf16.xpose.msra.mxu0 0
      %364 = vmatprep.subr.bf16.mxu0 0
      %365 = vmatpush1.bf16.xpose.msra.mxu0 0
      %366 = vmatprep.subr.bf16.mxu0 0
      %367 = vmatpush1.bf16.xpose.msra.mxu0 0
      %368 = vmatprep.subr.bf16.mxu0 0
      %369 = vmatpush1.bf16.xpose.msra.mxu0 0
      %370 = vmatprep.subr.bf16.mxu0 0
      %371 = vmatpush1.bf16.xpose.msra.mxu0 0
      %372 = vmatprep.subr.bf16.mxu0 0
      %373 = vmatpush1.bf16.xpose.msra.mxu0 0
      %374 = vmatprep.subr.bf16.mxu0 0
      %375 = vmatpush1.bf16.xpose.msra.mxu0 0
      %376 = vmatprep.subr.bf16.mxu0 0
      %377 = vmatpush1.bf16.xpose.msra.mxu0 0
      %378 = vmatprep.subr.bf16.mxu0 0
      %379 = vmatpush1.bf16.xpose.msra.mxu0 0
      %380 = vmatprep.subr.bf16.mxu0 0
      %381 = vmatpush1.bf16.xpose.msra.mxu0 0
      %382 = vmatprep.subr.bf16.mxu0 0
      %383 = vmatpush1.bf16.xpose.msra.mxu0 0
      %384 = vmatprep.subr.bf16.mxu0 0
      %385 = vmatpush1.bf16.xpose.msra.mxu0 0
      %386 = vmatprep.subr.bf16.mxu0 0
      %387 = vmatpush1.bf16.xpose.msra.mxu0 0
      %388 = vmatprep.subr.bf16.mxu0 0
      %389 = vmatpush1.bf16.xpose.msra.mxu0 0
      %390 = vmatprep.subr.bf16.mxu0 0
      %391 = vmatpush1.bf16.xpose.msra.mxu0 0
      %392 = vmatprep.mubr.bf16.mxu0 0
      %393 = vmatmul.mubr.bf16.gmra.mrb[0].mxu0 %v355
      %v394 = vpop.f32.mrb[0].mxu0
      %v395 = vadd.f32 0.0, %v394
      %v396 = vpop.f32.mrb[0].mxu0
      %v397 = vpop.f32.mrb[0].mxu0
      %v398 = vpop.f32.mrb[0].mxu0
      %399 = vdwg.mxu0
      %v400 = vsel %vm235, %v395, -inf
      %401 = vmax.xlane.f32.xlu0 %v400
      %v402 = vpop.xlane.xlu0 %401
      %v403 = vsub.f32 %v395, %v402
      %v404 = vmul.f32 %v403, 1.442695
      %v405 = vpow.pop %v404
      %v406 = vsel %vm235, %v405, 0.0
      %407 = vadd.xlane.f32.xlu0 %v406
      %v408 = vpop.xlane.xlu0 %407
      %v409 = vrcp.pop %v408
      %v410 = vmul.f32 %v405, %v409
      %v411 = vpack.c.bf16 %v410, %v410
      %v413 = vunpack.c.l.b16 %v234
      %v414 = vpack.c.b16 %v413, %v413
      %415 = vrot.lane.b32.xlu0 %v414, 120
      %v416 = vpop.permute.xlu0 %415
      %v418 = vsel %vm235, %v411, 0
      %v421 = vsel %vm297, %v416, 0
      %423 = vmatprep.subr.bf16.mxu0 0
      %424 = vmatpush1.bf16.msra.mxu0 %v421
      %425 = vmatprep.subr.bf16.mxu0 0
      %426 = vmatpush1.bf16.msra.mxu0 0
      %427 = vmatprep.subr.bf16.mxu0 0
      %428 = vmatpush1.bf16.msra.mxu0 0
      %429 = vmatprep.subr.bf16.mxu0 0
      %430 = vmatpush1.bf16.msra.mxu0 0
      %431 = vmatprep.subr.bf16.mxu0 0
      %432 = vmatpush1.bf16.msra.mxu0 0
      %433 = vmatprep.subr.bf16.mxu0 0
      %434 = vmatpush1.bf16.msra.mxu0 0
      %435 = vmatprep.subr.bf16.mxu0 0
      %436 = vmatpush1.bf16.msra.mxu0 0
      %437 = vmatprep.subr.bf16.mxu0 0
      %438 = vmatpush1.bf16.msra.mxu0 0
      %439 = vmatprep.subr.bf16.mxu0 0
      %440 = vmatpush1.bf16.msra.mxu0 0
      %441 = vmatprep.subr.bf16.mxu0 0
      %442 = vmatpush1.bf16.msra.mxu0 0
      %443 = vmatprep.subr.bf16.mxu0 0
      %444 = vmatpush1.bf16.msra.mxu0 0
      %445 = vmatprep.subr.bf16.mxu0 0
      %446 = vmatpush1.bf16.msra.mxu0 0
      %447 = vmatprep.subr.bf16.mxu0 0
      %448 = vmatpush1.bf16.msra.mxu0 0
      %449 = vmatprep.subr.bf16.mxu0 0
      %450 = vmatpush1.bf16.msra.mxu0 0
      %451 = vmatprep.subr.bf16.mxu0 0
      %452 = vmatpush1.bf16.msra.mxu0 0
      %453 = vmatprep.subr.bf16.mxu0 0
      %454 = vmatpush1.bf16.msra.mxu0 0
      %455 = vmatprep.mubr.bf16.mxu0 0
      %456 = vmatmul.mubr.bf16.gmra.mrb[0].mxu0 %v418
      %v457 = vpop.f32.mrb[0].mxu0
      %v458 = vadd.f32 0.0, %v457
      %v459 = vpop.f32.mrb[0].mxu0
      %v460 = vpop.f32.mrb[0].mxu0
      %v461 = vpop.f32.mrb[0].mxu0
      %462 = vdwg.mxu0
      %v463 = vpack.c.bf16 %v458, %v458
      %v465 = vunpack.c.l.b16 %v463
      %v466 = vpack.c.b16 %v465, %v465
      %467 = vrot.lane.b32.xlu0 %v466, 8
      %v468 = vpop.permute.xlu0 %467
      %vm470 = vcmask 126016
      %471 = vst.msk [vmem:[%s230] sm:$0xf] %vm470, %v468
      %472 = vrot.lane.b32.xlu0 %v346, 112
      %v473 = vpop.permute.xlu0 %472
      %474 = vrot.lane.b32.xlu0 %v351, 112
      %v475 = vpop.permute.xlu0 %474
      %v477 = vsel %vm235, %v473, 0
      %v480 = vsel %vm235, %v475, 0
      %482 = vmatprep.subr.bf16.mxu0 0
      %483 = vmatpush1.bf16.xpose.msra.mxu0 %v480
      %484 = vmatprep.subr.bf16.mxu0 0
      %485 = vmatpush1.bf16.xpose.msra.mxu0 0
      %486 = vmatprep.subr.bf16.mxu0 0
      %487 = vmatpush1.bf16.xpose.msra.mxu0 0
      %488 = vmatprep.subr.bf16.mxu0 0
      %489 = vmatpush1.bf16.xpose.msra.mxu0 0
      %490 = vmatprep.subr.bf16.mxu0 0
      %491 = vmatpush1.bf16.xpose.msra.mxu0 0
      %492 = vmatprep.subr.bf16.mxu0 0
      %493 = vmatpush1.bf16.xpose.msra.mxu0 0
      %494 = vmatprep.subr.bf16.mxu0 0
      %495 = vmatpush1.bf16.xpose.msra.mxu0 0
      %496 = vmatprep.subr.bf16.mxu0 0
      %497 = vmatpush1.bf16.xpose.msra.mxu0 0
      %498 = vmatprep.subr.bf16.mxu0 0
      %499 = vmatpush1.bf16.xpose.msra.mxu0 0
      %500 = vmatprep.subr.bf16.mxu0 0
      %501 = vmatpush1.bf16.xpose.msra.mxu0 0
      %502 = vmatprep.subr.bf16.mxu0 0
      %503 = vmatpush1.bf16.xpose.msra.mxu0 0
      %504 = vmatprep.subr.bf16.mxu0 0
      %505 = vmatpush1.bf16.xpose.msra.mxu0 0
      %506 = vmatprep.subr.bf16.mxu0 0
      %507 = vmatpush1.bf16.xpose.msra.mxu0 0
      %508 = vmatprep.subr.bf16.mxu0 0
      %509 = vmatpush1.bf16.xpose.msra.mxu0 0
      %510 = vmatprep.subr.bf16.mxu0 0
      %511 = vmatpush1.bf16.xpose.msra.mxu0 0
      %512 = vmatprep.subr.bf16.mxu0 0
      %513 = vmatpush1.bf16.xpose.msra.mxu0 0
      %514 = vmatprep.mubr.bf16.mxu0 0
      %515 = vmatmul.mubr.bf16.gmra.mrb[0].mxu0 %v477
      %v516 = vpop.f32.mrb[0].mxu0
      %v517 = vadd.f32 0.0, %v516
      %v518 = vpop.f32.mrb[0].mxu0
      %v519 = vpop.f32.mrb[0].mxu0
      %v520 = vpop.f32.mrb[0].mxu0
      %521 = vdwg.mxu0
      %v522 = vsel %vm235, %v517, -inf
      %523 = vmax.xlane.f32.xlu0 %v522
      %v524 = vpop.xlane.xlu0 %523
      %v525 = vsub.f32 %v517, %v524
      %v526 = vmul.f32 %v525, 1.442695
      %v527 = vpow.pop %v526
      %v528 = vsel %vm235, %v527, 0.0
      %529 = vadd.xlane.f32.xlu0 %v528
      %v530 = vpop.xlane.xlu0 %529
      %v531 = vrcp.pop %v530
      %v532 = vmul.f32 %v527, %v531
      %v533 = vpack.c.bf16 %v532, %v532
      %534 = vrot.lane.b32.xlu0 %v414, 112
      %v535 = vpop.permute.xlu0 %534
      %v537 = vsel %vm235, %v533, 0
      %v540 = vsel %vm297, %v535, 0
      %542 = vmatprep.subr.bf16.mxu0 0
      %543 = vmatpush1.bf16.msra.mxu0 %v540
      %544 = vmatprep.subr.bf16.mxu0 0
      %545 = vmatpush1.bf16.msra.mxu0 0
      %546 = vmatprep.subr.bf16.mxu0 0
      %547 = vmatpush1.bf16.msra.mxu0 0
      %548 = vmatprep.subr.bf16.mxu0 0
      %549 = vmatpush1.bf16.msra.mxu0 0
      %550 = vmatprep.subr.bf16.mxu0 0
      %551 = vmatpush1.bf16.msra.mxu0 0
      %552 = vmatprep.subr.bf16.mxu0 0
      %553 = vmatpush1.bf16.msra.mxu0 0
      %554 = vmatprep.subr.bf16.mxu0 0
      %555 = vmatpush1.bf16.msra.mxu0 0
      %556 = vmatprep.subr.bf16.mxu0 0
      %557 = vmatpush1.bf16.msra.mxu0 0
      %558 = vmatprep.subr.bf16.mxu0 0
      %559 = vmatpush1.bf16.msra.mxu0 0
      %560 = vmatprep.subr.bf16.mxu0 0
      %561 = vmatpush1.bf16.msra.mxu0 0
      %562 = vmatprep.subr.bf16.mxu0 0
      %563 = vmatpush1.bf16.msra.mxu0 0
      %564 = vmatprep.subr.bf16.mxu0 0
      %565 = vmatpush1.bf16.msra.mxu0 0
      %566 = vmatprep.subr.bf16.mxu0 0
      %567 = vmatpush1.bf16.msra.mxu0 0
      %568 = vmatprep.subr.bf16.mxu0 0
      %569 = vmatpush1.bf16.msra.mxu0 0
      %570 = vmatprep.subr.bf16.mxu0 0
      %571 = vmatpush1.bf16.msra.mxu0 0
      %572 = vmatprep.subr.bf16.mxu0 0
      %573 = vmatpush1.bf16.msra.mxu0 0
      %574 = vmatprep.mubr.bf16.mxu0 0
      %575 = vmatmul.mubr.bf16.gmra.mrb[0].mxu0 %v537
      %v576 = vpop.f32.mrb[0].mxu0
      %v577 = vadd.f32 0.0, %v576
      %v578 = vpop.f32.mrb[0].mxu0
      %v579 = vpop.f32.mrb[0].mxu0
      %v580 = vpop.f32.mrb[0].mxu0
      %581 = vdwg.mxu0
      %v582 = vpack.c.bf16 %v577, %v577
      %v584 = vunpack.c.l.b16 %v582
      %v585 = vpack.c.b16 %v584, %v584
      %586 = vrot.lane.b32.xlu0 %v585, 16
      %v587 = vpop.permute.xlu0 %586
      %vm589 = vcmask 191616
      %590 = vst.msk [vmem:[%s230] sm:$0xf] %vm589, %v587
      %591 = vrot.lane.b32.xlu0 %v346, 104
      %v592 = vpop.permute.xlu0 %591
      %593 = vrot.lane.b32.xlu0 %v351, 104
      %v594 = vpop.permute.xlu0 %593
      %v596 = vsel %vm235, %v592, 0
      %v599 = vsel %vm235, %v594, 0
      %601 = vmatprep.subr.bf16.mxu0 0
      %602 = vmatpush1.bf16.xpose.msra.mxu0 %v599
      %603 = vmatprep.subr.bf16.mxu0 0
      %604 = vmatpush1.bf16.xpose.msra.mxu0 0
      %605 = vmatprep.subr.bf16.mxu0 0
      %606 = vmatpush1.bf16.xpose.msra.mxu0 0
      %607 = vmatprep.subr.bf16.mxu0 0
      %608 = vmatpush1.bf16.xpose.msra.mxu0 0
      %609 = vmatprep.subr.bf16.mxu0 0
      %610 = vmatpush1.bf16.xpose.msra.mxu0 0
      %611 = vmatprep.subr.bf16.mxu0 0
      %612 = vmatpush1.bf16.xpose.msra.mxu0 0
      %613 = vmatprep.subr.bf16.mxu0 0
      %614 = vmatpush1.bf16.xpose.msra.mxu0 0
      %615 = vmatprep.subr.bf16.mxu0 0
      %616 = vmatpush1.bf16.xpose.msra.mxu0 0
      %617 = vmatprep.subr.bf16.mxu0 0
      %618 = vmatpush1.bf16.xpose.msra.mxu0 0
      %619 = vmatprep.subr.bf16.mxu0 0
      %620 = vmatpush1.bf16.xpose.msra.mxu0 0
      %621 = vmatprep.subr.bf16.mxu0 0
      %622 = vmatpush1.bf16.xpose.msra.mxu0 0
      %623 = vmatprep.subr.bf16.mxu0 0
      %624 = vmatpush1.bf16.xpose.msra.mxu0 0
      %625 = vmatprep.subr.bf16.mxu0 0
      %626 = vmatpush1.bf16.xpose.msra.mxu0 0
      %627 = vmatprep.subr.bf16.mxu0 0
      %628 = vmatpush1.bf16.xpose.msra.mxu0 0
      %629 = vmatprep.subr.bf16.mxu0 0
      %630 = vmatpush1.bf16.xpose.msra.mxu0 0
      %631 = vmatprep.subr.bf16.mxu0 0
      %632 = vmatpush1.bf16.xpose.msra.mxu0 0
      %633 = vmatprep.mubr.bf16.mxu0 0
      %634 = vmatmul.mubr.bf16.gmra.mrb[0].mxu0 %v596
      %v635 = vpop.f32.mrb[0].mxu0
      %v636 = vadd.f32 0.0, %v635
      %v637 = vpop.f32.mrb[0].mxu0
      %v638 = vpop.f32.mrb[0].mxu0
      %v639 = vpop.f32.mrb[0].mxu0
      %640 = vdwg.mxu0
      %v641 = vsel %vm235, %v636, -inf
      %642 = vmax.xlane.f32.xlu0 %v641
      %v643 = vpop.xlane.xlu0 %642
      %v644 = vsub.f32 %v636, %v643
      %v645 = vmul.f32 %v644, 1.442695
      %v646 = vpow.pop %v645
      %v647 = vsel %vm235, %v646, 0.0
      %648 = vadd.xlane.f32.xlu0 %v647
      %v649 = vpop.xlane.xlu0 %648
      %v650 = vrcp.pop %v649
      %v651 = vmul.f32 %v646, %v650
      %v652 = vpack.c.bf16 %v651, %v651
      %653 = vrot.lane.b32.xlu0 %v414, 104
      %v654 = vpop.permute.xlu0 %653
      %v656 = vsel %vm235, %v652, 0
      %v659 = vsel %vm297, %v654, 0
      %661 = vmatprep.subr.bf16.mxu0 0
      %662 = vmatpush1.bf16.msra.mxu0 %v659
      %663 = vmatprep.subr.bf16.mxu0 0
      %664 = vmatpush1.bf16.msra.mxu0 0
      %665 = vmatprep.subr.bf16.mxu0 0
      %666 = vmatpush1.bf16.msra.mxu0 0
      %667 = vmatprep.subr.bf16.mxu0 0
      %668 = vmatpush1.bf16.msra.mxu0 0
      %669 = vmatprep.subr.bf16.mxu0 0
      %670 = vmatpush1.bf16.msra.mxu0 0
      %671 = vmatprep.subr.bf16.mxu0 0
      %672 = vmatpush1.bf16.msra.mxu0 0
      %673 = vmatprep.subr.bf16.mxu0 0
      %674 = vmatpush1.bf16.msra.mxu0 0
      %675 = vmatprep.subr.bf16.mxu0 0
      %676 = vmatpush1.bf16.msra.mxu0 0
      %677 = vmatprep.subr.bf16.mxu0 0
      %678 = vmatpush1.bf16.msra.mxu0 0
      %679 = vmatprep.subr.bf16.mxu0 0
      %680 = vmatpush1.bf16.msra.mxu0 0
      %681 = vmatprep.subr.bf16.mxu0 0
      %682 = vmatpush1.bf16.msra.mxu0 0
      %683 = vmatprep.subr.bf16.mxu0 0
      %684 = vmatpush1.bf16.msra.mxu0 0
      %685 = vmatprep.subr.bf16.mxu0 0
      %686 = vmatpush1.bf16.msra.mxu0 0
      %687 = vmatprep.subr.bf16.mxu0 0
      %688 = vmatpush1.bf16.msra.mxu0 0
      %689 = vmatprep.subr.bf16.mxu0 0
      %690 = vmatpush1.bf16.msra.mxu0 0
      %691 = vmatprep.subr.bf16.mxu0 0
      %692 = vmatpush1.bf16.msra.mxu0 0
      %693 = vmatprep.mubr.bf16.mxu0 0
      %694 = vmatmul.mubr.bf16.gmra.mrb[0].mxu0 %v656
      %v695 = vpop.f32.mrb[0].mxu0
      %v696 = vadd.f32 0.0, %v695
      %v697 = vpop.f32.mrb[0].mxu0
      %v698 = vpop.f32.mrb[0].mxu0
      %v699 = vpop.f32.mrb[0].mxu0
      %700 = vdwg.mxu0
      %v701 = vpack.c.bf16 %v696, %v696
      %v703 = vunpack.c.l.b16 %v701
      %v704 = vpack.c.b16 %v703, %v703
      %705 = vrot.lane.b32.xlu0 %v704, 24
      %v706 = vpop.permute.xlu0 %705
      %vm708 = vcmask 257216
      %709 = vst.msk [vmem:[%s230] sm:$0xf] %vm708, %v706
      %p710 = scmp.lt.s32.totalorder %s18, 1
      %s711 = scalar_select %p710, %s18, 1
      %p712 = scmp.lt.s32.totalorder %s19, 0
      %s713 = scalar_select %p712, %s19, 0
      %s714 = sadd.s32 %s713, %s711
      %s715 = smul.addr %s714, 4
      %s716 = scalar_lea.vmem %s3, %s715
      // Predicated region
      $region33: #{transformer_forward.30} parent=31 // pred_check
        %p717 = pneg %p126
      $region34: #{transformer_forward.30} parent=31 // pred_check_branch
        %719 = sbr.rel (%p717) target = $region36
      $region35: #{transformer_forward.30} parent=31 // pred_region
        _
      $region36: #{transformer_forward.30} parent=31 // pred_fallthru
        _
    $region32: #{transformer_forward.30} parent=5 // pred_fallthru
      _
    %p720 = scmp.le.s32.totalorder 2, %s9
    // Predicated region
    $region37: #{transformer_forward.30} parent=5 // pred_check
      %p721 = pneg %p720
    $region38: #{transformer_forward.30} parent=5 // pred_check_branch
      %723 = sbr.rel (%p721) target = $region40
    $region39: #{transformer_forward.30} parent=5 // pred_region
      %s724 = ssub.s32 %s9, 2
      // Predicated region
      $region41: #{transformer_forward.30} parent=39 // pred_check
        %p725 = pneg %p132
      $region42: #{transformer_forward.30} parent=39 // pred_check_branch
        %727 = sbr.rel (%p725) target = $region44
      $region43: #{transformer_forward.30} parent=39 // pred_region
        %p728 = scmp.lt.s32.totalorder %s20, 1
        %s729 = scalar_select %p728, %s20, 1
        %p730 = scmp.lt.s32.totalorder %s21, 0
        %s731 = scalar_select %p730, %s21, 0
        %s732 = sadd.s32 %s731, %s729
        %s733 = smul.addr %s732, 4
        %s734 = scalar_lea.vmem %s3, %s733
      $region44: #{transformer_forward.30} parent=39 // pred_fallthru
        _
    $region40: #{transformer_forward.30} parent=5 // pred_fallthru
      _
  $region6: #{transformer_forward.30} parent=0 // loop_footer
    %s13 = sadd.s32 1, %s9
  $region7: #{transformer_forward.30} parent=0 // loop_footer_branch
    %8 = sbr.rel target = $region3
  $region8: #{transformer_forward.30} parent=0 // loop_exit
    _

// kernel: transformer_forward.29
$region0: #{transformer_forward.29}
  #allocation0 [shape = 'u32[]', space=smem, size = 0x4, offset = 0x4, fixed_abs, tag = 'smem constant byte address 0x4 - core index']
  #allocation1 [shape = 'u32[144,128]{1,0:T(1,128)}', space=vmem, size = 0x12000, scoped, tag = 'internal scratch']
  #allocation2 [shape = 'f32[16,96]{1,0:T(8,128)}', space=vmem, size = 0x2000, scoped, tag = 'scratch operand']
  %s0 = inlined_call_operand.vmem [shape: bf16[16,32], index: 0, kind: input, shape index: {}]
  %s1 = inlined_call_operand.vmem [shape: bf16[32,96], index: 1, kind: input, shape index: {}]
  %s2 = inlined_call_operand.vmem [shape: f32[1,96], index: 2, kind: input, shape index: {}]
  %s3 = inlined_call_operand.vmem [shape: bf16[16,32], index: 3, kind: output, shape index: {0}]
  %s4 = inlined_call_operand.vmem [shape: bf16[16,32], index: 4, kind: output, shape index: {1}]
  %s5 = inlined_call_operand.vmem [shape: bf16[16,32], index: 5, kind: output, shape index: {2}]
  %6 = xla_tuple %s3, %s4, %s5
  %s7 = sld [smem:[#allocation0]]
  $region46: #{transformer_forward.29} parent=0
    _
  %s9 = ssub.s32 1, %s7
  %s10 = scalar_select 0, %s9, %s7
  // Predicated region
  $region2: #{transformer_forward.29} parent=0 // pred_check
    _
  $region3: #{transformer_forward.29} parent=0 // pred_check_branch
    %12 = sbr.rel (0) target = $region5
  $region4: #{transformer_forward.29} parent=0 // pred_region
    _
  $region5: #{transformer_forward.29} parent=0 // pred_fallthru
    _
  // Predicated region
  $region6: #{transformer_forward.29} parent=0 // pred_check
    _
  $region7: #{transformer_forward.29} parent=0 // pred_check_branch
    %14 = sbr.rel (0) target = $region9
  $region8: #{transformer_forward.29} parent=0 // pred_region
    _
  $region9: #{transformer_forward.29} parent=0 // pred_fallthru
    _
  // Predicated region
  $region10: #{transformer_forward.29} parent=0 // pred_check
    _
  $region11: #{transformer_forward.29} parent=0 // pred_check_branch
    %16 = sbr.rel (0) target = $region13
  $region12: #{transformer_forward.29} parent=0 // pred_region
    _
  $region13: #{transformer_forward.29} parent=0 // pred_fallthru
    _
  %p18 = scmp.eq.s32.totalorder 0, 0
  // Predicated region
  $region14: #{transformer_forward.29} parent=0 // pred_check
    %p19 = pneg %p18
  $region15: #{transformer_forward.29} parent=0 // pred_check_branch
    %21 = sbr.rel (%p19) target = $region17
  $region16: #{transformer_forward.29} parent=0 // pred_region
    %vm22 = vcmask 785408
    %23 = vst.msk [vmem:[#allocation2] sm:$0xff] %vm22, 0.0
    %24 = vst.msk [vmem:[#allocation2 + $0x8] sm:$0xff] %vm22, 0.0
  $region17: #{transformer_forward.29} parent=0 // pred_fallthru
    _
  %v25 = vld [vmem:[#allocation2] sm:$0xff]
  %v26 = vld [vmem:[#allocation2 + $0x8] sm:$0xff]
  %v27 = vld [vmem:[%s0] sm:$0xf]
  %v28 = vld [vmem:[%s0 + $0x4] sm:$0xf]
  %v29 = vld [vmem:[%s1] sm:$0xf]
  %v30 = vld [vmem:[%s1 + $0x4] sm:$0xf]
  %v31 = vld [vmem:[%s1 + $0x8] sm:$0xf]
  %v32 = vld [vmem:[%s1 + $0xc] sm:$0xf]
  %v35 = vunpack.c.l.b16 %v27
  %v36 = vunpack.c.l.b16 %v28
  %v37 = vpack.c.b16 %v36, %v35
  %v42 = vunpack.c.l.b16 %v29
  %v43 = vunpack.c.l.b16 %v30
  %v44 = vunpack.c.l.b16 %v31
  %v45 = vunpack.c.l.b16 %v32
  %v46 = vpack.c.b16 %v43, %v42
  %v47 = vpack.c.b16 %v45, %v44
  %vm50 = vcmask 261120
  %v52 = vsel %vm50, %v37, 0
  %54 = vmatprep.subr.bf16.mxu0 0
  %55 = vmatpush1.bf16.msra.mxu0 %v46
  %56 = vmatprep.subr.bf16.mxu0 0
  %57 = vmatpush1.bf16.msra.mxu0 %v47
  %58 = vmatprep.subr.bf16.mxu0 0
  %59 = vmatpush1.bf16.msra.mxu0 0
  %60 = vmatprep.subr.bf16.mxu0 0
  %61 = vmatpush1.bf16.msra.mxu0 0
  %62 = vmatprep.subr.bf16.mxu0 0
  %63 = vmatpush1.bf16.msra.mxu0 0
  %64 = vmatprep.subr.bf16.mxu0 0
  %65 = vmatpush1.bf16.msra.mxu0 0
  %66 = vmatprep.subr.bf16.mxu0 0
  %67 = vmatpush1.bf16.msra.mxu0 0
  %68 = vmatprep.subr.bf16.mxu0 0
  %69 = vmatpush1.bf16.msra.mxu0 0
  %70 = vmatprep.subr.bf16.mxu0 0
  %71 = vmatpush1.bf16.msra.mxu0 0
  %72 = vmatprep.subr.bf16.mxu0 0
  %73 = vmatpush1.bf16.msra.mxu0 0
  %74 = vmatprep.subr.bf16.mxu0 0
  %75 = vmatpush1.bf16.msra.mxu0 0
  %76 = vmatprep.subr.bf16.mxu0 0
  %77 = vmatpush1.bf16.msra.mxu0 0
  %78 = vmatprep.subr.bf16.mxu0 0
  %79 = vmatpush1.bf16.msra.mxu0 0
  %80 = vmatprep.subr.bf16.mxu0 0
  %81 = vmatpush1.bf16.msra.mxu0 0
  %82 = vmatprep.subr.bf16.mxu0 0
  %83 = vmatpush1.bf16.msra.mxu0 0
  %84 = vmatprep.subr.bf16.mxu0 0
  %85 = vmatpush1.bf16.msra.mxu0 0
  %86 = vmatprep.mubr.bf16.mxu0 0
  %87 = vmatmul.mubr.bf16.gmra.mrb[0].mxu0 %v52
  %v88 = vpop.f32.mrb[0].mxu0
  %v89 = vadd.f32 0.0, %v88
  %v90 = vpop.f32.mrb[0].mxu0
  %v91 = vpop.f32.mrb[0].mxu0
  %v92 = vadd.f32 0.0, %v91
  %v93 = vpop.f32.mrb[0].mxu0
  %94 = vdwg.mxu0
  %v95 = vadd.f32 %v25, %v89
  %v96 = vadd.f32 %v26, %v92
  %vm97 = vcmask 785408
  %98 = vst.msk [vmem:[#allocation2] sm:$0xff] %vm97, %v95
  %99 = vst.msk [vmem:[#allocation2 + $0x8] sm:$0xff] %vm97, %v96
  // Predicated region
  $region18: #{transformer_forward.29} parent=0 // pred_check
    %p100 = pneg %p18
  $region19: #{transformer_forward.29} parent=0 // pred_check_branch
    %102 = sbr.rel (%p100) target = $region21
  $region20: #{transformer_forward.29} parent=0 // pred_region
    %v103 = vld [vmem:[#allocation2] sm:$0xff]
    %v104 = vld [vmem:[#allocation2 + $0x8] sm:$0xff]
    %v105 = vld [vmem:[%s2] sm:$0x1]
    %v107 = vlaneseq
    %v108 = vshrl.u32 %v107, 7
    %v109 = vsub.s32 0, %v108
    %v110 = vrot.slane %v105, %v109
    %v112 = vadd.f32 %v103, %v110
    %v113 = vadd.f32 %v104, %v110
    %v114 = vpack.c.bf16 %v113, %v112
    %v116 = vunpack.c.l.b16 %v114
    %v117 = vunpack.c.h.b16 %v114
    %v118 = vpack.c.b16 %v116, %v116
    %v119 = vpack.c.b16 %v117, %v117
    %vm122 = vcmask 257024
    %123 = vst.msk [vmem:[%s3] sm:$0xf] %vm122, %v118
    %124 = vst.msk [vmem:[%s3 + $0x4] sm:$0xf] %vm122, %v119
    %125 = vrot.lane.b32.xlu0 %v118, 96
    %v126 = vpop.permute.xlu0 %125
    %127 = vrot.lane.b32.xlu0 %v119, 96
    %v128 = vpop.permute.xlu0 %127
    %131 = vst.msk [vmem:[%s4] sm:$0xf] %vm122, %v126
    %132 = vst.msk [vmem:[%s4 + $0x4] sm:$0xf] %vm122, %v128
    %133 = vrot.lane.b32.xlu0 %v118, 64
    %v134 = vpop.permute.xlu0 %133
    %135 = vrot.lane.b32.xlu0 %v119, 64
    %v136 = vpop.permute.xlu0 %135
    %139 = vst.msk [vmem:[%s5] sm:$0xf] %vm122, %v134
    %140 = vst.msk [vmem:[%s5 + $0x4] sm:$0xf] %vm122, %v136
  $region21: #{transformer_forward.29} parent=0 // pred_fallthru
    _
  // Predicated region
  $region22: #{transformer_forward.29} parent=0 // pred_check
    _
  $region23: #{transformer_forward.29} parent=0 // pred_check_branch
    %142 = sbr.rel (0) target = $region25
  $region24: #{transformer_forward.29} parent=0 // pred_region
    _
  $region25: #{transformer_forward.29} parent=0 // pred_fallthru
    _
  // Predicated region
  $region26: #{transformer_forward.29} parent=0 // pred_check
    _
  $region27: #{transformer_forward.29} parent=0 // pred_check_branch
    %144 = sbr.rel (0) target = $region29
  $region28: #{transformer_forward.29} parent=0 // pred_region
    _
  $region29: #{transformer_forward.29} parent=0 // pred_fallthru
    _
  // Predicated region
  $region30: #{transformer_forward.29} parent=0 // pred_check
    _
  $region31: #{transformer_forward.29} parent=0 // pred_check_branch
    %146 = sbr.rel (0) target = $region33
  $region32: #{transformer_forward.29} parent=0 // pred_region
    _
  $region33: #{transformer_forward.29} parent=0 // pred_fallthru
    _
  // Predicated region
  $region34: #{transformer_forward.29} parent=0 // pred_check
    _
  $region35: #{transformer_forward.29} parent=0 // pred_check_branch
    %148 = sbr.rel (0) target = $region37
  $region36: #{transformer_forward.29} parent=0 // pred_region
    _
  $region37: #{transformer_forward.29} parent=0 // pred_fallthru
    _
  // Predicated region
  $region38: #{transformer_forward.29} parent=0 // pred_check
    _
  $region39: #{transformer_forward.29} parent=0 // pred_check_branch
    %150 = sbr.rel (0) target = $region41
  $region40: #{transformer_forward.29} parent=0 // pred_region
    _
  $region41: #{transformer_forward.29} parent=0 // pred_fallthru
    _
  // Predicated region
  $region42: #{transformer_forward.29} parent=0 // pred_check
    _
  $region43: #{transformer_forward.29} parent=0 // pred_check_branch
    %152 = sbr.rel (0) target = $region45
  $region44: #{transformer_forward.29} parent=0 // pred_region
    _
  $region45: #{transformer_forward.29} parent=0 // pred_fallthru
    _

// kernel: transformer_forward.31
$region0: #{transformer_forward.31}
  #allocation0 [shape = 'u32[]', space=smem, size = 0x4, offset = 0x4, fixed_abs, tag = 'smem constant byte address 0x4 - core index']
  #allocation1 [shape = 'u32[144,128]{1,0:T(1,128)}', space=vmem, size = 0x12000, scoped, tag = 'internal scratch']
  #allocation2 [shape = 'f32[16,32]{1,0:T(8,128)}', space=vmem, size = 0x2000, scoped, tag = 'scratch operand']
  %s0 = inlined_call_operand.vmem [shape: bf16[16,32], index: 0, kind: input, shape index: {}]
  %s1 = inlined_call_operand.vmem [shape: bf16[32,32], index: 1, kind: input, shape index: {}]
  %s2 = inlined_call_operand.vmem [shape: f32[1,32], index: 2, kind: input, shape index: {}]
  %s3 = inlined_call_operand.vmem [shape: bf16[16,32], index: 3, kind: input, shape index: {}]
  %s4 = inlined_call_operand.vmem [shape: f32[1,32], index: 4, kind: input, shape index: {}]
  %s5 = inlined_call_operand.vmem [shape: f32[1,32], index: 5, kind: input, shape index: {}]
  %s6 = inlined_call_operand.vmem [shape: bf16[16,32], index: 6, kind: output, shape index: {}]
  %s7 = sld [smem:[#allocation0]]
  $region42: #{transformer_forward.31} parent=0
    _
  %s9 = ssub.s32 1, %s7
  %s10 = scalar_select 0, %s9, %s7
  // Predicated region
  $region2: #{transformer_forward.31} parent=0 // pred_check
    _
  $region3: #{transformer_forward.31} parent=0 // pred_check_branch
    %12 = sbr.rel (0) target = $region5
  $region4: #{transformer_forward.31} parent=0 // pred_region
    _
  $region5: #{transformer_forward.31} parent=0 // pred_fallthru
    _
  // Predicated region
  $region6: #{transformer_forward.31} parent=0 // pred_check
    _
  $region7: #{transformer_forward.31} parent=0 // pred_check_branch
    %14 = sbr.rel (0) target = $region9
  $region8: #{transformer_forward.31} parent=0 // pred_region
    _
  $region9: #{transformer_forward.31} parent=0 // pred_fallthru
    _
  // Predicated region
  $region10: #{transformer_forward.31} parent=0 // pred_check
    _
  $region11: #{transformer_forward.31} parent=0 // pred_check_branch
    %16 = sbr.rel (0) target = $region13
  $region12: #{transformer_forward.31} parent=0 // pred_region
    _
  $region13: #{transformer_forward.31} parent=0 // pred_fallthru
    _
  // Predicated region
  $region14: #{transformer_forward.31} parent=0 // pred_check
    _
  $region15: #{transformer_forward.31} parent=0 // pred_check_branch
    %18 = sbr.rel (0) target = $region17
  $region16: #{transformer_forward.31} parent=0 // pred_region
    _
  $region17: #{transformer_forward.31} parent=0 // pred_fallthru
    _
  // Predicated region
  $region18: #{transformer_forward.31} parent=0 // pred_check
    _
  $region19: #{transformer_forward.31} parent=0 // pred_check_branch
    %20 = sbr.rel (0) target = $region21
  $region20: #{transformer_forward.31} parent=0 // pred_region
    _
  $region21: #{transformer_forward.31} parent=0 // pred_fallthru
    _
  // Predicated region
  $region22: #{transformer_forward.31} parent=0 // pred_check
    _
  $region23: #{transformer_forward.31} parent=0 // pred_check_branch
    %22 = sbr.rel (0) target = $region25
  $region24: #{transformer_forward.31} parent=0 // pred_region
    _
  $region25: #{transformer_forward.31} parent=0 // pred_fallthru
    _
  %p24 = scmp.eq.s32.totalorder 0, 0
  // Predicated region
  $region26: #{transformer_forward.31} parent=0 // pred_check
    %p25 = pneg %p24
  $region27: #{transformer_forward.31} parent=0 // pred_check_branch
    %27 = sbr.rel (%p25) target = $region29
  $region28: #{transformer_forward.31} parent=0 // pred_region
    %vm28 = vcmask 261120
    %29 = vst.msk [vmem:[#allocation2] sm:$0xff] %vm28, 0.0
    %30 = vst.msk [vmem:[#allocation2 + $0x8] sm:$0xff] %vm28, 0.0
  $region29: #{transformer_forward.31} parent=0 // pred_fallthru
    _
  %v31 = vld [vmem:[#allocation2] sm:$0xff]
  %v32 = vld [vmem:[#allocation2 + $0x8] sm:$0xff]
  %v33 = vld [vmem:[%s0] sm:$0xf]
  %v34 = vld [vmem:[%s0 + $0x4] sm:$0xf]
  %v35 = vld [vmem:[%s1] sm:$0xf]
  %v36 = vld [vmem:[%s1 + $0x4] sm:$0xf]
  %v37 = vld [vmem:[%s1 + $0x8] sm:$0xf]
  %v38 = vld [vmem:[%s1 + $0xc] sm:$0xf]
  %v41 = vunpack.c.l.b16 %v33
  %v42 = vunpack.c.l.b16 %v34
  %v43 = vpack.c.b16 %v42, %v41
  %v48 = vunpack.c.l.b16 %v35
  %v49 = vunpack.c.l.b16 %v36
  %v50 = vunpack.c.l.b16 %v37
  %v51 = vunpack.c.l.b16 %v38
  %v52 = vpack.c.b16 %v49, %v48
  %v53 = vpack.c.b16 %v51, %v50
  %vm56 = vcmask 261120
  %v58 = vsel %vm56, %v43, 0
  %60 = vmatprep.subr.bf16.mxu0 0
  %61 = vmatpush1.bf16.msra.mxu0 %v52
  %62 = vmatprep.subr.bf16.mxu0 0
  %63 = vmatpush1.bf16.msra.mxu0 %v53
  %64 = vmatprep.subr.bf16.mxu0 0
  %65 = vmatpush1.bf16.msra.mxu0 0
  %66 = vmatprep.subr.bf16.mxu0 0
  %67 = vmatpush1.bf16.msra.mxu0 0
  %68 = vmatprep.subr.bf16.mxu0 0
  %69 = vmatpush1.bf16.msra.mxu0 0
  %70 = vmatprep.subr.bf16.mxu0 0
  %71 = vmatpush1.bf16.msra.mxu0 0
  %72 = vmatprep.subr.bf16.mxu0 0
  %73 = vmatpush1.bf16.msra.mxu0 0
  %74 = vmatprep.subr.bf16.mxu0 0
  %75 = vmatpush1.bf16.msra.mxu0 0
  %76 = vmatprep.subr.bf16.mxu0 0
  %77 = vmatpush1.bf16.msra.mxu0 0
  %78 = vmatprep.subr.bf16.mxu0 0
  %79 = vmatpush1.bf16.msra.mxu0 0
  %80 = vmatprep.subr.bf16.mxu0 0
  %81 = vmatpush1.bf16.msra.mxu0 0
  %82 = vmatprep.subr.bf16.mxu0 0
  %83 = vmatpush1.bf16.msra.mxu0 0
  %84 = vmatprep.subr.bf16.mxu0 0
  %85 = vmatpush1.bf16.msra.mxu0 0
  %86 = vmatprep.subr.bf16.mxu0 0
  %87 = vmatpush1.bf16.msra.mxu0 0
  %88 = vmatprep.subr.bf16.mxu0 0
  %89 = vmatpush1.bf16.msra.mxu0 0
  %90 = vmatprep.subr.bf16.mxu0 0
  %91 = vmatpush1.bf16.msra.mxu0 0
  %92 = vmatprep.mubr.bf16.mxu0 0
  %93 = vmatmul.mubr.bf16.gmra.mrb[0].mxu0 %v58
  %v94 = vpop.f32.mrb[0].mxu0
  %v95 = vadd.f32 0.0, %v94
  %v96 = vpop.f32.mrb[0].mxu0
  %v97 = vpop.f32.mrb[0].mxu0
  %v98 = vadd.f32 0.0, %v97
  %v99 = vpop.f32.mrb[0].mxu0
  %100 = vdwg.mxu0
  %v101 = vadd.f32 %v31, %v95
  %v102 = vadd.f32 %v32, %v98
  %103 = vst.msk [vmem:[#allocation2] sm:$0xff] %vm56, %v101
  %104 = vst.msk [vmem:[#allocation2 + $0x8] sm:$0xff] %vm56, %v102
  // Predicated region
  $region30: #{transformer_forward.31} parent=0 // pred_check
    %p105 = pneg %p24
  $region31: #{transformer_forward.31} parent=0 // pred_check_branch
    %107 = sbr.rel (%p105) target = $region33
  $region32: #{transformer_forward.31} parent=0 // pred_region
    %v108 = vld [vmem:[#allocation2] sm:$0xff]
    %v109 = vld [vmem:[#allocation2 + $0x8] sm:$0xff]
    %v110 = vld [vmem:[%s2] sm:$0x1]
    %v112 = vlaneseq
    %v113 = vshrl.u32 %v112, 7
    %v114 = vsub.s32 0, %v113
    %v115 = vrot.slane %v110, %v114
    %v117 = vadd.f32 %v108, %v115
    %v118 = vadd.f32 %v109, %v115
    %v119 = vld [vmem:[%s3] sm:$0xf]
    %v120 = vld [vmem:[%s3 + $0x4] sm:$0xf]
    %v121 = vunpack.c.l.bf16 %v119
    %v122 = vunpack.c.l.bf16 %v120
    %v123 = vadd.f32 %v117, %v121
    %v124 = vadd.f32 %v118, %v122
    %v125 = vsel %vm56, %v123, 0.0
    %126 = vadd.xlane.f32.xlu0 %v125
    %v127 = vpop.xlane.xlu0 %126
    %v128 = vsel %vm56, %v124, 0.0
    %129 = vadd.xlane.f32.xlu0 %v128
    %v130 = vpop.xlane.xlu0 %129
    %v131 = vrcp.pop 32.0
    %v132 = vmul.f32 %v127, %v131
    %v133 = vmul.f32 %v130, %v131
    %v134 = vsub.f32 %v123, %v132
    %v135 = vsub.f32 %v124, %v133
    %v136 = vmul.f32 %v134, %v134
    %v137 = vmul.f32 %v135, %v135
    %v138 = vsel %vm56, %v136, 0.0
    %139 = vadd.xlane.f32.xlu0 %v138
    %v140 = vpop.xlane.xlu0 %139
    %v141 = vsel %vm56, %v137, 0.0
    %142 = vadd.xlane.f32.xlu0 %v141
    %v143 = vpop.xlane.xlu0 %142
    %v144 = vmul.f32 %v140, %v131
    %v145 = vmul.f32 %v143, %v131
    %v146 = vadd.f32 %v144, 1e-05
    %v147 = vadd.f32 %v145, 1e-05
    %v148 = vrsqrt.pop %v146
    %v149 = vrsqrt.pop %v147
    %v150 = vmul.f32 %v134, %v148
    %v151 = vmul.f32 %v135, %v149
    %v152 = vld [vmem:[%s4] sm:$0x1]
    %v154 = vlaneseq
    %v155 = vshrl.u32 %v154, 7
    %v156 = vsub.s32 0, %v155
    %v157 = vrot.slane %v152, %v156
    %v159 = vmul.f32 %v150, %v157
    %v160 = vmul.f32 %v151, %v157
    %v161 = vld [vmem:[%s5] sm:$0x1]
    %v163 = vlaneseq
    %v164 = vshrl.u32 %v163, 7
    %v165 = vsub.s32 0, %v164
    %v166 = vrot.slane %v161, %v165
    %v168 = vadd.f32 %v159, %v166
    %v169 = vadd.f32 %v160, %v166
    %v170 = vpack.c.bf16 %v169, %v168
    %v172 = vunpack.c.l.b16 %v170
    %v173 = vunpack.c.h.b16 %v170
    %v174 = vpack.c.b16 %v172, %v172
    %v175 = vpack.c.b16 %v173, %v173
    %vm178 = vcmask 257024
    %179 = vst.msk [vmem:[%s6] sm:$0xf] %vm178, %v174
    %180 = vst.msk [vmem:[%s6 + $0x4] sm:$0xf] %vm178, %v175
  $region33: #{transformer_forward.31} parent=0 // pred_fallthru
    _
  // Predicated region
  $region34: #{transformer_forward.31} parent=0 // pred_check
    _
  $region35: #{transformer_forward.31} parent=0 // pred_check_branch
    %182 = sbr.rel (0) target = $region37
  $region36: #{transformer_forward.31} parent=0 // pred_region
    _
  $region37: #{transformer_forward.31} parent=0 // pred_fallthru
    _
  // Predicated region
  $region38: #{transformer_forward.31} parent=0 // pred_check
    _
  $region39: #{transformer_forward.31} parent=0 // pred_check_branch
    %184 = sbr.rel (0) target = $region41
  $region40: #{transformer_forward.31} parent=0 // pred_region
    _
  $region41: #{transformer_forward.31} parent=0 // pred_fallthru
    _

// kernel: transformer_forward.32
$region0: #{transformer_forward.32}
  #allocation0 [shape = 'u32[]', space=smem, size = 0x4, offset = 0x4, fixed_abs, tag = 'smem constant byte address 0x4 - core index']
  #allocation1 [shape = 'u32[144,128]{1,0:T(1,128)}', space=vmem, size = 0x12000, scoped, tag = 'internal scratch']
  #allocation2 [shape = 'f32[16,64]{1,0:T(8,128)}', space=vmem, size = 0x2000, scoped, tag = 'scratch operand']
  %s0 = inlined_call_operand.vmem [shape: bf16[16,32], index: 0, kind: input, shape index: {}]
  %s1 = inlined_call_operand.vmem [shape: bf16[32,64], index: 1, kind: input, shape index: {}]
  %s2 = inlined_call_operand.vmem [shape: f32[1,64], index: 2, kind: input, shape index: {}]
  %s3 = inlined_call_operand.vmem [shape: bf16[16,64], index: 3, kind: output, shape index: {}]
  %s4 = sld [smem:[#allocation0]]
  $region30: #{transformer_forward.32} parent=0
    _
  %s6 = ssub.s32 1, %s4
  %s7 = scalar_select 0, %s6, %s4
  // Predicated region
  $region2: #{transformer_forward.32} parent=0 // pred_check
    _
  $region3: #{transformer_forward.32} parent=0 // pred_check_branch
    %9 = sbr.rel (0) target = $region5
  $region4: #{transformer_forward.32} parent=0 // pred_region
    _
  $region5: #{transformer_forward.32} parent=0 // pred_fallthru
    _
  // Predicated region
  $region6: #{transformer_forward.32} parent=0 // pred_check
    _
  $region7: #{transformer_forward.32} parent=0 // pred_check_branch
    %11 = sbr.rel (0) target = $region9
  $region8: #{transformer_forward.32} parent=0 // pred_region
    _
  $region9: #{transformer_forward.32} parent=0 // pred_fallthru
    _
  // Predicated region
  $region10: #{transformer_forward.32} parent=0 // pred_check
    _
  $region11: #{transformer_forward.32} parent=0 // pred_check_branch
    %13 = sbr.rel (0) target = $region13
  $region12: #{transformer_forward.32} parent=0 // pred_region
    _
  $region13: #{transformer_forward.32} parent=0 // pred_fallthru
    _
  %p15 = scmp.eq.s32.totalorder 0, 0
  // Predicated region
  $region14: #{transformer_forward.32} parent=0 // pred_check
    %p16 = pneg %p15
  $region15: #{transformer_forward.32} parent=0 // pred_check_branch
    %18 = sbr.rel (%p16) target = $region17
  $region16: #{transformer_forward.32} parent=0 // pred_region
    %vm19 = vcmask 523264
    %20 = vst.msk [vmem:[#allocation2] sm:$0xff] %vm19, 0.0
    %21 = vst.msk [vmem:[#allocation2 + $0x8] sm:$0xff] %vm19, 0.0
  $region17: #{transformer_forward.32} parent=0 // pred_fallthru
    _
  %v22 = vld [vmem:[#allocation2] sm:$0xff]
  %v23 = vld [vmem:[#allocation2 + $0x8] sm:$0xff]
  %v24 = vld [vmem:[%s0] sm:$0xf]
  %v25 = vld [vmem:[%s0 + $0x4] sm:$0xf]
  %v26 = vld [vmem:[%s1] sm:$0xf]
  %v27 = vld [vmem:[%s1 + $0x4] sm:$0xf]
  %v28 = vld [vmem:[%s1 + $0x8] sm:$0xf]
  %v29 = vld [vmem:[%s1 + $0xc] sm:$0xf]
  %v32 = vunpack.c.l.b16 %v24
  %v33 = vunpack.c.l.b16 %v25
  %v34 = vpack.c.b16 %v33, %v32
  %v39 = vunpack.c.l.b16 %v26
  %v40 = vunpack.c.l.b16 %v27
  %v41 = vunpack.c.l.b16 %v28
  %v42 = vunpack.c.l.b16 %v29
  %v43 = vpack.c.b16 %v40, %v39
  %v44 = vpack.c.b16 %v42, %v41
  %vm47 = vcmask 261120
  %v49 = vsel %vm47, %v34, 0
  %51 = vmatprep.subr.bf16.mxu0 0
  %52 = vmatpush1.bf16.msra.mxu0 %v43
  %53 = vmatprep.subr.bf16.mxu0 0
  %54 = vmatpush1.bf16.msra.mxu0 %v44
  %55 = vmatprep.subr.bf16.mxu0 0
  %56 = vmatpush1.bf16.msra.mxu0 0
  %57 = vmatprep.subr.bf16.mxu0 0
  %58 = vmatpush1.bf16.msra.mxu0 0
  %59 = vmatprep.subr.bf16.mxu0 0
  %60 = vmatpush1.bf16.msra.mxu0 0
  %61 = vmatprep.subr.bf16.mxu0 0
  %62 = vmatpush1.bf16.msra.mxu0 0
  %63 = vmatprep.subr.bf16.mxu0 0
  %64 = vmatpush1.bf16.msra.mxu0 0
  %65 = vmatprep.subr.bf16.mxu0 0
  %66 = vmatpush1.bf16.msra.mxu0 0
  %67 = vmatprep.subr.bf16.mxu0 0
  %68 = vmatpush1.bf16.msra.mxu0 0
  %69 = vmatprep.subr.bf16.mxu0 0
  %70 = vmatpush1.bf16.msra.mxu0 0
  %71 = vmatprep.subr.bf16.mxu0 0
  %72 = vmatpush1.bf16.msra.mxu0 0
  %73 = vmatprep.subr.bf16.mxu0 0
  %74 = vmatpush1.bf16.msra.mxu0 0
  %75 = vmatprep.subr.bf16.mxu0 0
  %76 = vmatpush1.bf16.msra.mxu0 0
  %77 = vmatprep.subr.bf16.mxu0 0
  %78 = vmatpush1.bf16.msra.mxu0 0
  %79 = vmatprep.subr.bf16.mxu0 0
  %80 = vmatpush1.bf16.msra.mxu0 0
  %81 = vmatprep.subr.bf16.mxu0 0
  %82 = vmatpush1.bf16.msra.mxu0 0
  %83 = vmatprep.mubr.bf16.mxu0 0
  %84 = vmatmul.mubr.bf16.gmra.mrb[0].mxu0 %v49
  %v85 = vpop.f32.mrb[0].mxu0
  %v86 = vadd.f32 0.0, %v85
  %v87 = vpop.f32.mrb[0].mxu0
  %v88 = vpop.f32.mrb[0].mxu0
  %v89 = vadd.f32 0.0, %v88
  %v90 = vpop.f32.mrb[0].mxu0
  %91 = vdwg.mxu0
  %v92 = vadd.f32 %v22, %v86
  %v93 = vadd.f32 %v23, %v89
  %vm94 = vcmask 523264
  %95 = vst.msk [vmem:[#allocation2] sm:$0xff] %vm94, %v92
  %96 = vst.msk [vmem:[#allocation2 + $0x8] sm:$0xff] %vm94, %v93
  // Predicated region
  $region18: #{transformer_forward.32} parent=0 // pred_check
    %p97 = pneg %p15
  $region19: #{transformer_forward.32} parent=0 // pred_check_branch
    %99 = sbr.rel (%p97) target = $region21
  $region20: #{transformer_forward.32} parent=0 // pred_region
    %v100 = vld [vmem:[#allocation2] sm:$0xff]
    %v101 = vld [vmem:[#allocation2 + $0x8] sm:$0xff]
    %v102 = vld [vmem:[%s2] sm:$0x1]
    %v104 = vlaneseq
    %v105 = vshrl.u32 %v104, 7
    %v106 = vsub.s32 0, %v105
    %v107 = vrot.slane %v102, %v106
    %v109 = vadd.f32 %v100, %v107
    %v110 = vadd.f32 %v101, %v107
    %v111 = vmax.f32 %v109, 0.0
    %v112 = vmax.f32 %v110, 0.0
    %v113 = vpack.c.bf16 %v112, %v111
    %v115 = vunpack.c.l.b16 %v113
    %v116 = vunpack.c.h.b16 %v113
    %v117 = vpack.c.b16 %v115, %v115
    %v118 = vpack.c.b16 %v116, %v116
    %vm121 = vcmask 519168
    %122 = vst.msk [vmem:[%s3] sm:$0xf] %vm121, %v117
    %123 = vst.msk [vmem:[%s3 + $0x4] sm:$0xf] %vm121, %v118
  $region21: #{transformer_forward.32} parent=0 // pred_fallthru
    _
  // Predicated region
  $region22: #{transformer_forward.32} parent=0 // pred_check
    _
  $region23: #{transformer_forward.32} parent=0 // pred_check_branch
    %125 = sbr.rel (0) target = $region25
  $region24: #{transformer_forward.32} parent=0 // pred_region
    _
  $region25: #{transformer_forward.32} parent=0 // pred_fallthru
    _
  // Predicated region
  $region26: #{transformer_forward.32} parent=0 // pred_check
    _
  $region27: #{transformer_forward.32} parent=0 // pred_check_branch
    %127 = sbr.rel (0) target = $region29
  $region28: #{transformer_forward.32} parent=0 // pred_region
    _
  $region29: #{transformer_forward.32} parent=0 // pred_fallthru
    _

// kernel: transformer_forward.42
$region0: #{transformer_forward.42}
  #allocation0 [shape = 'u32[]', space=smem, size = 0x4, offset = 0x4, fixed_abs, tag = 'smem constant byte address 0x4 - core index']
  #allocation1 [shape = 'u32[144,128]{1,0:T(1,128)}', space=vmem, size = 0x12000, scoped, tag = 'internal scratch']
  #allocation2 [shape = 'f32[16,32]{1,0:T(8,128)}', space=vmem, size = 0x2000, scoped, tag = 'scratch operand']
  %s0 = inlined_call_operand.vmem [shape: bf16[16,32], index: 0, kind: input, shape index: {}]
  %s1 = inlined_call_operand.vmem [shape: bf16[32,32], index: 1, kind: input, shape index: {}]
  %s2 = inlined_call_operand.vmem [shape: f32[1,32], index: 2, kind: input, shape index: {}]
  %s3 = inlined_call_operand.vmem [shape: bf16[16,32], index: 3, kind: output, shape index: {}]
  %s4 = sld [smem:[#allocation0]]
  $region30: #{transformer_forward.42} parent=0
    _
  %s6 = ssub.s32 1, %s4
  %s7 = scalar_select 0, %s6, %s4
  // Predicated region
  $region2: #{transformer_forward.42} parent=0 // pred_check
    _
  $region3: #{transformer_forward.42} parent=0 // pred_check_branch
    %9 = sbr.rel (0) target = $region5
  $region4: #{transformer_forward.42} parent=0 // pred_region
    _
  $region5: #{transformer_forward.42} parent=0 // pred_fallthru
    _
  // Predicated region
  $region6: #{transformer_forward.42} parent=0 // pred_check
    _
  $region7: #{transformer_forward.42} parent=0 // pred_check_branch
    %11 = sbr.rel (0) target = $region9
  $region8: #{transformer_forward.42} parent=0 // pred_region
    _
  $region9: #{transformer_forward.42} parent=0 // pred_fallthru
    _
  // Predicated region
  $region10: #{transformer_forward.42} parent=0 // pred_check
    _
  $region11: #{transformer_forward.42} parent=0 // pred_check_branch
    %13 = sbr.rel (0) target = $region13
  $region12: #{transformer_forward.42} parent=0 // pred_region
    _
  $region13: #{transformer_forward.42} parent=0 // pred_fallthru
    _
  %p15 = scmp.eq.s32.totalorder 0, 0
  // Predicated region
  $region14: #{transformer_forward.42} parent=0 // pred_check
    %p16 = pneg %p15
  $region15: #{transformer_forward.42} parent=0 // pred_check_branch
    %18 = sbr.rel (%p16) target = $region17
  $region16: #{transformer_forward.42} parent=0 // pred_region
    %vm19 = vcmask 261120
    %20 = vst.msk [vmem:[#allocation2] sm:$0xff] %vm19, 0.0
    %21 = vst.msk [vmem:[#allocation2 + $0x8] sm:$0xff] %vm19, 0.0
  $region17: #{transformer_forward.42} parent=0 // pred_fallthru
    _
  %v22 = vld [vmem:[#allocation2] sm:$0xff]
  %v23 = vld [vmem:[#allocation2 + $0x8] sm:$0xff]
  %v24 = vld [vmem:[%s0] sm:$0xf]
  %v25 = vld [vmem:[%s0 + $0x4] sm:$0xf]
  %v26 = vld [vmem:[%s1] sm:$0xf]
  %v27 = vld [vmem:[%s1 + $0x4] sm:$0xf]
  %v28 = vld [vmem:[%s1 + $0x8] sm:$0xf]
  %v29 = vld [vmem:[%s1 + $0xc] sm:$0xf]
  %v32 = vunpack.c.l.b16 %v24
  %v33 = vunpack.c.l.b16 %v25
  %v34 = vpack.c.b16 %v33, %v32
  %v39 = vunpack.c.l.b16 %v26
  %v40 = vunpack.c.l.b16 %v27
  %v41 = vunpack.c.l.b16 %v28
  %v42 = vunpack.c.l.b16 %v29
  %v43 = vpack.c.b16 %v40, %v39
  %v44 = vpack.c.b16 %v42, %v41
  %vm47 = vcmask 261120
  %v49 = vsel %vm47, %v34, 0
  %51 = vmatprep.subr.bf16.mxu0 0
  %52 = vmatpush1.bf16.msra.mxu0 %v43
  %53 = vmatprep.subr.bf16.mxu0 0
  %54 = vmatpush1.bf16.msra.mxu0 %v44
  %55 = vmatprep.subr.bf16.mxu0 0
  %56 = vmatpush1.bf16.msra.mxu0 0
  %57 = vmatprep.subr.bf16.mxu0 0
  %58 = vmatpush1.bf16.msra.mxu0 0
  %59 = vmatprep.subr.bf16.mxu0 0
  %60 = vmatpush1.bf16.msra.mxu0 0
  %61 = vmatprep.subr.bf16.mxu0 0
  %62 = vmatpush1.bf16.msra.mxu0 0
  %63 = vmatprep.subr.bf16.mxu0 0
  %64 = vmatpush1.bf16.msra.mxu0 0
  %65 = vmatprep.subr.bf16.mxu0 0
  %66 = vmatpush1.bf16.msra.mxu0 0
  %67 = vmatprep.subr.bf16.mxu0 0
  %68 = vmatpush1.bf16.msra.mxu0 0
  %69 = vmatprep.subr.bf16.mxu0 0
  %70 = vmatpush1.bf16.msra.mxu0 0
  %71 = vmatprep.subr.bf16.mxu0 0
  %72 = vmatpush1.bf16.msra.mxu0 0
  %73 = vmatprep.subr.bf16.mxu0 0
  %74 = vmatpush1.bf16.msra.mxu0 0
  %75 = vmatprep.subr.bf16.mxu0 0
  %76 = vmatpush1.bf16.msra.mxu0 0
  %77 = vmatprep.subr.bf16.mxu0 0
  %78 = vmatpush1.bf16.msra.mxu0 0
  %79 = vmatprep.subr.bf16.mxu0 0
  %80 = vmatpush1.bf16.msra.mxu0 0
  %81 = vmatprep.subr.bf16.mxu0 0
  %82 = vmatpush1.bf16.msra.mxu0 0
  %83 = vmatprep.mubr.bf16.mxu0 0
  %84 = vmatmul.mubr.bf16.gmra.mrb[0].mxu0 %v49
  %v85 = vpop.f32.mrb[0].mxu0
  %v86 = vadd.f32 0.0, %v85
  %v87 = vpop.f32.mrb[0].mxu0
  %v88 = vpop.f32.mrb[0].mxu0
  %v89 = vadd.f32 0.0, %v88
  %v90 = vpop.f32.mrb[0].mxu0
  %91 = vdwg.mxu0
  %v92 = vadd.f32 %v22, %v86
  %v93 = vadd.f32 %v23, %v89
  %94 = vst.msk [vmem:[#allocation2] sm:$0xff] %vm47, %v92
  %95 = vst.msk [vmem:[#allocation2 + $0x8] sm:$0xff] %vm47, %v93
  // Predicated region
  $region18: #{transformer_forward.42} parent=0 // pred_check
    %p96 = pneg %p15
  $region19: #{transformer_forward.42} parent=0 // pred_check_branch
    %98 = sbr.rel (%p96) target = $region21
  $region20: #{transformer_forward.42} parent=0 // pred_region
    %v99 = vld [vmem:[#allocation2] sm:$0xff]
    %v100 = vld [vmem:[#allocation2 + $0x8] sm:$0xff]
    %v101 = vld [vmem:[%s2] sm:$0x1]
    %v103 = vlaneseq
    %v104 = vshrl.u32 %v103, 7
    %v105 = vsub.s32 0, %v104
    %v106 = vrot.slane %v101, %v105
    %v108 = vadd.f32 %v99, %v106
    %v109 = vadd.f32 %v100, %v106
    %v110 = vpack.c.bf16 %v109, %v108
    %v112 = vunpack.c.l.b16 %v110
    %v113 = vunpack.c.h.b16 %v110
    %v114 = vpack.c.b16 %v112, %v112
    %v115 = vpack.c.b16 %v113, %v113
    %vm118 = vcmask 257024
    %119 = vst.msk [vmem:[%s3] sm:$0xf] %vm118, %v114
    %120 = vst.msk [vmem:[%s3 + $0x4] sm:$0xf] %vm118, %v115
  $region21: #{transformer_forward.42} parent=0 // pred_fallthru
    _
  // Predicated region
  $region22: #{transformer_forward.42} parent=0 // pred_check
    _
  $region23: #{transformer_forward.42} parent=0 // pred_check_branch
    %122 = sbr.rel (0) target = $region25
  $region24: #{transformer_forward.42} parent=0 // pred_region
    _
  $region25: #{transformer_forward.42} parent=0 // pred_fallthru
    _
  // Predicated region
  $region26: #{transformer_forward.42} parent=0 // pred_check
    _
  $region27: #{transformer_forward.42} parent=0 // pred_check_branch
    %124 = sbr.rel (0) target = $region29
  $region28: #{transformer_forward.42} parent=0 // pred_region
    _
  $region29: #{transformer_forward.42} parent=0 // pred_fallthru
    _

// kernel: transformer_forward.43
$region0: #{transformer_forward.43}
  #allocation0 [shape = 'u32[]', space=smem, size = 0x4, offset = 0x4, fixed_abs, tag = 'smem constant byte address 0x4 - core index']
  #allocation1 [shape = 'u32[144,128]{1,0:T(1,128)}', space=vmem, size = 0x12000, scoped, tag = 'internal scratch']
  #allocation2 [shape = 'f32[16,64]{1,0:T(8,128)}', space=vmem, size = 0x2000, scoped, tag = 'scratch operand']
  %s0 = inlined_call_operand.vmem [shape: bf16[16,32], index: 0, kind: input, shape index: {}]
  %s1 = inlined_call_operand.vmem [shape: bf16[32,64], index: 1, kind: input, shape index: {}]
  %s2 = inlined_call_operand.vmem [shape: f32[1,64], index: 2, kind: input, shape index: {}]
  %s3 = inlined_call_operand.vmem [shape: bf16[16,32], index: 3, kind: output, shape index: {0}]
  %s4 = inlined_call_operand.vmem [shape: bf16[16,32], index: 4, kind: output, shape index: {1}]
  %5 = xla_tuple %s3, %s4
  %s6 = sld [smem:[#allocation0]]
  $region38: #{transformer_forward.43} parent=0
    _
  %s8 = ssub.s32 1, %s6
  %s9 = scalar_select 0, %s8, %s6
  // Predicated region
  $region2: #{transformer_forward.43} parent=0 // pred_check
    _
  $region3: #{transformer_forward.43} parent=0 // pred_check_branch
    %11 = sbr.rel (0) target = $region5
  $region4: #{transformer_forward.43} parent=0 // pred_region
    _
  $region5: #{transformer_forward.43} parent=0 // pred_fallthru
    _
  // Predicated region
  $region6: #{transformer_forward.43} parent=0 // pred_check
    _
  $region7: #{transformer_forward.43} parent=0 // pred_check_branch
    %13 = sbr.rel (0) target = $region9
  $region8: #{transformer_forward.43} parent=0 // pred_region
    _
  $region9: #{transformer_forward.43} parent=0 // pred_fallthru
    _
  // Predicated region
  $region10: #{transformer_forward.43} parent=0 // pred_check
    _
  $region11: #{transformer_forward.43} parent=0 // pred_check_branch
    %15 = sbr.rel (0) target = $region13
  $region12: #{transformer_forward.43} parent=0 // pred_region
    _
  $region13: #{transformer_forward.43} parent=0 // pred_fallthru
    _
  %p17 = scmp.eq.s32.totalorder 0, 0
  // Predicated region
  $region14: #{transformer_forward.43} parent=0 // pred_check
    %p18 = pneg %p17
  $region15: #{transformer_forward.43} parent=0 // pred_check_branch
    %20 = sbr.rel (%p18) target = $region17
  $region16: #{transformer_forward.43} parent=0 // pred_region
    %vm21 = vcmask 523264
    %22 = vst.msk [vmem:[#allocation2] sm:$0xff] %vm21, 0.0
    %23 = vst.msk [vmem:[#allocation2 + $0x8] sm:$0xff] %vm21, 0.0
  $region17: #{transformer_forward.43} parent=0 // pred_fallthru
    _
  %v24 = vld [vmem:[#allocation2] sm:$0xff]
  %v25 = vld [vmem:[#allocation2 + $0x8] sm:$0xff]
  %v26 = vld [vmem:[%s0] sm:$0xf]
  %v27 = vld [vmem:[%s0 + $0x4] sm:$0xf]
  %v28 = vld [vmem:[%s1] sm:$0xf]
  %v29 = vld [vmem:[%s1 + $0x4] sm:$0xf]
  %v30 = vld [vmem:[%s1 + $0x8] sm:$0xf]
  %v31 = vld [vmem:[%s1 + $0xc] sm:$0xf]
  %v34 = vunpack.c.l.b16 %v26
  %v35 = vunpack.c.l.b16 %v27
  %v36 = vpack.c.b16 %v35, %v34
  %v41 = vunpack.c.l.b16 %v28
  %v42 = vunpack.c.l.b16 %v29
  %v43 = vunpack.c.l.b16 %v30
  %v44 = vunpack.c.l.b16 %v31
  %v45 = vpack.c.b16 %v42, %v41
  %v46 = vpack.c.b16 %v44, %v43
  %vm49 = vcmask 261120
  %v51 = vsel %vm49, %v36, 0
  %53 = vmatprep.subr.bf16.mxu0 0
  %54 = vmatpush1.bf16.msra.mxu0 %v45
  %55 = vmatprep.subr.bf16.mxu0 0
  %56 = vmatpush1.bf16.msra.mxu0 %v46
  %57 = vmatprep.subr.bf16.mxu0 0
  %58 = vmatpush1.bf16.msra.mxu0 0
  %59 = vmatprep.subr.bf16.mxu0 0
  %60 = vmatpush1.bf16.msra.mxu0 0
  %61 = vmatprep.subr.bf16.mxu0 0
  %62 = vmatpush1.bf16.msra.mxu0 0
  %63 = vmatprep.subr.bf16.mxu0 0
  %64 = vmatpush1.bf16.msra.mxu0 0
  %65 = vmatprep.subr.bf16.mxu0 0
  %66 = vmatpush1.bf16.msra.mxu0 0
  %67 = vmatprep.subr.bf16.mxu0 0
  %68 = vmatpush1.bf16.msra.mxu0 0
  %69 = vmatprep.subr.bf16.mxu0 0
  %70 = vmatpush1.bf16.msra.mxu0 0
  %71 = vmatprep.subr.bf16.mxu0 0
  %72 = vmatpush1.bf16.msra.mxu0 0
  %73 = vmatprep.subr.bf16.mxu0 0
  %74 = vmatpush1.bf16.msra.mxu0 0
  %75 = vmatprep.subr.bf16.mxu0 0
  %76 = vmatpush1.bf16.msra.mxu0 0
  %77 = vmatprep.subr.bf16.mxu0 0
  %78 = vmatpush1.bf16.msra.mxu0 0
  %79 = vmatprep.subr.bf16.mxu0 0
  %80 = vmatpush1.bf16.msra.mxu0 0
  %81 = vmatprep.subr.bf16.mxu0 0
  %82 = vmatpush1.bf16.msra.mxu0 0
  %83 = vmatprep.subr.bf16.mxu0 0
  %84 = vmatpush1.bf16.msra.mxu0 0
  %85 = vmatprep.mubr.bf16.mxu0 0
  %86 = vmatmul.mubr.bf16.gmra.mrb[0].mxu0 %v51
  %v87 = vpop.f32.mrb[0].mxu0
  %v88 = vadd.f32 0.0, %v87
  %v89 = vpop.f32.mrb[0].mxu0
  %v90 = vpop.f32.mrb[0].mxu0
  %v91 = vadd.f32 0.0, %v90
  %v92 = vpop.f32.mrb[0].mxu0
  %93 = vdwg.mxu0
  %v94 = vadd.f32 %v24, %v88
  %v95 = vadd.f32 %v25, %v91
  %vm96 = vcmask 523264
  %97 = vst.msk [vmem:[#allocation2] sm:$0xff] %vm96, %v94
  %98 = vst.msk [vmem:[#allocation2 + $0x8] sm:$0xff] %vm96, %v95
  // Predicated region
  $region18: #{transformer_forward.43} parent=0 // pred_check
    %p99 = pneg %p17
  $region19: #{transformer_forward.43} parent=0 // pred_check_branch
    %101 = sbr.rel (%p99) target = $region21
  $region20: #{transformer_forward.43} parent=0 // pred_region
    %v102 = vld [vmem:[#allocation2] sm:$0xff]
    %v103 = vld [vmem:[#allocation2 + $0x8] sm:$0xff]
    %v104 = vld [vmem:[%s2] sm:$0x1]
    %v106 = vlaneseq
    %v107 = vshrl.u32 %v106, 7
    %v108 = vsub.s32 0, %v107
    %v109 = vrot.slane %v104, %v108
    %v111 = vadd.f32 %v102, %v109
    %v112 = vadd.f32 %v103, %v109
    %v113 = vpack.c.bf16 %v112, %v111
    %v115 = vunpack.c.l.b16 %v113
    %v116 = vunpack.c.h.b16 %v113
    %v117 = vpack.c.b16 %v115, %v115
    %v118 = vpack.c.b16 %v116, %v116
    %vm121 = vcmask 257024
    %122 = vst.msk [vmem:[%s3] sm:$0xf] %vm121, %v117
    %123 = vst.msk [vmem:[%s3 + $0x4] sm:$0xf] %vm121, %v118
    %124 = vrot.lane.b32.xlu0 %v117, 96
    %v125 = vpop.permute.xlu0 %124
    %126 = vrot.lane.b32.xlu0 %v118, 96
    %v127 = vpop.permute.xlu0 %126
    %130 = vst.msk [vmem:[%s4] sm:$0xf] %vm121, %v125
    %131 = vst.msk [vmem:[%s4 + $0x4] sm:$0xf] %vm121, %v127
  $region21: #{transformer_forward.43} parent=0 // pred_fallthru
    _
  // Predicated region
  $region22: #{transformer_forward.43} parent=0 // pred_check
    _
  $region23: #{transformer_forward.43} parent=0 // pred_check_branch
    %133 = sbr.rel (0) target = $region25
  $region24: #{transformer_forward.43} parent=0 // pred_region
    _
  $region25: #{transformer_forward.43} parent=0 // pred_fallthru
    _
  // Predicated region
  $region26: #{transformer_forward.43} parent=0 // pred_check
    _
  $region27: #{transformer_forward.43} parent=0 // pred_check_branch
    %135 = sbr.rel (0) target = $region29
  $region28: #{transformer_forward.43} parent=0 // pred_region
    _
  $region29: #{transformer_forward.43} parent=0 // pred_fallthru
    _
  // Predicated region
  $region30: #{transformer_forward.43} parent=0 // pred_check
    _
  $region31: #{transformer_forward.43} parent=0 // pred_check_branch
    %137 = sbr.rel (0) target = $region33
  $region32: #{transformer_forward.43} parent=0 // pred_region
    _
  $region33: #{transformer_forward.43} parent=0 // pred_fallthru
    _
  // Predicated region
  $region34: #{transformer_forward.43} parent=0 // pred_check
    _
  $region35: #{transformer_forward.43} parent=0 // pred_check_branch
    %139 = sbr.rel (0) target = $region37
  $region36: #{transformer_forward.43} parent=0 // pred_region
    _
  $region37: #{transformer_forward.43} parent=0 // pred_fallthru
    _

// kernel: transformer_forward.33
$region0: #{transformer_forward.33}
  #allocation0 [shape = 'u32[]', space=smem, size = 0x4, offset = 0x4, fixed_abs, tag = 'smem constant byte address 0x4 - core index']
  #allocation1 [shape = 'u32[144,128]{1,0:T(1,128)}', space=vmem, size = 0x12000, scoped, tag = 'internal scratch']
  #allocation2 [shape = 'f32[16,32]{1,0:T(8,128)}', space=vmem, size = 0x2000, scoped, tag = 'scratch operand']
  %s0 = inlined_call_operand.vmem [shape: bf16[16,64], index: 0, kind: input, shape index: {}]
  %s1 = inlined_call_operand.vmem [shape: bf16[64,32], index: 1, kind: input, shape index: {}]
  %s2 = inlined_call_operand.vmem [shape: f32[1,32], index: 2, kind: input, shape index: {}]
  %s3 = inlined_call_operand.vmem [shape: bf16[16,32], index: 3, kind: input, shape index: {}]
  %s4 = inlined_call_operand.vmem [shape: f32[1,32], index: 4, kind: input, shape index: {}]
  %s5 = inlined_call_operand.vmem [shape: f32[1,32], index: 5, kind: input, shape index: {}]
  %s6 = inlined_call_operand.vmem [shape: bf16[16,32], index: 6, kind: output, shape index: {}]
  %s7 = sld [smem:[#allocation0]]
  $region42: #{transformer_forward.33} parent=0
    _
  %s9 = ssub.s32 1, %s7
  %s10 = scalar_select 0, %s9, %s7
  // Predicated region
  $region2: #{transformer_forward.33} parent=0 // pred_check
    _
  $region3: #{transformer_forward.33} parent=0 // pred_check_branch
    %12 = sbr.rel (0) target = $region5
  $region4: #{transformer_forward.33} parent=0 // pred_region
    _
  $region5: #{transformer_forward.33} parent=0 // pred_fallthru
    _
  // Predicated region
  $region6: #{transformer_forward.33} parent=0 // pred_check
    _
  $region7: #{transformer_forward.33} parent=0 // pred_check_branch
    %14 = sbr.rel (0) target = $region9
  $region8: #{transformer_forward.33} parent=0 // pred_region
    _
  $region9: #{transformer_forward.33} parent=0 // pred_fallthru
    _
  // Predicated region
  $region10: #{transformer_forward.33} parent=0 // pred_check
    _
  $region11: #{transformer_forward.33} parent=0 // pred_check_branch
    %16 = sbr.rel (0) target = $region13
  $region12: #{transformer_forward.33} parent=0 // pred_region
    _
  $region13: #{transformer_forward.33} parent=0 // pred_fallthru
    _
  // Predicated region
  $region14: #{transformer_forward.33} parent=0 // pred_check
    _
  $region15: #{transformer_forward.33} parent=0 // pred_check_branch
    %18 = sbr.rel (0) target = $region17
  $region16: #{transformer_forward.33} parent=0 // pred_region
    _
  $region17: #{transformer_forward.33} parent=0 // pred_fallthru
    _
  // Predicated region
  $region18: #{transformer_forward.33} parent=0 // pred_check
    _
  $region19: #{transformer_forward.33} parent=0 // pred_check_branch
    %20 = sbr.rel (0) target = $region21
  $region20: #{transformer_forward.33} parent=0 // pred_region
    _
  $region21: #{transformer_forward.33} parent=0 // pred_fallthru
    _
  // Predicated region
  $region22: #{transformer_forward.33} parent=0 // pred_check
    _
  $region23: #{transformer_forward.33} parent=0 // pred_check_branch
    %22 = sbr.rel (0) target = $region25
  $region24: #{transformer_forward.33} parent=0 // pred_region
    _
  $region25: #{transformer_forward.33} parent=0 // pred_fallthru
    _
  %p24 = scmp.eq.s32.totalorder 0, 0
  // Predicated region
  $region26: #{transformer_forward.33} parent=0 // pred_check
    %p25 = pneg %p24
  $region27: #{transformer_forward.33} parent=0 // pred_check_branch
    %27 = sbr.rel (%p25) target = $region29
  $region28: #{transformer_forward.33} parent=0 // pred_region
    %vm28 = vcmask 261120
    %29 = vst.msk [vmem:[#allocation2] sm:$0xff] %vm28, 0.0
    %30 = vst.msk [vmem:[#allocation2 + $0x8] sm:$0xff] %vm28, 0.0
  $region29: #{transformer_forward.33} parent=0 // pred_fallthru
    _
  %v31 = vld [vmem:[#allocation2] sm:$0xff]
  %v32 = vld [vmem:[#allocation2 + $0x8] sm:$0xff]
  %v33 = vld [vmem:[%s0] sm:$0xf]
  %v34 = vld [vmem:[%s0 + $0x4] sm:$0xf]
  %v35 = vld [vmem:[%s1] sm:$0xf]
  %v36 = vld [vmem:[%s1 + $0x4] sm:$0xf]
  %v37 = vld [vmem:[%s1 + $0x8] sm:$0xf]
  %v38 = vld [vmem:[%s1 + $0xc] sm:$0xf]
  %v39 = vld [vmem:[%s1 + $0x10] sm:$0xf]
  %v40 = vld [vmem:[%s1 + $0x14] sm:$0xf]
  %v41 = vld [vmem:[%s1 + $0x18] sm:$0xf]
  %v42 = vld [vmem:[%s1 + $0x1c] sm:$0xf]
  %v45 = vunpack.c.l.b16 %v33
  %v46 = vunpack.c.l.b16 %v34
  %v47 = vpack.c.b16 %v46, %v45
  %v56 = vunpack.c.l.b16 %v35
  %v57 = vunpack.c.l.b16 %v36
  %v58 = vunpack.c.l.b16 %v37
  %v59 = vunpack.c.l.b16 %v38
  %v60 = vunpack.c.l.b16 %v39
  %v61 = vunpack.c.l.b16 %v40
  %v62 = vunpack.c.l.b16 %v41
  %v63 = vunpack.c.l.b16 %v42
  %v64 = vpack.c.b16 %v57, %v56
  %v65 = vpack.c.b16 %v59, %v58
  %v66 = vpack.c.b16 %v61, %v60
  %v67 = vpack.c.b16 %v63, %v62
  %vm72 = vcmask 523264
  %v74 = vsel %vm72, %v47, 0
  %76 = vmatprep.subr.bf16.mxu0 0
  %77 = vmatpush1.bf16.msra.mxu0 %v64
  %78 = vmatprep.subr.bf16.mxu0 0
  %79 = vmatpush1.bf16.msra.mxu0 %v65
  %80 = vmatprep.subr.bf16.mxu0 0
  %81 = vmatpush1.bf16.msra.mxu0 %v66
  %82 = vmatprep.subr.bf16.mxu0 0
  %83 = vmatpush1.bf16.msra.mxu0 %v67
  %84 = vmatprep.subr.bf16.mxu0 0
  %85 = vmatpush1.bf16.msra.mxu0 0
  %86 = vmatprep.subr.bf16.mxu0 0
  %87 = vmatpush1.bf16.msra.mxu0 0
  %88 = vmatprep.subr.bf16.mxu0 0
  %89 = vmatpush1.bf16.msra.mxu0 0
  %90 = vmatprep.subr.bf16.mxu0 0
  %91 = vmatpush1.bf16.msra.mxu0 0
  %92 = vmatprep.subr.bf16.mxu0 0
  %93 = vmatpush1.bf16.msra.mxu0 0
  %94 = vmatprep.subr.bf16.mxu0 0
  %95 = vmatpush1.bf16.msra.mxu0 0
  %96 = vmatprep.subr.bf16.mxu0 0
  %97 = vmatpush1.bf16.msra.mxu0 0
  %98 = vmatprep.subr.bf16.mxu0 0
  %99 = vmatpush1.bf16.msra.mxu0 0
  %100 = vmatprep.subr.bf16.mxu0 0
  %101 = vmatpush1.bf16.msra.mxu0 0
  %102 = vmatprep.subr.bf16.mxu0 0
  %103 = vmatpush1.bf16.msra.mxu0 0
  %104 = vmatprep.subr.bf16.mxu0 0
  %105 = vmatpush1.bf16.msra.mxu0 0
  %106 = vmatprep.subr.bf16.mxu0 0
  %107 = vmatpush1.bf16.msra.mxu0 0
  %108 = vmatprep.mubr.bf16.mxu0 0
  %109 = vmatmul.mubr.bf16.gmra.mrb[0].mxu0 %v74
  %v110 = vpop.f32.mrb[0].mxu0
  %v111 = vadd.f32 0.0, %v110
  %v112 = vpop.f32.mrb[0].mxu0
  %v113 = vpop.f32.mrb[0].mxu0
  %v114 = vadd.f32 0.0, %v113
  %v115 = vpop.f32.mrb[0].mxu0
  %116 = vdwg.mxu0
  %v117 = vadd.f32 %v31, %v111
  %v118 = vadd.f32 %v32, %v114
  %vm119 = vcmask 261120
  %120 = vst.msk [vmem:[#allocation2] sm:$0xff] %vm119, %v117
  %121 = vst.msk [vmem:[#allocation2 + $0x8] sm:$0xff] %vm119, %v118
  // Predicated region
  $region30: #{transformer_forward.33} parent=0 // pred_check
    %p122 = pneg %p24
  $region31: #{transformer_forward.33} parent=0 // pred_check_branch
    %124 = sbr.rel (%p122) target = $region33
  $region32: #{transformer_forward.33} parent=0 // pred_region
    %v125 = vld [vmem:[#allocation2] sm:$0xff]
    %v126 = vld [vmem:[#allocation2 + $0x8] sm:$0xff]
    %v127 = vld [vmem:[%s2] sm:$0x1]
    %v129 = vlaneseq
    %v130 = vshrl.u32 %v129, 7
    %v131 = vsub.s32 0, %v130
    %v132 = vrot.slane %v127, %v131
    %v134 = vadd.f32 %v125, %v132
    %v135 = vadd.f32 %v126, %v132
    %v136 = vld [vmem:[%s3] sm:$0xf]
    %v137 = vld [vmem:[%s3 + $0x4] sm:$0xf]
    %v138 = vunpack.c.l.bf16 %v136
    %v139 = vunpack.c.l.bf16 %v137
    %v140 = vadd.f32 %v134, %v138
    %v141 = vadd.f32 %v135, %v139
    %v142 = vsel %vm119, %v140, 0.0
    %143 = vadd.xlane.f32.xlu0 %v142
    %v144 = vpop.xlane.xlu0 %143
    %v145 = vsel %vm119, %v141, 0.0
    %146 = vadd.xlane.f32.xlu0 %v145
    %v147 = vpop.xlane.xlu0 %146
    %v148 = vrcp.pop 32.0
    %v149 = vmul.f32 %v144, %v148
    %v150 = vmul.f32 %v147, %v148
    %v151 = vsub.f32 %v140, %v149
    %v152 = vsub.f32 %v141, %v150
    %v153 = vmul.f32 %v151, %v151
    %v154 = vmul.f32 %v152, %v152
    %v155 = vsel %vm119, %v153, 0.0
    %156 = vadd.xlane.f32.xlu0 %v155
    %v157 = vpop.xlane.xlu0 %156
    %v158 = vsel %vm119, %v154, 0.0
    %159 = vadd.xlane.f32.xlu0 %v158
    %v160 = vpop.xlane.xlu0 %159
    %v161 = vmul.f32 %v157, %v148
    %v162 = vmul.f32 %v160, %v148
    %v163 = vadd.f32 %v161, 1e-05
    %v164 = vadd.f32 %v162, 1e-05
    %v165 = vrsqrt.pop %v163
    %v166 = vrsqrt.pop %v164
    %v167 = vmul.f32 %v151, %v165
    %v168 = vmul.f32 %v152, %v166
    %v169 = vld [vmem:[%s4] sm:$0x1]
    %v171 = vlaneseq
    %v172 = vshrl.u32 %v171, 7
    %v173 = vsub.s32 0, %v172
    %v174 = vrot.slane %v169, %v173
    %v176 = vmul.f32 %v167, %v174
    %v177 = vmul.f32 %v168, %v174
    %v178 = vld [vmem:[%s5] sm:$0x1]
    %v180 = vlaneseq
    %v181 = vshrl.u32 %v180, 7
    %v182 = vsub.s32 0, %v181
    %v183 = vrot.slane %v178, %v182
    %v185 = vadd.f32 %v176, %v183
    %v186 = vadd.f32 %v177, %v183
    %v187 = vpack.c.bf16 %v186, %v185
    %v189 = vunpack.c.l.b16 %v187
    %v190 = vunpack.c.h.b16 %v187
    %v191 = vpack.c.b16 %v189, %v189
    %v192 = vpack.c.b16 %v190, %v190
    %vm195 = vcmask 257024
    %196 = vst.msk [vmem:[%s6] sm:$0xf] %vm195, %v191
    %197 = vst.msk [vmem:[%s6 + $0x4] sm:$0xf] %vm195, %v192
  $region33: #{transformer_forward.33} parent=0 // pred_fallthru
    _
  // Predicated region
  $region34: #{transformer_forward.33} parent=0 // pred_check
    _
  $region35: #{transformer_forward.33} parent=0 // pred_check_branch
    %199 = sbr.rel (0) target = $region37
  $region36: #{transformer_forward.33} parent=0 // pred_region
    _
  $region37: #{transformer_forward.33} parent=0 // pred_fallthru
    _
  // Predicated region
  $region38: #{transformer_forward.33} parent=0 // pred_check
    _
  $region39: #{transformer_forward.33} parent=0 // pred_check_branch
    %201 = sbr.rel (0) target = $region41
  $region40: #{transformer_forward.33} parent=0 // pred_region
    _
  $region41: #{transformer_forward.33} parent=0 // pred_fallthru
    _

// kernel: transformer_forward.40
$region0: #{transformer_forward.40}
  #allocation0 [shape = 'u32[]', space=smem, size = 0x4, offset = 0x4, fixed_abs, tag = 'smem constant byte address 0x4 - core index']
  #allocation1 [shape = 'u32[144,128]{1,0:T(1,128)}', space=vmem, size = 0x12000, scoped, tag = 'internal scratch']
  %s0 = inlined_call_operand.vmem [shape: bf16[2,8,32], index: 0, kind: input, shape index: {}]
  %s1 = inlined_call_operand.vmem [shape: bf16[2,8,32], index: 1, kind: input, shape index: {}]
  %s2 = inlined_call_operand.vmem [shape: bf16[2,8,32], index: 2, kind: input, shape index: {}]
  %s3 = inlined_call_operand.vmem [shape: bf16[2,8,32], index: 3, kind: output, shape index: {}]
  %s4 = sld [smem:[#allocation0]]
  $region45: #{transformer_forward.40} parent=0
    _
  %s6 = ssub.s32 1, %s4
  %s7 = scalar_select 0, %s6, %s4
  loop: start=0, step=1, limit=4
  $region2: #{transformer_forward.40} parent=0 // loop_pre_header
    _
  $region3: #{transformer_forward.40} parent=0 // loop_header
    %s9 = sphi 0, %s13
    %p10 = scmp.ge.s32.totalorder %s9, 4
    %s16 = sphi 0, %s28
    %s17 = sphi 0, %s24
    %s18 = sphi 0, %s16
    %s19 = sphi 0, %s17
    %s20 = sphi 0, %s18
    %s21 = sphi 0, %s19
    %s33 = sphi 0, %s35
    %s36 = sphi 0, %s33
    %s37 = sphi 0, %s36
    %s53 = sphi 0, %s37
    %s59 = sphi 0, %s61
    %s62 = sphi 0, %s59
    %s63 = sphi 0, %s62
    %s79 = sphi 0, %s63
    %s85 = sphi 0, %s87
    %s88 = sphi 0, %s85
    %s89 = sphi 0, %s88
    %s105 = sphi 0, %s89
    %s113 = sphi 0, %s115
    %s116 = sphi 0, %s113
    %s117 = sphi 0, %s116
    %s133 = sphi 0, %s117
  $region4: #{transformer_forward.40} parent=0 // loop_header_branch
    %12 = sbr.rel (%p10) target = $region8
  $region5: #{transformer_forward.40} parent=0 // loop_body
    %s14 = ssub.s32 %s9, 1
    %s15 = ssub.s32 %s9, 2
    %s22 = sadd.s32 1, %s17
    %p23 = scmp.ge.s32.totalorder %s22, 1
    %s24 = scalar_select %p23, 0, %s22
    %s25 = sadd.s32 1, %s16
    %s26 = scalar_select %p23, %s25, %s16
    %p27 = scmp.ge.s32.totalorder %s26, 2
    %s28 = scalar_select %p27, 0, %s26
    %s29 = ssub.s32 %s16, %s28
    %s30 = ssub.s32 %s17, %s24
    %s31 = sor.u32 %s29, %s30
    %p32 = scmp.eq.s32.totalorder %s31, 0
    %s34 = sadd.s32 %s33, 1
    %s35 = scalar_select %p32, %s33, %s34
    %p38 = pneg %p32
    %p39 = scmp.eq.s32.totalorder %s9, 1
    %p40 = por %p38, %p39
    %p41 = scmp.ne.s32.totalorder %s33, %s36
    %p42 = scmp.eq.s32.totalorder %s9, 0
    %p43 = por %p41, %p42
    %p44 = scmp.ne.s32.totalorder %s33, %s36
    %p45 = scmp.eq.s32.totalorder %s14, 1
    %p46 = por %p44, %p45
    %p47 = scmp.ne.s32.totalorder %s36, %s37
    %p48 = scmp.eq.s32.totalorder %s14, 0
    %p49 = por %p47, %p48
    %p50 = scmp.ne.s32.totalorder %s36, %s37
    %p51 = scmp.eq.s32.totalorder %s15, 1
    %p52 = por %p50, %p51
    %p54 = scmp.ne.s32.totalorder %s37, %s53
    %p55 = scmp.eq.s32.totalorder %s15, 0
    %p56 = por %p54, %p55
    %s57 = ssub.s32 %s16, %s28
    %p58 = scmp.eq.s32.totalorder %s57, 0
    %s60 = sadd.s32 %s59, 1
    %s61 = scalar_select %p58, %s59, %s60
    %p64 = pneg %p58
    %p65 = scmp.eq.s32.totalorder %s9, 1
    %p66 = por %p64, %p65
    %p67 = scmp.ne.s32.totalorder %s59, %s62
    %p68 = scmp.eq.s32.totalorder %s9, 0
    %p69 = por %p67, %p68
    %p70 = scmp.ne.s32.totalorder %s59, %s62
    %p71 = scmp.eq.s32.totalorder %s14, 1
    %p72 = por %p70, %p71
    %p73 = scmp.ne.s32.totalorder %s62, %s63
    %p74 = scmp.eq.s32.totalorder %s14, 0
    %p75 = por %p73, %p74
    %p76 = scmp.ne.s32.totalorder %s62, %s63
    %p77 = scmp.eq.s32.totalorder %s15, 1
    %p78 = por %p76, %p77
    %p80 = scmp.ne.s32.totalorder %s63, %s79
    %p81 = scmp.eq.s32.totalorder %s15, 0
    %p82 = por %p80, %p81
    %s83 = ssub.s32 %s16, %s28
    %p84 = scmp.eq.s32.totalorder %s83, 0
    %s86 = sadd.s32 %s85, 1
    %s87 = scalar_select %p84, %s85, %s86
    %p90 = pneg %p84
    %p91 = scmp.eq.s32.totalorder %s9, 1
    %p92 = por %p90, %p91
    %p93 = scmp.ne.s32.totalorder %s85, %s88
    %p94 = scmp.eq.s32.totalorder %s9, 0
    %p95 = por %p93, %p94
    %p96 = scmp.ne.s32.totalorder %s85, %s88
    %p97 = scmp.eq.s32.totalorder %s14, 1
    %p98 = por %p96, %p97
    %p99 = scmp.ne.s32.totalorder %s88, %s89
    %p100 = scmp.eq.s32.totalorder %s14, 0
    %p101 = por %p99, %p100
    %p102 = scmp.ne.s32.totalorder %s88, %s89
    %p103 = scmp.eq.s32.totalorder %s15, 1
    %p104 = por %p102, %p103
    %p106 = scmp.ne.s32.totalorder %s89, %s105
    %p107 = scmp.eq.s32.totalorder %s15, 0
    %p108 = por %p106, %p107
    %s109 = ssub.s32 %s16, %s28
    %s110 = ssub.s32 %s17, %s24
    %s111 = sor.u32 %s109, %s110
    %p112 = scmp.eq.s32.totalorder %s111, 0
    %s114 = sadd.s32 %s113, 1
    %s115 = scalar_select %p112, %s113, %s114
    %p118 = pneg %p112
    %p119 = scmp.eq.s32.totalorder %s9, 1
    %p120 = por %p118, %p119
    %p121 = scmp.ne.s32.totalorder %s113, %s116
    %p122 = scmp.eq.s32.totalorder %s9, 0
    %p123 = por %p121, %p122
    %p124 = scmp.ne.s32.totalorder %s113, %s116
    %p125 = scmp.eq.s32.totalorder %s14, 1
    %p126 = por %p124, %p125
    %p127 = scmp.ne.s32.totalorder %s116, %s117
    %p128 = scmp.eq.s32.totalorder %s14, 0
    %p129 = por %p127, %p128
    %p130 = scmp.ne.s32.totalorder %s116, %s117
    %p131 = scmp.eq.s32.totalorder %s15, 1
    %p132 = por %p130, %p131
    %p134 = scmp.ne.s32.totalorder %s117, %s133
    %p135 = scmp.eq.s32.totalorder %s15, 0
    %p136 = por %p134, %p135
    %p137 = scmp.le.s32.totalorder 1, %s9
    %p138 = scmp.lt.s32.totalorder %s9, 3
    %p139 = pnand %p137, %p138
    %p140 = pneg %p139
    // Predicated region
    $region9: #{transformer_forward.40} parent=5 // pred_check
      _
    $region10: #{transformer_forward.40} parent=5 // pred_check_branch
      %142 = sbr.rel (%p139) target = $region12
    $region11: #{transformer_forward.40} parent=5 // pred_region
      %s143 = ssub.s32 %s9, 1
    $region12: #{transformer_forward.40} parent=5 // pred_fallthru
      _
    %p144 = scmp.lt.s32.totalorder %s9, 2
    // Predicated region
    $region13: #{transformer_forward.40} parent=5 // pred_check
      %p145 = pneg %p144
    $region14: #{transformer_forward.40} parent=5 // pred_check_branch
      %147 = sbr.rel (%p145) target = $region16
    $region15: #{transformer_forward.40} parent=5 // pred_region
      // Predicated region
      $region17: #{transformer_forward.40} parent=15 // pred_check
        %p148 = pneg %p43
      $region18: #{transformer_forward.40} parent=15 // pred_check_branch
        %150 = sbr.rel (%p148) target = $region20
      $region19: #{transformer_forward.40} parent=15 // pred_region
        %p151 = scmp.lt.s32.totalorder %s16, 1
        %s152 = scalar_select %p151, %s16, 1
        %p153 = scmp.lt.s32.totalorder %s17, 0
        %s154 = scalar_select %p153, %s17, 0
        %s155 = sadd.s32 %s154, %s152
        %s156 = smul.addr %s155, 4
        %s157 = scalar_lea.vmem %s0, %s156
      $region20: #{transformer_forward.40} parent=15 // pred_fallthru
        _
      // Predicated region
      $region21: #{transformer_forward.40} parent=15 // pred_check
        %p158 = pneg %p69
      $region22: #{transformer_forward.40} parent=15 // pred_check_branch
        %160 = sbr.rel (%p158) target = $region24
      $region23: #{transformer_forward.40} parent=15 // pred_region
        %p161 = scmp.lt.s32.totalorder %s16, 1
        %s162 = scalar_select %p161, %s16, 1
        %s163 = smul.addr %s162, 4
        %s164 = scalar_lea.vmem %s1, %s163
      $region24: #{transformer_forward.40} parent=15 // pred_fallthru
        _
      // Predicated region
      $region25: #{transformer_forward.40} parent=15 // pred_check
        %p165 = pneg %p95
      $region26: #{transformer_forward.40} parent=15 // pred_check_branch
        %167 = sbr.rel (%p165) target = $region28
      $region27: #{transformer_forward.40} parent=15 // pred_region
        %p168 = scmp.lt.s32.totalorder %s16, 1
        %s169 = scalar_select %p168, %s16, 1
        %s170 = smul.addr %s169, 4
        %s171 = scalar_lea.vmem %s2, %s170
      $region28: #{transformer_forward.40} parent=15 // pred_fallthru
        _
    $region16: #{transformer_forward.40} parent=5 // pred_fallthru
      _
    %p172 = scmp.le.s32.totalorder 1, %s9
    %p173 = scmp.lt.s32.totalorder %s9, 3
    %p174 = pnand %p172, %p173
    %p175 = pneg %p174
    // Predicated region
    $region29: #{transformer_forward.40} parent=5 // pred_check
      _
    $region30: #{transformer_forward.40} parent=5 // pred_check_branch
      %177 = sbr.rel (%p174) target = $region32
    $region31: #{transformer_forward.40} parent=5 // pred_region
      %s178 = ssub.s32 %s9, 1
      %p179 = scmp.lt.s32.totalorder %s18, 1
      %s180 = scalar_select %p179, %s18, 1
      %p181 = scmp.lt.s32.totalorder %s19, 0
      %s182 = scalar_select %p181, %s19, 0
      %s183 = sadd.s32 %s182, %s180
      %s184 = smul.addr %s183, 4
      %s185 = scalar_lea.vmem %s0, %s184
      %p186 = pneg %p49
      %p187 = pneg %p46
      %p188 = scmp.lt.s32.totalorder %s18, 1
      %s189 = scalar_select %p188, %s18, 1
      %s190 = smul.addr %s189, 4
      %s191 = scalar_lea.vmem %s1, %s190
      %p192 = pneg %p75
      %p193 = pneg %p72
      %p194 = scmp.lt.s32.totalorder %s18, 1
      %s195 = scalar_select %p194, %s18, 1
      %s196 = smul.addr %s195, 4
      %s197 = scalar_lea.vmem %s2, %s196
      %p198 = pneg %p101
      %p199 = pneg %p98
      %p200 = pneg %p129
      %p201 = pneg %p126
      %p202 = scmp.lt.s32.totalorder %s18, 1
      %s203 = scalar_select %p202, %s18, 1
      %p204 = scmp.lt.s32.totalorder %s19, 0
      %s205 = scalar_select %p204, %s19, 0
      %s206 = sadd.s32 %s205, %s203
      %s207 = smul.addr %s206, 4
      %s208 = scalar_lea.vmem %s3, %s207
      %p209 = scmp.lt.s32.totalorder %s18, 1
      %s210 = scalar_select %p209, %s18, 1
      %p211 = scmp.lt.s32.totalorder %s19, 0
      %s212 = scalar_select %p211, %s19, 0
      %s213 = sadd.s32 %s212, %s210
      %s214 = smul.addr %s213, 4
      %s215 = scalar_lea.vmem %s0, %s214
      %p216 = scmp.lt.s32.totalorder %s18, 1
      %s217 = scalar_select %p216, %s18, 1
      %s218 = smul.addr %s217, 4
      %s219 = scalar_lea.vmem %s1, %s218
      %p220 = scmp.lt.s32.totalorder %s18, 1
      %s221 = scalar_select %p220, %s18, 1
      %s222 = smul.addr %s221, 4
      %s223 = scalar_lea.vmem %s2, %s222
      %p224 = scmp.lt.s32.totalorder %s18, 1
      %s225 = scalar_select %p224, %s18, 1
      %p226 = scmp.lt.s32.totalorder %s19, 0
      %s227 = scalar_select %p226, %s19, 0
      %s228 = sadd.s32 %s227, %s225
      %s229 = smul.addr %s228, 4
      %s230 = scalar_lea.vmem %s3, %s229
      %v232 = vld [vmem:[%s215] sm:$0xf]
      %v233 = vld [vmem:[%s219] sm:$0xf]
      %v234 = vld [vmem:[%s223] sm:$0xf]
      %s235 = smul.u32 %s19, 8
      %v236 = vlaneseq
      %v237 = vshrl.u32 %v236, 7
      %v238 = vstv %s235
      %v239 = vadd.s32 %v238, %v237
      %v240 = vlaneseq
      %v241 = vand.u32 %v240, 127
      %vm242 = vcmp.gt.s32.totalorder %v241, %v239
      %v243 = vsel %vm242, -1e+09, 0.0
      %vm244 = vcmask 64512
      %v246 = vsel %vm244, %v232, 0
      %v249 = vsel %vm244, %v233, 0
      %251 = vmatprep.subr.bf16.mxu0 0
      %252 = vmatpush1.bf16.xpose.msra.mxu0 %v249
      %253 = vmatprep.subr.bf16.mxu0 0
      %254 = vmatpush1.bf16.xpose.msra.mxu0 0
      %255 = vmatprep.subr.bf16.mxu0 0
      %256 = vmatpush1.bf16.xpose.msra.mxu0 0
      %257 = vmatprep.subr.bf16.mxu0 0
      %258 = vmatpush1.bf16.xpose.msra.mxu0 0
      %259 = vmatprep.subr.bf16.mxu0 0
      %260 = vmatpush1.bf16.xpose.msra.mxu0 0
      %261 = vmatprep.subr.bf16.mxu0 0
      %262 = vmatpush1.bf16.xpose.msra.mxu0 0
      %263 = vmatprep.subr.bf16.mxu0 0
      %264 = vmatpush1.bf16.xpose.msra.mxu0 0
      %265 = vmatprep.subr.bf16.mxu0 0
      %266 = vmatpush1.bf16.xpose.msra.mxu0 0
      %267 = vmatprep.subr.bf16.mxu0 0
      %268 = vmatpush1.bf16.xpose.msra.mxu0 0
      %269 = vmatprep.subr.bf16.mxu0 0
      %270 = vmatpush1.bf16.xpose.msra.mxu0 0
      %271 = vmatprep.subr.bf16.mxu0 0
      %272 = vmatpush1.bf16.xpose.msra.mxu0 0
      %273 = vmatprep.subr.bf16.mxu0 0
      %274 = vmatpush1.bf16.xpose.msra.mxu0 0
      %275 = vmatprep.subr.bf16.mxu0 0
      %276 = vmatpush1.bf16.xpose.msra.mxu0 0
      %277 = vmatprep.subr.bf16.mxu0 0
      %278 = vmatpush1.bf16.xpose.msra.mxu0 0
      %279 = vmatprep.subr.bf16.mxu0 0
      %280 = vmatpush1.bf16.xpose.msra.mxu0 0
      %281 = vmatprep.subr.bf16.mxu0 0
      %282 = vmatpush1.bf16.xpose.msra.mxu0 0
      %283 = vmatprep.mubr.bf16.mxu0 0
      %284 = vmatmul.mubr.bf16.gmra.mrb[0].mxu0 %v246
      %v285 = vpop.f32.mrb[0].mxu0
      %v286 = vadd.f32 %v243, %v285
      %v287 = vpop.f32.mrb[0].mxu0
      %v288 = vpop.f32.mrb[0].mxu0
      %v289 = vpop.f32.mrb[0].mxu0
      %290 = vdwg.mxu0
      %v291 = vsel %vm244, %v286, -inf
      %292 = vmax.xlane.f32.xlu0 %v291
      %v293 = vpop.xlane.xlu0 %292
      %v294 = vsub.f32 %v286, %v293
      %v295 = vmul.f32 %v294, 1.442695
      %v296 = vpow.pop %v295
      %v297 = vsel %vm244, %v296, 0.0
      %298 = vadd.xlane.f32.xlu0 %v297
      %v299 = vpop.xlane.xlu0 %298
      %v300 = vrcp.pop %v299
      %v301 = vmul.f32 %v296, %v300
      %v302 = vpack.c.bf16 %v301, %v301
      %v304 = vsel %vm244, %v302, 0
      %vm306 = vcmask 1043456
      %v308 = vsel %vm306, %v234, 0
      %310 = vmatprep.subr.bf16.mxu0 0
      %311 = vmatpush1.bf16.msra.mxu0 %v308
      %312 = vmatprep.subr.bf16.mxu0 0
      %313 = vmatpush1.bf16.msra.mxu0 0
      %314 = vmatprep.subr.bf16.mxu0 0
      %315 = vmatpush1.bf16.msra.mxu0 0
      %316 = vmatprep.subr.bf16.mxu0 0
      %317 = vmatpush1.bf16.msra.mxu0 0
      %318 = vmatprep.subr.bf16.mxu0 0
      %319 = vmatpush1.bf16.msra.mxu0 0
      %320 = vmatprep.subr.bf16.mxu0 0
      %321 = vmatpush1.bf16.msra.mxu0 0
      %322 = vmatprep.subr.bf16.mxu0 0
      %323 = vmatpush1.bf16.msra.mxu0 0
      %324 = vmatprep.subr.bf16.mxu0 0
      %325 = vmatpush1.bf16.msra.mxu0 0
      %326 = vmatprep.subr.bf16.mxu0 0
      %327 = vmatpush1.bf16.msra.mxu0 0
      %328 = vmatprep.subr.bf16.mxu0 0
      %329 = vmatpush1.bf16.msra.mxu0 0
      %330 = vmatprep.subr.bf16.mxu0 0
      %331 = vmatpush1.bf16.msra.mxu0 0
      %332 = vmatprep.subr.bf16.mxu0 0
      %333 = vmatpush1.bf16.msra.mxu0 0
      %334 = vmatprep.subr.bf16.mxu0 0
      %335 = vmatpush1.bf16.msra.mxu0 0
      %336 = vmatprep.subr.bf16.mxu0 0
      %337 = vmatpush1.bf16.msra.mxu0 0
      %338 = vmatprep.subr.bf16.mxu0 0
      %339 = vmatpush1.bf16.msra.mxu0 0
      %340 = vmatprep.subr.bf16.mxu0 0
      %341 = vmatpush1.bf16.msra.mxu0 0
      %342 = vmatprep.mubr.bf16.mxu0 0
      %343 = vmatmul.mubr.bf16.gmra.mrb[0].mxu0 %v304
      %v344 = vpop.f32.mrb[0].mxu0
      %v345 = vadd.f32 0.0, %v344
      %v346 = vpop.f32.mrb[0].mxu0
      %v347 = vpop.f32.mrb[0].mxu0
      %v348 = vpop.f32.mrb[0].mxu0
      %349 = vdwg.mxu0
      %v350 = vpack.c.bf16 %v345, %v345
      %vm351 = vcmask 60416
      %352 = vst.msk [vmem:[%s230] sm:$0xf] %vm351, %v350
      %v354 = vunpack.c.l.b16 %v232
      %v355 = vpack.c.b16 %v354, %v354
      %356 = vrot.lane.b32.xlu0 %v355, 120
      %v357 = vpop.permute.xlu0 %356
      %v359 = vunpack.c.l.b16 %v233
      %v360 = vpack.c.b16 %v359, %v359
      %361 = vrot.lane.b32.xlu0 %v360, 120
      %v362 = vpop.permute.xlu0 %361
      %v364 = vsel %vm244, %v357, 0
      %v367 = vsel %vm244, %v362, 0
      %369 = vmatprep.subr.bf16.mxu0 0
      %370 = vmatpush1.bf16.xpose.msra.mxu0 %v367
      %371 = vmatprep.subr.bf16.mxu0 0
      %372 = vmatpush1.bf16.xpose.msra.mxu0 0
      %373 = vmatprep.subr.bf16.mxu0 0
      %374 = vmatpush1.bf16.xpose.msra.mxu0 0
      %375 = vmatprep.subr.bf16.mxu0 0
      %376 = vmatpush1.bf16.xpose.msra.mxu0 0
      %377 = vmatprep.subr.bf16.mxu0 0
      %378 = vmatpush1.bf16.xpose.msra.mxu0 0
      %379 = vmatprep.subr.bf16.mxu0 0
      %380 = vmatpush1.bf16.xpose.msra.mxu0 0
      %381 = vmatprep.subr.bf16.mxu0 0
      %382 = vmatpush1.bf16.xpose.msra.mxu0 0
      %383 = vmatprep.subr.bf16.mxu0 0
      %384 = vmatpush1.bf16.xpose.msra.mxu0 0
      %385 = vmatprep.subr.bf16.mxu0 0
      %386 = vmatpush1.bf16.xpose.msra.mxu0 0
      %387 = vmatprep.subr.bf16.mxu0 0
      %388 = vmatpush1.bf16.xpose.msra.mxu0 0
      %389 = vmatprep.subr.bf16.mxu0 0
      %390 = vmatpush1.bf16.xpose.msra.mxu0 0
      %391 = vmatprep.subr.bf16.mxu0 0
      %392 = vmatpush1.bf16.xpose.msra.mxu0 0
      %393 = vmatprep.subr.bf16.mxu0 0
      %394 = vmatpush1.bf16.xpose.msra.mxu0 0
      %395 = vmatprep.subr.bf16.mxu0 0
      %396 = vmatpush1.bf16.xpose.msra.mxu0 0
      %397 = vmatprep.subr.bf16.mxu0 0
      %398 = vmatpush1.bf16.xpose.msra.mxu0 0
      %399 = vmatprep.subr.bf16.mxu0 0
      %400 = vmatpush1.bf16.xpose.msra.mxu0 0
      %401 = vmatprep.mubr.bf16.mxu0 0
      %402 = vmatmul.mubr.bf16.gmra.mrb[0].mxu0 %v364
      %v403 = vpop.f32.mrb[0].mxu0
      %v404 = vadd.f32 %v243, %v403
      %v405 = vpop.f32.mrb[0].mxu0
      %v406 = vpop.f32.mrb[0].mxu0
      %v407 = vpop.f32.mrb[0].mxu0
      %408 = vdwg.mxu0
      %v409 = vsel %vm244, %v404, -inf
      %410 = vmax.xlane.f32.xlu0 %v409
      %v411 = vpop.xlane.xlu0 %410
      %v412 = vsub.f32 %v404, %v411
      %v413 = vmul.f32 %v412, 1.442695
      %v414 = vpow.pop %v413
      %v415 = vsel %vm244, %v414, 0.0
      %416 = vadd.xlane.f32.xlu0 %v415
      %v417 = vpop.xlane.xlu0 %416
      %v418 = vrcp.pop %v417
      %v419 = vmul.f32 %v414, %v418
      %v420 = vpack.c.bf16 %v419, %v419
      %v422 = vunpack.c.l.b16 %v234
      %v423 = vpack.c.b16 %v422, %v422
      %424 = vrot.lane.b32.xlu0 %v423, 120
      %v425 = vpop.permute.xlu0 %424
      %v427 = vsel %vm244, %v420, 0
      %v430 = vsel %vm306, %v425, 0
      %432 = vmatprep.subr.bf16.mxu0 0
      %433 = vmatpush1.bf16.msra.mxu0 %v430
      %434 = vmatprep.subr.bf16.mxu0 0
      %435 = vmatpush1.bf16.msra.mxu0 0
      %436 = vmatprep.subr.bf16.mxu0 0
      %437 = vmatpush1.bf16.msra.mxu0 0
      %438 = vmatprep.subr.bf16.mxu0 0
      %439 = vmatpush1.bf16.msra.mxu0 0
      %440 = vmatprep.subr.bf16.mxu0 0
      %441 = vmatpush1.bf16.msra.mxu0 0
      %442 = vmatprep.subr.bf16.mxu0 0
      %443 = vmatpush1.bf16.msra.mxu0 0
      %444 = vmatprep.subr.bf16.mxu0 0
      %445 = vmatpush1.bf16.msra.mxu0 0
      %446 = vmatprep.subr.bf16.mxu0 0
      %447 = vmatpush1.bf16.msra.mxu0 0
      %448 = vmatprep.subr.bf16.mxu0 0
      %449 = vmatpush1.bf16.msra.mxu0 0
      %450 = vmatprep.subr.bf16.mxu0 0
      %451 = vmatpush1.bf16.msra.mxu0 0
      %452 = vmatprep.subr.bf16.mxu0 0
      %453 = vmatpush1.bf16.msra.mxu0 0
      %454 = vmatprep.subr.bf16.mxu0 0
      %455 = vmatpush1.bf16.msra.mxu0 0
      %456 = vmatprep.subr.bf16.mxu0 0
      %457 = vmatpush1.bf16.msra.mxu0 0
      %458 = vmatprep.subr.bf16.mxu0 0
      %459 = vmatpush1.bf16.msra.mxu0 0
      %460 = vmatprep.subr.bf16.mxu0 0
      %461 = vmatpush1.bf16.msra.mxu0 0
      %462 = vmatprep.subr.bf16.mxu0 0
      %463 = vmatpush1.bf16.msra.mxu0 0
      %464 = vmatprep.mubr.bf16.mxu0 0
      %465 = vmatmul.mubr.bf16.gmra.mrb[0].mxu0 %v427
      %v466 = vpop.f32.mrb[0].mxu0
      %v467 = vadd.f32 0.0, %v466
      %v468 = vpop.f32.mrb[0].mxu0
      %v469 = vpop.f32.mrb[0].mxu0
      %v470 = vpop.f32.mrb[0].mxu0
      %471 = vdwg.mxu0
      %v472 = vpack.c.bf16 %v467, %v467
      %v474 = vunpack.c.l.b16 %v472
      %v475 = vpack.c.b16 %v474, %v474
      %476 = vrot.lane.b32.xlu0 %v475, 8
      %v477 = vpop.permute.xlu0 %476
      %vm479 = vcmask 126016
      %480 = vst.msk [vmem:[%s230] sm:$0xf] %vm479, %v477
      %481 = vrot.lane.b32.xlu0 %v355, 112
      %v482 = vpop.permute.xlu0 %481
      %483 = vrot.lane.b32.xlu0 %v360, 112
      %v484 = vpop.permute.xlu0 %483
      %v486 = vsel %vm244, %v482, 0
      %v489 = vsel %vm244, %v484, 0
      %491 = vmatprep.subr.bf16.mxu0 0
      %492 = vmatpush1.bf16.xpose.msra.mxu0 %v489
      %493 = vmatprep.subr.bf16.mxu0 0
      %494 = vmatpush1.bf16.xpose.msra.mxu0 0
      %495 = vmatprep.subr.bf16.mxu0 0
      %496 = vmatpush1.bf16.xpose.msra.mxu0 0
      %497 = vmatprep.subr.bf16.mxu0 0
      %498 = vmatpush1.bf16.xpose.msra.mxu0 0
      %499 = vmatprep.subr.bf16.mxu0 0
      %500 = vmatpush1.bf16.xpose.msra.mxu0 0
      %501 = vmatprep.subr.bf16.mxu0 0
      %502 = vmatpush1.bf16.xpose.msra.mxu0 0
      %503 = vmatprep.subr.bf16.mxu0 0
      %504 = vmatpush1.bf16.xpose.msra.mxu0 0
      %505 = vmatprep.subr.bf16.mxu0 0
      %506 = vmatpush1.bf16.xpose.msra.mxu0 0
      %507 = vmatprep.subr.bf16.mxu0 0
      %508 = vmatpush1.bf16.xpose.msra.mxu0 0
      %509 = vmatprep.subr.bf16.mxu0 0
      %510 = vmatpush1.bf16.xpose.msra.mxu0 0
      %511 = vmatprep.subr.bf16.mxu0 0
      %512 = vmatpush1.bf16.xpose.msra.mxu0 0
      %513 = vmatprep.subr.bf16.mxu0 0
      %514 = vmatpush1.bf16.xpose.msra.mxu0 0
      %515 = vmatprep.subr.bf16.mxu0 0
      %516 = vmatpush1.bf16.xpose.msra.mxu0 0
      %517 = vmatprep.subr.bf16.mxu0 0
      %518 = vmatpush1.bf16.xpose.msra.mxu0 0
      %519 = vmatprep.subr.bf16.mxu0 0
      %520 = vmatpush1.bf16.xpose.msra.mxu0 0
      %521 = vmatprep.subr.bf16.mxu0 0
      %522 = vmatpush1.bf16.xpose.msra.mxu0 0
      %523 = vmatprep.mubr.bf16.mxu0 0
      %524 = vmatmul.mubr.bf16.gmra.mrb[0].mxu0 %v486
      %v525 = vpop.f32.mrb[0].mxu0
      %v526 = vadd.f32 %v243, %v525
      %v527 = vpop.f32.mrb[0].mxu0
      %v528 = vpop.f32.mrb[0].mxu0
      %v529 = vpop.f32.mrb[0].mxu0
      %530 = vdwg.mxu0
      %v531 = vsel %vm244, %v526, -inf
      %532 = vmax.xlane.f32.xlu0 %v531
      %v533 = vpop.xlane.xlu0 %532
      %v534 = vsub.f32 %v526, %v533
      %v535 = vmul.f32 %v534, 1.442695
      %v536 = vpow.pop %v535
      %v537 = vsel %vm244, %v536, 0.0
      %538 = vadd.xlane.f32.xlu0 %v537
      %v539 = vpop.xlane.xlu0 %538
      %v540 = vrcp.pop %v539
      %v541 = vmul.f32 %v536, %v540
      %v542 = vpack.c.bf16 %v541, %v541
      %543 = vrot.lane.b32.xlu0 %v423, 112
      %v544 = vpop.permute.xlu0 %543
      %v546 = vsel %vm244, %v542, 0
      %v549 = vsel %vm306, %v544, 0
      %551 = vmatprep.subr.bf16.mxu0 0
      %552 = vmatpush1.bf16.msra.mxu0 %v549
      %553 = vmatprep.subr.bf16.mxu0 0
      %554 = vmatpush1.bf16.msra.mxu0 0
      %555 = vmatprep.subr.bf16.mxu0 0
      %556 = vmatpush1.bf16.msra.mxu0 0
      %557 = vmatprep.subr.bf16.mxu0 0
      %558 = vmatpush1.bf16.msra.mxu0 0
      %559 = vmatprep.subr.bf16.mxu0 0
      %560 = vmatpush1.bf16.msra.mxu0 0
      %561 = vmatprep.subr.bf16.mxu0 0
      %562 = vmatpush1.bf16.msra.mxu0 0
      %563 = vmatprep.subr.bf16.mxu0 0
      %564 = vmatpush1.bf16.msra.mxu0 0
      %565 = vmatprep.subr.bf16.mxu0 0
      %566 = vmatpush1.bf16.msra.mxu0 0
      %567 = vmatprep.subr.bf16.mxu0 0
      %568 = vmatpush1.bf16.msra.mxu0 0
      %569 = vmatprep.subr.bf16.mxu0 0
      %570 = vmatpush1.bf16.msra.mxu0 0
      %571 = vmatprep.subr.bf16.mxu0 0
      %572 = vmatpush1.bf16.msra.mxu0 0
      %573 = vmatprep.subr.bf16.mxu0 0
      %574 = vmatpush1.bf16.msra.mxu0 0
      %575 = vmatprep.subr.bf16.mxu0 0
      %576 = vmatpush1.bf16.msra.mxu0 0
      %577 = vmatprep.subr.bf16.mxu0 0
      %578 = vmatpush1.bf16.msra.mxu0 0
      %579 = vmatprep.subr.bf16.mxu0 0
      %580 = vmatpush1.bf16.msra.mxu0 0
      %581 = vmatprep.subr.bf16.mxu0 0
      %582 = vmatpush1.bf16.msra.mxu0 0
      %583 = vmatprep.mubr.bf16.mxu0 0
      %584 = vmatmul.mubr.bf16.gmra.mrb[0].mxu0 %v546
      %v585 = vpop.f32.mrb[0].mxu0
      %v586 = vadd.f32 0.0, %v585
      %v587 = vpop.f32.mrb[0].mxu0
      %v588 = vpop.f32.mrb[0].mxu0
      %v589 = vpop.f32.mrb[0].mxu0
      %590 = vdwg.mxu0
      %v591 = vpack.c.bf16 %v586, %v586
      %v593 = vunpack.c.l.b16 %v591
      %v594 = vpack.c.b16 %v593, %v593
      %595 = vrot.lane.b32.xlu0 %v594, 16
      %v596 = vpop.permute.xlu0 %595
      %vm598 = vcmask 191616
      %599 = vst.msk [vmem:[%s230] sm:$0xf] %vm598, %v596
      %600 = vrot.lane.b32.xlu0 %v355, 104
      %v601 = vpop.permute.xlu0 %600
      %602 = vrot.lane.b32.xlu0 %v360, 104
      %v603 = vpop.permute.xlu0 %602
      %v605 = vsel %vm244, %v601, 0
      %v608 = vsel %vm244, %v603, 0
      %610 = vmatprep.subr.bf16.mxu0 0
      %611 = vmatpush1.bf16.xpose.msra.mxu0 %v608
      %612 = vmatprep.subr.bf16.mxu0 0
      %613 = vmatpush1.bf16.xpose.msra.mxu0 0
      %614 = vmatprep.subr.bf16.mxu0 0
      %615 = vmatpush1.bf16.xpose.msra.mxu0 0
      %616 = vmatprep.subr.bf16.mxu0 0
      %617 = vmatpush1.bf16.xpose.msra.mxu0 0
      %618 = vmatprep.subr.bf16.mxu0 0
      %619 = vmatpush1.bf16.xpose.msra.mxu0 0
      %620 = vmatprep.subr.bf16.mxu0 0
      %621 = vmatpush1.bf16.xpose.msra.mxu0 0
      %622 = vmatprep.subr.bf16.mxu0 0
      %623 = vmatpush1.bf16.xpose.msra.mxu0 0
      %624 = vmatprep.subr.bf16.mxu0 0
      %625 = vmatpush1.bf16.xpose.msra.mxu0 0
      %626 = vmatprep.subr.bf16.mxu0 0
      %627 = vmatpush1.bf16.xpose.msra.mxu0 0
      %628 = vmatprep.subr.bf16.mxu0 0
      %629 = vmatpush1.bf16.xpose.msra.mxu0 0
      %630 = vmatprep.subr.bf16.mxu0 0
      %631 = vmatpush1.bf16.xpose.msra.mxu0 0
      %632 = vmatprep.subr.bf16.mxu0 0
      %633 = vmatpush1.bf16.xpose.msra.mxu0 0
      %634 = vmatprep.subr.bf16.mxu0 0
      %635 = vmatpush1.bf16.xpose.msra.mxu0 0
      %636 = vmatprep.subr.bf16.mxu0 0
      %637 = vmatpush1.bf16.xpose.msra.mxu0 0
      %638 = vmatprep.subr.bf16.mxu0 0
      %639 = vmatpush1.bf16.xpose.msra.mxu0 0
      %640 = vmatprep.subr.bf16.mxu0 0
      %641 = vmatpush1.bf16.xpose.msra.mxu0 0
      %642 = vmatprep.mubr.bf16.mxu0 0
      %643 = vmatmul.mubr.bf16.gmra.mrb[0].mxu0 %v605
      %v644 = vpop.f32.mrb[0].mxu0
      %v645 = vadd.f32 %v243, %v644
      %v646 = vpop.f32.mrb[0].mxu0
      %v647 = vpop.f32.mrb[0].mxu0
      %v648 = vpop.f32.mrb[0].mxu0
      %649 = vdwg.mxu0
      %v650 = vsel %vm244, %v645, -inf
      %651 = vmax.xlane.f32.xlu0 %v650
      %v652 = vpop.xlane.xlu0 %651
      %v653 = vsub.f32 %v645, %v652
      %v654 = vmul.f32 %v653, 1.442695
      %v655 = vpow.pop %v654
      %v656 = vsel %vm244, %v655, 0.0
      %657 = vadd.xlane.f32.xlu0 %v656
      %v658 = vpop.xlane.xlu0 %657
      %v659 = vrcp.pop %v658
      %v660 = vmul.f32 %v655, %v659
      %v661 = vpack.c.bf16 %v660, %v660
      %662 = vrot.lane.b32.xlu0 %v423, 104
      %v663 = vpop.permute.xlu0 %662
      %v665 = vsel %vm244, %v661, 0
      %v668 = vsel %vm306, %v663, 0
      %670 = vmatprep.subr.bf16.mxu0 0
      %671 = vmatpush1.bf16.msra.mxu0 %v668
      %672 = vmatprep.subr.bf16.mxu0 0
      %673 = vmatpush1.bf16.msra.mxu0 0
      %674 = vmatprep.subr.bf16.mxu0 0
      %675 = vmatpush1.bf16.msra.mxu0 0
      %676 = vmatprep.subr.bf16.mxu0 0
      %677 = vmatpush1.bf16.msra.mxu0 0
      %678 = vmatprep.subr.bf16.mxu0 0
      %679 = vmatpush1.bf16.msra.mxu0 0
      %680 = vmatprep.subr.bf16.mxu0 0
      %681 = vmatpush1.bf16.msra.mxu0 0
      %682 = vmatprep.subr.bf16.mxu0 0
      %683 = vmatpush1.bf16.msra.mxu0 0
      %684 = vmatprep.subr.bf16.mxu0 0
      %685 = vmatpush1.bf16.msra.mxu0 0
      %686 = vmatprep.subr.bf16.mxu0 0
      %687 = vmatpush1.bf16.msra.mxu0 0
      %688 = vmatprep.subr.bf16.mxu0 0
      %689 = vmatpush1.bf16.msra.mxu0 0
      %690 = vmatprep.subr.bf16.mxu0 0
      %691 = vmatpush1.bf16.msra.mxu0 0
      %692 = vmatprep.subr.bf16.mxu0 0
      %693 = vmatpush1.bf16.msra.mxu0 0
      %694 = vmatprep.subr.bf16.mxu0 0
      %695 = vmatpush1.bf16.msra.mxu0 0
      %696 = vmatprep.subr.bf16.mxu0 0
      %697 = vmatpush1.bf16.msra.mxu0 0
      %698 = vmatprep.subr.bf16.mxu0 0
      %699 = vmatpush1.bf16.msra.mxu0 0
      %700 = vmatprep.subr.bf16.mxu0 0
      %701 = vmatpush1.bf16.msra.mxu0 0
      %702 = vmatprep.mubr.bf16.mxu0 0
      %703 = vmatmul.mubr.bf16.gmra.mrb[0].mxu0 %v665
      %v704 = vpop.f32.mrb[0].mxu0
      %v705 = vadd.f32 0.0, %v704
      %v706 = vpop.f32.mrb[0].mxu0
      %v707 = vpop.f32.mrb[0].mxu0
      %v708 = vpop.f32.mrb[0].mxu0
      %709 = vdwg.mxu0
      %v710 = vpack.c.bf16 %v705, %v705
      %v712 = vunpack.c.l.b16 %v710
      %v713 = vpack.c.b16 %v712, %v712
      %714 = vrot.lane.b32.xlu0 %v713, 24
      %v715 = vpop.permute.xlu0 %714
      %vm717 = vcmask 257216
      %718 = vst.msk [vmem:[%s230] sm:$0xf] %vm717, %v715
      %p719 = scmp.lt.s32.totalorder %s18, 1
      %s720 = scalar_select %p719, %s18, 1
      %p721 = scmp.lt.s32.totalorder %s19, 0
      %s722 = scalar_select %p721, %s19, 0
      %s723 = sadd.s32 %s722, %s720
      %s724 = smul.addr %s723, 4
      %s725 = scalar_lea.vmem %s3, %s724
      // Predicated region
      $region33: #{transformer_forward.40} parent=31 // pred_check
        %p726 = pneg %p126
      $region34: #{transformer_forward.40} parent=31 // pred_check_branch
        %728 = sbr.rel (%p726) target = $region36
      $region35: #{transformer_forward.40} parent=31 // pred_region
        _
      $region36: #{transformer_forward.40} parent=31 // pred_fallthru
        _
    $region32: #{transformer_forward.40} parent=5 // pred_fallthru
      _
    %p729 = scmp.le.s32.totalorder 2, %s9
    // Predicated region
    $region37: #{transformer_forward.40} parent=5 // pred_check
      %p730 = pneg %p729
    $region38: #{transformer_forward.40} parent=5 // pred_check_branch
      %732 = sbr.rel (%p730) target = $region40
    $region39: #{transformer_forward.40} parent=5 // pred_region
      %s733 = ssub.s32 %s9, 2
      // Predicated region
      $region41: #{transformer_forward.40} parent=39 // pred_check
        %p734 = pneg %p132
      $region42: #{transformer_forward.40} parent=39 // pred_check_branch
        %736 = sbr.rel (%p734) target = $region44
      $region43: #{transformer_forward.40} parent=39 // pred_region
        %p737 = scmp.lt.s32.totalorder %s20, 1
        %s738 = scalar_select %p737, %s20, 1
        %p739 = scmp.lt.s32.totalorder %s21, 0
        %s740 = scalar_select %p739, %s21, 0
        %s741 = sadd.s32 %s740, %s738
        %s742 = smul.addr %s741, 4
        %s743 = scalar_lea.vmem %s3, %s742
      $region44: #{transformer_forward.40} parent=39 // pred_fallthru
        _
    $region40: #{transformer_forward.40} parent=5 // pred_fallthru
      _
  $region6: #{transformer_forward.40} parent=0 // loop_footer
    %s13 = sadd.s32 1, %s9
  $region7: #{transformer_forward.40} parent=0 // loop_footer_branch
    %8 = sbr.rel target = $region3
  $region8: #{transformer_forward.40} parent=0 // loop_exit
    _

// kernel: transformer_forward.57
$region0: #{transformer_forward.57}
  #allocation0 [shape = 'u32[]', space=smem, size = 0x4, offset = 0x4, fixed_abs, tag = 'smem constant byte address 0x4 - core index']
  #allocation1 [shape = 'u32[144,128]{1,0:T(1,128)}', space=vmem, size = 0x12000, scoped, tag = 'internal scratch']
  #allocation2 [shape = 'f32[16,64]{1,0:T(8,128)}', space=vmem, size = 0x2000, scoped, tag = 'scratch operand']
  %s0 = inlined_call_operand.vmem [shape: bf16[16,32], index: 0, kind: input, shape index: {}]
  %s1 = inlined_call_operand.vmem [shape: bf16[32,64], index: 1, kind: input, shape index: {}]
  %s2 = inlined_call_operand.vmem [shape: f32[1,64], index: 2, kind: input, shape index: {}]
  %s3 = inlined_call_operand.hbm [shape: f32[16,64], index: 3, kind: output, shape index: {}]
  %s4 = sld [smem:[#allocation0]]
  $region30: #{transformer_forward.57} parent=0
    _
  %s6 = ssub.s32 1, %s4
  %s7 = scalar_select 0, %s6, %s4
  $region1: #{transformer_forward.57} parent=0
    #allocation3 [shape = 'u8[8192]{0}', space=vmem, size = 0x2000, scoped, tag = 'output window, operand 0, single buffered']
    #allocation4 [shape = 's32[1]{0}', space=sflag, size = 0x4, scoped, tag = 'scoped memory for transformer_forward.57']
    %8 = vsyncpa [#allocation4], 0
    // Predicated region
    $region2: #{transformer_forward.57} parent=1 // pred_check
      _
    $region3: #{transformer_forward.57} parent=1 // pred_check_branch
      %10 = sbr.rel (0) target = $region5
    $region4: #{transformer_forward.57} parent=1 // pred_region
      _
    $region5: #{transformer_forward.57} parent=1 // pred_fallthru
      _
    // Predicated region
    $region6: #{transformer_forward.57} parent=1 // pred_check
      _
    $region7: #{transformer_forward.57} parent=1 // pred_check_branch
      %12 = sbr.rel (0) target = $region9
    $region8: #{transformer_forward.57} parent=1 // pred_region
      _
    $region9: #{transformer_forward.57} parent=1 // pred_fallthru
      _
    // Predicated region
    $region10: #{transformer_forward.57} parent=1 // pred_check
      _
    $region11: #{transformer_forward.57} parent=1 // pred_check_branch
      %14 = sbr.rel (0) target = $region13
    $region12: #{transformer_forward.57} parent=1 // pred_region
      _
    $region13: #{transformer_forward.57} parent=1 // pred_fallthru
      _
    %p16 = scmp.eq.s32.totalorder 0, 0
    // Predicated region
    $region14: #{transformer_forward.57} parent=1 // pred_check
      %p17 = pneg %p16
    $region15: #{transformer_forward.57} parent=1 // pred_check_branch
      %19 = sbr.rel (%p17) target = $region17
    $region16: #{transformer_forward.57} parent=1 // pred_region
      %vm20 = vcmask 523264
      %21 = vst.msk [vmem:[#allocation2] sm:$0xff] %vm20, 0.0
      %22 = vst.msk [vmem:[#allocation2 + $0x8] sm:$0xff] %vm20, 0.0
    $region17: #{transformer_forward.57} parent=1 // pred_fallthru
      _
    %v23 = vld [vmem:[#allocation2] sm:$0xff]
    %v24 = vld [vmem:[#allocation2 + $0x8] sm:$0xff]
    %v25 = vld [vmem:[%s0] sm:$0xf]
    %v26 = vld [vmem:[%s0 + $0x4] sm:$0xf]
    %v27 = vld [vmem:[%s1] sm:$0xf]
    %v28 = vld [vmem:[%s1 + $0x4] sm:$0xf]
    %v29 = vld [vmem:[%s1 + $0x8] sm:$0xf]
    %v30 = vld [vmem:[%s1 + $0xc] sm:$0xf]
    %v33 = vunpack.c.l.b16 %v25
    %v34 = vunpack.c.l.b16 %v26
    %v35 = vpack.c.b16 %v34, %v33
    %v40 = vunpack.c.l.b16 %v27
    %v41 = vunpack.c.l.b16 %v28
    %v42 = vunpack.c.l.b16 %v29
    %v43 = vunpack.c.l.b16 %v30
    %v44 = vpack.c.b16 %v41, %v40
    %v45 = vpack.c.b16 %v43, %v42
    %vm48 = vcmask 261120
    %v50 = vsel %vm48, %v35, 0
    %52 = vmatprep.subr.bf16.mxu0 0
    %53 = vmatpush1.bf16.msra.mxu0 %v44
    %54 = vmatprep.subr.bf16.mxu0 0
    %55 = vmatpush1.bf16.msra.mxu0 %v45
    %56 = vmatprep.subr.bf16.mxu0 0
    %57 = vmatpush1.bf16.msra.mxu0 0
    %58 = vmatprep.subr.bf16.mxu0 0
    %59 = vmatpush1.bf16.msra.mxu0 0
    %60 = vmatprep.subr.bf16.mxu0 0
    %61 = vmatpush1.bf16.msra.mxu0 0
    %62 = vmatprep.subr.bf16.mxu0 0
    %63 = vmatpush1.bf16.msra.mxu0 0
    %64 = vmatprep.subr.bf16.mxu0 0
    %65 = vmatpush1.bf16.msra.mxu0 0
    %66 = vmatprep.subr.bf16.mxu0 0
    %67 = vmatpush1.bf16.msra.mxu0 0
    %68 = vmatprep.subr.bf16.mxu0 0
    %69 = vmatpush1.bf16.msra.mxu0 0
    %70 = vmatprep.subr.bf16.mxu0 0
    %71 = vmatpush1.bf16.msra.mxu0 0
    %72 = vmatprep.subr.bf16.mxu0 0
    %73 = vmatpush1.bf16.msra.mxu0 0
    %74 = vmatprep.subr.bf16.mxu0 0
    %75 = vmatpush1.bf16.msra.mxu0 0
    %76 = vmatprep.subr.bf16.mxu0 0
    %77 = vmatpush1.bf16.msra.mxu0 0
    %78 = vmatprep.subr.bf16.mxu0 0
    %79 = vmatpush1.bf16.msra.mxu0 0
    %80 = vmatprep.subr.bf16.mxu0 0
    %81 = vmatpush1.bf16.msra.mxu0 0
    %82 = vmatprep.subr.bf16.mxu0 0
    %83 = vmatpush1.bf16.msra.mxu0 0
    %84 = vmatprep.mubr.bf16.mxu0 0
    %85 = vmatmul.mubr.bf16.gmra.mrb[0].mxu0 %v50
    %v86 = vpop.f32.mrb[0].mxu0
    %v87 = vadd.f32 0.0, %v86
    %v88 = vpop.f32.mrb[0].mxu0
    %v89 = vpop.f32.mrb[0].mxu0
    %v90 = vadd.f32 0.0, %v89
    %v91 = vpop.f32.mrb[0].mxu0
    %92 = vdwg.mxu0
    %v93 = vadd.f32 %v23, %v87
    %v94 = vadd.f32 %v24, %v90
    %vm95 = vcmask 523264
    %96 = vst.msk [vmem:[#allocation2] sm:$0xff] %vm95, %v93
    %97 = vst.msk [vmem:[#allocation2 + $0x8] sm:$0xff] %vm95, %v94
    // Predicated region
    $region18: #{transformer_forward.57} parent=1 // pred_check
      %p98 = pneg %p16
    $region19: #{transformer_forward.57} parent=1 // pred_check_branch
      %100 = sbr.rel (%p98) target = $region21
    $region20: #{transformer_forward.57} parent=1 // pred_region
      %v101 = vld [vmem:[#allocation2] sm:$0xff]
      %v102 = vld [vmem:[#allocation2 + $0x8] sm:$0xff]
      %v103 = vld [vmem:[%s2] sm:$0x1]
      %v105 = vlaneseq
      %v106 = vshrl.u32 %v105, 7
      %v107 = vsub.s32 0, %v106
      %v108 = vrot.slane %v103, %v107
      %v110 = vadd.f32 %v101, %v108
      %v111 = vadd.f32 %v102, %v108
      %v112 = vsel %vm95, %v110, -inf
      %113 = vmax.xlane.f32.xlu0 %v112
      %v114 = vpop.xlane.xlu0 %113
      %v115 = vsel %vm95, %v111, -inf
      %116 = vmax.xlane.f32.xlu0 %v115
      %v117 = vpop.xlane.xlu0 %116
      %v118 = vsub.f32 %v110, %v114
      %v119 = vsub.f32 %v111, %v117
      %v120 = vmul.f32 %v118, 1.442695
      %v121 = vpow.pop %v120
      %v122 = vmul.f32 %v119, 1.442695
      %v123 = vpow.pop %v122
      %v124 = vsel %vm95, %v121, 0.0
      %125 = vadd.xlane.f32.xlu0 %v124
      %v126 = vpop.xlane.xlu0 %125
      %v127 = vsel %vm95, %v123, 0.0
      %128 = vadd.xlane.f32.xlu0 %v127
      %v129 = vpop.xlane.xlu0 %128
      %v130 = vrcp.pop %v126
      %v131 = vmul.f32 %v121, %v130
      %v132 = vrcp.pop %v129
      %v133 = vmul.f32 %v123, %v132
      %134 = vst.msk [vmem:[#allocation3] sm:$0xff] %vm95, %v131
      %135 = vst.msk [vmem:[#allocation3 + $0x8] sm:$0xff] %vm95, %v133
    $region21: #{transformer_forward.57} parent=1 // pred_fallthru
      _
    // Predicated region
    $region22: #{transformer_forward.57} parent=1 // pred_check
      _
    $region23: #{transformer_forward.57} parent=1 // pred_check_branch
      %137 = sbr.rel (0) target = $region25
    $region24: #{transformer_forward.57} parent=1 // pred_region
      %s139 = ssub.s32 256, 256
      %140 = vsyncadd [#allocation4], %s139
      %s141 = sshll.u32 [#allocation3], 4
      %s142 = int_to_ptr.vmem [resolvable:$true] %s141
      %147 = dma.vmem_to_hbm [thread:$0]  %s142, 256, %s3, [#allocation4], 128, 128, 8
    $region25: #{transformer_forward.57} parent=1 // pred_fallthru
      _
    // Predicated region
    $region26: #{transformer_forward.57} parent=1 // pred_check
      _
    $region27: #{transformer_forward.57} parent=1 // pred_check_branch
      %149 = sbr.rel (0) target = $region29
    $region28: #{transformer_forward.57} parent=1 // pred_region
      %150 = dma.done [#allocation4], 256
    $region29: #{transformer_forward.57} parent=1 // pred_fallthru
      _
    %151 = vsyncpa [#allocation4], 1

</llo_original>
